<compile_context>
chip_gen: v7x
topology: tpu7x:2x2x1
jax: 0.10.0
libtpu: 0.0.40
codegen_flags: <defaults>
</compile_context>

<pallas_src>
import functools

import jax
import jax.numpy as jnp
from jax.experimental import pallas as pl
from jax.experimental.pallas import tpu as pltpu


def _input_conv_block_kernel(x_ref, w1_ref, b1_ref, w2_ref, b2_ref, o_ref,
                             mp_ref, *, H, W):
    """Fused [conv3x3(pad=1) + folded BN + ReLU] x 2 for one image, channel-major.

    x_ref : (1, Cin, SLAB)    width+height padded input, flattened; SLAB = (H+2)*(W+2)+2
    w1_ref: (9, Cmid, Cin)    conv1 weights (BN folded), k = dy*3 + dx
    b1_ref: (Cmid, 1)         conv1 bias (BN folded)
    w2_ref: (9, Cout, Cmid)   conv2 weights (BN folded)
    b2_ref: (Cout, 1)         conv2 bias (BN folded)
    o_ref : (1, Cout, H*W)    channel-major flat output (== NCHW after free reshape)
    mp_ref: (Cmid, SLAB)      padded mid-activation slab scratch (VMEM, never hits HBM)
    """
    Wp = W + 2
    HWp = H * Wp
    Cmid = w1_ref.shape[1]
    Cout = w2_ref.shape[1]
    SLAB = mp_ref.shape[1]

    # ---- conv1 (3x3, pad=1) + folded BN + ReLU --------------------------------------
    # 9 weight-stationary MXU dots; acc1 lives in the "width-padded" layout (Cout-major,
    # lane p = y*Wp + x), so each tap operand is a contiguous lane window of the slab.
    acc1 = jnp.zeros((Cmid, HWp), jnp.float32)
    for k in range(9):
        dy, dx = divmod(k, 3)
        off = dy * Wp + dx
        acc1 = acc1 + jnp.dot(w1_ref[k], x_ref[0, :, off:off + HWp],
                              preferred_element_type=jnp.float32)

    # Columns W, W+1 of every Wp-wide row are junk (wrap-around taps). They land exactly
    # on the padding columns of the mid slab below, so force them to zero here.
    col = jax.lax.broadcasted_iota(jnp.int32, (1, HWp), 1) % Wp
    relu1 = jnp.where(col < W, jnp.maximum(acc1 + b1_ref[...], 0.0), 0.0)

    # Zero the mid-slab border (top pad row + first left pad, bottom pad row + tail).
    # Cheap (2 x (Cmid, Wp+1) stores) and done every step so it is correct no matter how
    # a 'parallel' grid axis is split across TensorCores; interior is fully overwritten.
    mp_ref[:, :Wp + 1] = jnp.zeros((Cmid, Wp + 1), jnp.float32)
    mp_ref[:, Wp + 1 + HWp:] = jnp.zeros((Cmid, SLAB - (Wp + 1 + HWp)), jnp.float32)
    # Interior: relu1 flat index y*Wp + x lands at padded index (y+1)*Wp + (x+1).
    mp_ref[:, Wp + 1:Wp + 1 + HWp] = relu1

    # ---- conv2 (3x3, pad=1) + folded BN + ReLU --------------------------------------
    acc2 = jnp.zeros((Cout, HWp), jnp.float32)
    for k in range(9):
        dy, dx = divmod(k, 3)
        off = dy * Wp + dx
        acc2 = acc2 + jnp.dot(w2_ref[k], mp_ref[:, off:off + HWp],
                              preferred_element_type=jnp.float32)
    relu2 = jnp.maximum(acc2 + b2_ref[...], 0.0)     # (Cout, HWp), junk cols present

    # Compact once at the end: drop the 2 junk columns per row -> lane-dense (Cout, H*W).
    for iy in range(H):
        o_ref[0, :, iy * W:(iy + 1) * W] = (
            relu2[:, iy * Wp:iy * Wp + W].astype(o_ref.dtype))


def input_conv_block_pallas(x_slab, w1, b1, w2, b2, *, H, W):
    """x_slab: (N, Cin, SLAB) padded channel-major input. Returns (N, Cout, H*W)."""
    N, Cin, SLAB = x_slab.shape
    Cmid = w1.shape[1]
    Cout = w2.shape[1]
    HW = H * W
    itemsize = 4  # f32

    kernel = functools.partial(_input_conv_block_kernel, H=H, W=W)

    flops = 2 * N * HW * 9 * (Cin * Cmid + Cmid * Cout)
    bytes_accessed = itemsize * (N * Cin * SLAB            # input slab
                                 + 9 * Cmid * Cin + Cmid   # conv1 params
                                 + 9 * Cout * Cmid + Cout  # conv2 params
                                 + N * Cout * HW)          # output

    return pl.pallas_call(
        kernel,
        out_shape=jax.ShapeDtypeStruct((N, Cout, HW), x_slab.dtype),
        grid_spec=pltpu.PrefetchScalarGridSpec(
            num_scalar_prefetch=0,
            grid=(N,),
            in_specs=[
                pl.BlockSpec((1, Cin, SLAB), lambda n: (n, 0, 0)),   # one padded image
                pl.BlockSpec((9, Cmid, Cin), lambda n: (0, 0, 0)),   # w1 (resident)
                pl.BlockSpec((Cmid, 1), lambda n: (0, 0)),           # b1
                pl.BlockSpec((9, Cout, Cmid), lambda n: (0, 0, 0)),  # w2 (resident)
                pl.BlockSpec((Cout, 1), lambda n: (0, 0)),           # b2
            ],
            out_specs=pl.BlockSpec((1, Cout, HW), lambda n: (n, 0, 0)),
            scratch_shapes=[
                pltpu.VMEM((Cmid, SLAB), jnp.float32),               # padded mid slab
            ],
        ),
        compiler_params=pltpu.CompilerParams(
            dimension_semantics=("parallel",)),
        cost_estimate=pl.CostEstimate(flops=flops, transcendentals=0,
                                      bytes_accessed=bytes_accessed),
    )(x_slab, w1, b1, w2, b2)


@jax.jit
def input_conv_block_forward(x_nchw, w1, b1, w2, b2):
    """Full forward matching the PyTorch module (eval-mode BN folded into weights)."""
    N, Cin, H, W = x_nchw.shape
    Cout = w2.shape[1]
    Hp, Wp = H + 2, W + 2
    # Zero-pad spatially (padding=1) and flatten to a width-padded channel-major slab.
    # +2 trailing zeros so the (dy=2, dx=2) tap's contiguous lane window stays in-bounds.
    # No NCHW->NHWC transpose needed: channels stay on the sublane axis end-to-end.
    x_pad = jnp.pad(x_nchw, ((0, 0), (0, 0), (1, 1), (1, 1)))
    x_slab = jnp.pad(x_pad.reshape(N, Cin, Hp * Wp), ((0, 0), (0, 0), (0, 2)))
    out_flat = input_conv_block_pallas(x_slab, w1, b1, w2, b2, H=H, W=W)
    return out_flat.reshape(N, Cout, H, W)  # kernel output is already NCHW-flat


# ------------------------------ glue: BN folding & layouts ------------------------------

def _fold_bn_conv(w_oihw, b, gamma, beta, mean, var, eps=1e-5):
    """Fold eval-mode BatchNorm into the preceding conv. w: (Cout, Cin, 3, 3)."""
    scale = gamma / jnp.sqrt(var + eps)
    return w_oihw * scale[:, None, None, None], (b - mean) * scale + beta


def _to_kernel_layout(w_oihw):
    """(Cout, Cin, 3, 3) -> (9, Cout, Cin), indexed by k = dy*3 + dx (cross-correlation)."""
    Cout, Cin = w_oihw.shape[0], w_oihw.shape[1]
    return jnp.transpose(w_oihw, (2, 3, 0, 1)).reshape(9, Cout, Cin)


class InputConvBlockParams:
    """Deterministic synthetic parameters matching the PyTorch module shapes."""

    def __init__(self, key, in_channels, out_channels, mid_channels=None):
        if mid_channels is None:
            mid_channels = out_channels
        ks = jax.random.split(key, 10)

        def u(k, shape, scale=0.3):
            return jax.random.uniform(k, shape, jnp.float32, -scale, scale)

        # Conv2d(in -> mid, 3x3, pad=1) + BatchNorm2d(mid)
        self.w1 = u(ks[0], (mid_channels, in_channels, 3, 3))
        self.b1 = u(ks[1], (mid_channels,))
        self.g1 = 1.0 + u(ks[2], (mid_channels,), 0.1)
        self.beta1 = u(ks[3], (mid_channels,), 0.1)
        self.m1 = u(ks[4], (mid_channels,), 0.2)
        self.v1 = 1.0 + u(ks[5], (mid_channels,), 0.2)
        # Conv2d(mid -> out, 3x3, pad=1) + BatchNorm2d(out)
        self.w2 = u(ks[6], (out_channels, mid_channels, 3, 3))
        self.b2 = u(ks[7], (out_channels,))
        self.g2 = 1.0 + u(ks[8], (out_channels,), 0.1)
        self.beta2 = u(ks[9], (out_channels,), 0.1)
        self.m2 = jnp.zeros((out_channels,), jnp.float32)
        self.v2 = jnp.ones((out_channels,), jnp.float32)

    def folded(self):
        w1f, b1f = _fold_bn_conv(self.w1, self.b1, self.g1, self.beta1, self.m1, self.v1)
        w2f, b2f = _fold_bn_conv(self.w2, self.b2, self.g2, self.beta2, self.m2, self.v2)
        return w1f, b1f, w2f, b2f


def _reference(x_nchw, w1_oihw, b1, w2_oihw, b2):
    """Pure-XLA reference: conv3x3 + bias + relu, twice (weights already BN-folded)."""
    dn = ("NCHW", "OIHW", "NCHW")
    y = jax.lax.conv_general_dilated(x_nchw, w1_oihw, (1, 1), "SAME",
                                     dimension_numbers=dn,
                                     precision=jax.lax.Precision.HIGHEST)
    y = jnp.maximum(y + b1[None, :, None, None], 0.0)
    y = jax.lax.conv_general_dilated(y, w2_oihw, (1, 1), "SAME",
                                     dimension_numbers=dn,
                                     precision=jax.lax.Precision.HIGHEST)
    y = jnp.maximum(y + b2[None, :, None, None], 0.0)
    return y


if __name__ == "__main__":
    key = jax.random.PRNGKey(0)
    k_x, k_p = jax.random.split(key, 2)

    N, Cin, Cout, H, W = 2, 4, 32, 16, 16        # x: (2, 4, 16, 16)
    x = jax.random.normal(k_x, (N, Cin, H, W), jnp.float32)

    params = InputConvBlockParams(k_p, in_channels=Cin, out_channels=Cout)
    w1f, b1f, w2f, b2f = params.folded()
    w1k, w2k = _to_kernel_layout(w1f), _to_kernel_layout(w2f)

    out = input_conv_block_forward(x, w1k, b1f.reshape(-1, 1), w2k, b2f.reshape(-1, 1))
    out = jax.block_until_ready(out)

    ref = _reference(x, w1f, b1f, w2f, b2f)
    assert out.shape == (N, Cout, H, W)
    err = float(jnp.max(jnp.abs(out - ref)))
    assert jnp.allclose(out, ref, atol=1e-3, rtol=1e-3), f"max abs err = {err}"

    print("KERNEL_OK")
</pallas_src>

<mosaic_0001>
module attributes {stable_mosaic.version = 11 : i64} {
  func.func @_input_conv_block_kernel(%arg0: i32, %arg1: memref<1x4x326xf32, #tpu.memory_space<vmem>>, %arg2: memref<9x32x4xf32, #tpu.memory_space<vmem>>, %arg3: memref<32x1xf32, #tpu.memory_space<vmem>>, %arg4: memref<9x32x32xf32, #tpu.memory_space<vmem>>, %arg5: memref<32x1xf32, #tpu.memory_space<vmem>>, %arg6: memref<1x32x256xf32, #tpu.memory_space<vmem>>, %arg7: memref<32x326xf32, #tpu.memory_space<vmem>>) attributes {dimension_semantics = [#tpu.dimension_semantics<parallel>], iteration_bounds = array<i64: 2>, scalar_prefetch = 0 : i64, scratch_operands = 1 : i64, tpu.core_type = #tpu.core_type<tc>, window_params = [{transform_indices = @transform_0, window_bounds = array<i64: 1, 4, 326>}, {pipeline_mode = #tpu.pipeline_mode<synchronous>, transform_indices = @transform_1, window_bounds = array<i64: 9, 32, 4>}, {pipeline_mode = #tpu.pipeline_mode<synchronous>, transform_indices = @transform_2, window_bounds = array<i64: 32, 1>}, {pipeline_mode = #tpu.pipeline_mode<synchronous>, transform_indices = @transform_3, window_bounds = array<i64: 9, 32, 32>}, {pipeline_mode = #tpu.pipeline_mode<synchronous>, transform_indices = @transform_4, window_bounds = array<i64: 32, 1>}, {transform_indices = @transform_5, window_bounds = array<i64: 1, 32, 256>}]} {
    %cst = arith.constant 0.000000e+00 : f32
    %0 = vector.broadcast %cst : f32 to vector<32x288xf32>
    %c0 = arith.constant 0 : index
    %c0_0 = arith.constant 0 : index
    %c0_1 = arith.constant 0 : index
    %1 = vector.load %arg2[%c0, %c0_0, %c0_1] : memref<9x32x4xf32, #tpu.memory_space<vmem>>, vector<1x32x4xf32>
    %2 = vector.shape_cast %1 : vector<1x32x4xf32> to vector<32x4xf32>
    %c0_2 = arith.constant 0 : index
    %c0_3 = arith.constant 0 : index
    %c0_4 = arith.constant 0 : index
    %3 = vector.load %arg1[%c0_2, %c0_3, %c0_4] : memref<1x4x326xf32, #tpu.memory_space<vmem>>, vector<1x4x288xf32>
    %4 = vector.shape_cast %3 : vector<1x4x288xf32> to vector<4x288xf32>
    %cst_5 = arith.constant dense<0.000000e+00> : vector<32x288xf32>
    %5 = tpu.matmul %2, %4, %cst_5 {dimension_numbers = #tpu.dot_dimension_numbers<[1], [0], [0], [1], [0, 0, 1, 1], [], []>} : vector<32x4xf32>, vector<4x288xf32>, vector<32x288xf32> -> vector<32x288xf32>
    %6 = arith.addf %0, %5 : vector<32x288xf32>
    %c1 = arith.constant 1 : index
    %c0_6 = arith.constant 0 : index
    %c0_7 = arith.constant 0 : index
    %7 = vector.load %arg2[%c1, %c0_6, %c0_7] : memref<9x32x4xf32, #tpu.memory_space<vmem>>, vector<1x32x4xf32>
    %8 = vector.shape_cast %7 : vector<1x32x4xf32> to vector<32x4xf32>
    %c0_8 = arith.constant 0 : index
    %c0_9 = arith.constant 0 : index
    %c1_10 = arith.constant 1 : index
    %9 = vector.load %arg1[%c0_8, %c0_9, %c1_10] : memref<1x4x326xf32, #tpu.memory_space<vmem>>, vector<1x4x288xf32>
    %10 = vector.shape_cast %9 : vector<1x4x288xf32> to vector<4x288xf32>
    %cst_11 = arith.constant dense<0.000000e+00> : vector<32x288xf32>
    %11 = tpu.matmul %8, %10, %cst_11 {dimension_numbers = #tpu.dot_dimension_numbers<[1], [0], [0], [1], [0, 0, 1, 1], [], []>} : vector<32x4xf32>, vector<4x288xf32>, vector<32x288xf32> -> vector<32x288xf32>
    %12 = arith.addf %6, %11 : vector<32x288xf32>
    %c2 = arith.constant 2 : index
    %c0_12 = arith.constant 0 : index
    %c0_13 = arith.constant 0 : index
    %13 = vector.load %arg2[%c2, %c0_12, %c0_13] : memref<9x32x4xf32, #tpu.memory_space<vmem>>, vector<1x32x4xf32>
    %14 = vector.shape_cast %13 : vector<1x32x4xf32> to vector<32x4xf32>
    %c0_14 = arith.constant 0 : index
    %c0_15 = arith.constant 0 : index
    %c2_16 = arith.constant 2 : index
    %15 = vector.load %arg1[%c0_14, %c0_15, %c2_16] : memref<1x4x326xf32, #tpu.memory_space<vmem>>, vector<1x4x288xf32>
    %16 = vector.shape_cast %15 : vector<1x4x288xf32> to vector<4x288xf32>
    %cst_17 = arith.constant dense<0.000000e+00> : vector<32x288xf32>
    %17 = tpu.matmul %14, %16, %cst_17 {dimension_numbers = #tpu.dot_dimension_numbers<[1], [0], [0], [1], [0, 0, 1, 1], [], []>} : vector<32x4xf32>, vector<4x288xf32>, vector<32x288xf32> -> vector<32x288xf32>
    %18 = arith.addf %12, %17 : vector<32x288xf32>
    %c3 = arith.constant 3 : index
    %c0_18 = arith.constant 0 : index
    %c0_19 = arith.constant 0 : index
    %19 = vector.load %arg2[%c3, %c0_18, %c0_19] : memref<9x32x4xf32, #tpu.memory_space<vmem>>, vector<1x32x4xf32>
    %20 = vector.shape_cast %19 : vector<1x32x4xf32> to vector<32x4xf32>
    %c0_20 = arith.constant 0 : index
    %c0_21 = arith.constant 0 : index
    %c18 = arith.constant 18 : index
    %21 = vector.load %arg1[%c0_20, %c0_21, %c18] : memref<1x4x326xf32, #tpu.memory_space<vmem>>, vector<1x4x288xf32>
    %22 = vector.shape_cast %21 : vector<1x4x288xf32> to vector<4x288xf32>
    %cst_22 = arith.constant dense<0.000000e+00> : vector<32x288xf32>
    %23 = tpu.matmul %20, %22, %cst_22 {dimension_numbers = #tpu.dot_dimension_numbers<[1], [0], [0], [1], [0, 0, 1, 1], [], []>} : vector<32x4xf32>, vector<4x288xf32>, vector<32x288xf32> -> vector<32x288xf32>
    %24 = arith.addf %18, %23 : vector<32x288xf32>
    %c4 = arith.constant 4 : index
    %c0_23 = arith.constant 0 : index
    %c0_24 = arith.constant 0 : index
    %25 = vector.load %arg2[%c4, %c0_23, %c0_24] : memref<9x32x4xf32, #tpu.memory_space<vmem>>, vector<1x32x4xf32>
    %26 = vector.shape_cast %25 : vector<1x32x4xf32> to vector<32x4xf32>
    %c0_25 = arith.constant 0 : index
    %c0_26 = arith.constant 0 : index
    %c19 = arith.constant 19 : index
    %27 = vector.load %arg1[%c0_25, %c0_26, %c19] : memref<1x4x326xf32, #tpu.memory_space<vmem>>, vector<1x4x288xf32>
    %28 = vector.shape_cast %27 : vector<1x4x288xf32> to vector<4x288xf32>
    %cst_27 = arith.constant dense<0.000000e+00> : vector<32x288xf32>
    %29 = tpu.matmul %26, %28, %cst_27 {dimension_numbers = #tpu.dot_dimension_numbers<[1], [0], [0], [1], [0, 0, 1, 1], [], []>} : vector<32x4xf32>, vector<4x288xf32>, vector<32x288xf32> -> vector<32x288xf32>
    %30 = arith.addf %24, %29 : vector<32x288xf32>
    %c5 = arith.constant 5 : index
    %c0_28 = arith.constant 0 : index
    %c0_29 = arith.constant 0 : index
    %31 = vector.load %arg2[%c5, %c0_28, %c0_29] : memref<9x32x4xf32, #tpu.memory_space<vmem>>, vector<1x32x4xf32>
    %32 = vector.shape_cast %31 : vector<1x32x4xf32> to vector<32x4xf32>
    %c0_30 = arith.constant 0 : index
    %c0_31 = arith.constant 0 : index
    %c20 = arith.constant 20 : index
    %33 = vector.load %arg1[%c0_30, %c0_31, %c20] : memref<1x4x326xf32, #tpu.memory_space<vmem>>, vector<1x4x288xf32>
    %34 = vector.shape_cast %33 : vector<1x4x288xf32> to vector<4x288xf32>
    %cst_32 = arith.constant dense<0.000000e+00> : vector<32x288xf32>
    %35 = tpu.matmul %32, %34, %cst_32 {dimension_numbers = #tpu.dot_dimension_numbers<[1], [0], [0], [1], [0, 0, 1, 1], [], []>} : vector<32x4xf32>, vector<4x288xf32>, vector<32x288xf32> -> vector<32x288xf32>
    %36 = arith.addf %30, %35 : vector<32x288xf32>
    %c6 = arith.constant 6 : index
    %c0_33 = arith.constant 0 : index
    %c0_34 = arith.constant 0 : index
    %37 = vector.load %arg2[%c6, %c0_33, %c0_34] : memref<9x32x4xf32, #tpu.memory_space<vmem>>, vector<1x32x4xf32>
    %38 = vector.shape_cast %37 : vector<1x32x4xf32> to vector<32x4xf32>
    %c0_35 = arith.constant 0 : index
    %c0_36 = arith.constant 0 : index
    %c36 = arith.constant 36 : index
    %39 = vector.load %arg1[%c0_35, %c0_36, %c36] : memref<1x4x326xf32, #tpu.memory_space<vmem>>, vector<1x4x288xf32>
    %40 = vector.shape_cast %39 : vector<1x4x288xf32> to vector<4x288xf32>
    %cst_37 = arith.constant dense<0.000000e+00> : vector<32x288xf32>
    %41 = tpu.matmul %38, %40, %cst_37 {dimension_numbers = #tpu.dot_dimension_numbers<[1], [0], [0], [1], [0, 0, 1, 1], [], []>} : vector<32x4xf32>, vector<4x288xf32>, vector<32x288xf32> -> vector<32x288xf32>
    %42 = arith.addf %36, %41 : vector<32x288xf32>
    %c7 = arith.constant 7 : index
    %c0_38 = arith.constant 0 : index
    %c0_39 = arith.constant 0 : index
    %43 = vector.load %arg2[%c7, %c0_38, %c0_39] : memref<9x32x4xf32, #tpu.memory_space<vmem>>, vector<1x32x4xf32>
    %44 = vector.shape_cast %43 : vector<1x32x4xf32> to vector<32x4xf32>
    %c0_40 = arith.constant 0 : index
    %c0_41 = arith.constant 0 : index
    %c37 = arith.constant 37 : index
    %45 = vector.load %arg1[%c0_40, %c0_41, %c37] : memref<1x4x326xf32, #tpu.memory_space<vmem>>, vector<1x4x288xf32>
    %46 = vector.shape_cast %45 : vector<1x4x288xf32> to vector<4x288xf32>
    %cst_42 = arith.constant dense<0.000000e+00> : vector<32x288xf32>
    %47 = tpu.matmul %44, %46, %cst_42 {dimension_numbers = #tpu.dot_dimension_numbers<[1], [0], [0], [1], [0, 0, 1, 1], [], []>} : vector<32x4xf32>, vector<4x288xf32>, vector<32x288xf32> -> vector<32x288xf32>
    %48 = arith.addf %42, %47 : vector<32x288xf32>
    %c8 = arith.constant 8 : index
    %c0_43 = arith.constant 0 : index
    %c0_44 = arith.constant 0 : index
    %49 = vector.load %arg2[%c8, %c0_43, %c0_44] : memref<9x32x4xf32, #tpu.memory_space<vmem>>, vector<1x32x4xf32>
    %50 = vector.shape_cast %49 : vector<1x32x4xf32> to vector<32x4xf32>
    %c0_45 = arith.constant 0 : index
    %c0_46 = arith.constant 0 : index
    %c38 = arith.constant 38 : index
    %51 = vector.load %arg1[%c0_45, %c0_46, %c38] : memref<1x4x326xf32, #tpu.memory_space<vmem>>, vector<1x4x288xf32>
    %52 = vector.shape_cast %51 : vector<1x4x288xf32> to vector<4x288xf32>
    %cst_47 = arith.constant dense<0.000000e+00> : vector<32x288xf32>
    %53 = tpu.matmul %50, %52, %cst_47 {dimension_numbers = #tpu.dot_dimension_numbers<[1], [0], [0], [1], [0, 0, 1, 1], [], []>} : vector<32x4xf32>, vector<4x288xf32>, vector<32x288xf32> -> vector<32x288xf32>
    %54 = arith.addf %48, %53 : vector<32x288xf32>
    %55 = tpu.iota {dimensions = array<i32: 1>} : vector<1x288xi32>
    %c18_i32 = arith.constant 18 : i32
    %c0_i32 = arith.constant 0 : i32
    %56 = arith.cmpi eq, %c18_i32, %c0_i32 : i32
    %c1_i32 = arith.constant 1 : i32
    %57 = arith.select %56, %c1_i32, %c18_i32 : i32
    %58 = vector.broadcast %57 : i32 to vector<1x288xi32>
    %59 = arith.remsi %55, %58 : vector<1x288xi32>
    %c0_i32_48 = arith.constant 0 : i32
    %60 = vector.broadcast %c0_i32_48 : i32 to vector<1x288xi32>
    %61 = arith.cmpi ne, %59, %60 : vector<1x288xi32>
    %c0_i32_49 = arith.constant 0 : i32
    %62 = vector.broadcast %c0_i32_49 : i32 to vector<1x288xi32>
    %63 = arith.cmpi slt, %59, %62 : vector<1x288xi32>
    %c0_i32_50 = arith.constant 0 : i32
    %64 = arith.cmpi slt, %57, %c0_i32_50 : i32
    %65 = vector.broadcast %64 : i1 to vector<1x288xi1>
    %66 = vector.broadcast %65 : vector<1x288xi1> to vector<1x288xi1>
    %67 = arith.xori %63, %66 : vector<1x288xi1>
    %68 = arith.andi %67, %61 : vector<1x288xi1>
    %69 = vector.broadcast %57 : i32 to vector<1x288xi32>
    %70 = arith.addi %59, %69 : vector<1x288xi32>
    %71 = arith.select %68, %70, %59 : vector<1x288xi1>, vector<1x288xi32>
    %c16_i32 = arith.constant 16 : i32
    %72 = vector.broadcast %c16_i32 : i32 to vector<1x288xi32>
    %73 = arith.cmpi slt, %71, %72 : vector<1x288xi32>
    %c0_51 = arith.constant 0 : index
    %c0_52 = arith.constant 0 : index
    %74 = vector.load %arg3[%c0_51, %c0_52] : memref<32x1xf32, #tpu.memory_space<vmem>>, vector<32x1xf32>
    %75 = vector.broadcast %74 : vector<32x1xf32> to vector<32x288xf32>
    %76 = arith.addf %54, %75 : vector<32x288xf32>
    %cst_53 = arith.constant 0.000000e+00 : f32
    %77 = vector.broadcast %cst_53 : f32 to vector<32x288xf32>
    %78 = arith.maximumf %76, %77 : vector<32x288xf32>
    %cst_54 = arith.constant 0.000000e+00 : f32
    %79 = vector.shape_cast %73 : vector<1x288xi1> to vector<1x288xi1>
    %80 = vector.broadcast %79 : vector<1x288xi1> to vector<32x288xi1>
    %81 = vector.broadcast %cst_54 : f32 to vector<32x288xf32>
    %82 = arith.select %80, %78, %81 : vector<32x288xi1>, vector<32x288xf32>
    %cst_55 = arith.constant 0.000000e+00 : f32
    %83 = vector.broadcast %cst_55 : f32 to vector<32x19xf32>
    %c0_56 = arith.constant 0 : index
    %c0_57 = arith.constant 0 : index
    %84 = vector.load %arg7[%c0_56, %c0_57] : memref<32x326xf32, #tpu.memory_space<vmem>>, vector<32x19xf32>
    tpu.vector_store %arg7[%c0_56, %c0_57], %83 {strides = array<i32>} : memref<32x326xf32, #tpu.memory_space<vmem>>, vector<32x19xf32>,
    %cst_58 = arith.constant 0.000000e+00 : f32
    %85 = vector.broadcast %cst_58 : f32 to vector<32x19xf32>
    %c0_59 = arith.constant 0 : index
    %c307 = arith.constant 307 : index
    %86 = vector.load %arg7[%c0_59, %c307] : memref<32x326xf32, #tpu.memory_space<vmem>>, vector<32x19xf32>
    tpu.vector_store %arg7[%c0_59, %c307], %85 {strides = array<i32>} : memref<32x326xf32, #tpu.memory_space<vmem>>, vector<32x19xf32>,
    %c0_60 = arith.constant 0 : index
    %c19_61 = arith.constant 19 : index
    %87 = vector.load %arg7[%c0_60, %c19_61] : memref<32x326xf32, #tpu.memory_space<vmem>>, vector<32x288xf32>
    tpu.vector_store %arg7[%c0_60, %c19_61], %82 {strides = array<i32>} : memref<32x326xf32, #tpu.memory_space<vmem>>, vector<32x288xf32>,
    %cst_62 = arith.constant 0.000000e+00 : f32
    %88 = vector.broadcast %cst_62 : f32 to vector<32x288xf32>
    %c0_63 = arith.constant 0 : index
    %c0_64 = arith.constant 0 : index
    %c0_65 = arith.constant 0 : index
    %89 = vector.load %arg4[%c0_63, %c0_64, %c0_65] : memref<9x32x32xf32, #tpu.memory_space<vmem>>, vector<1x32x32xf32>
    %90 = vector.shape_cast %89 : vector<1x32x32xf32> to vector<32x32xf32>
    %c0_66 = arith.constant 0 : index
    %c0_67 = arith.constant 0 : index
    %91 = vector.load %arg7[%c0_66, %c0_67] : memref<32x326xf32, #tpu.memory_space<vmem>>, vector<32x288xf32>
    %cst_68 = arith.constant dense<0.000000e+00> : vector<32x288xf32>
    %92 = tpu.matmul %90, %91, %cst_68 {dimension_numbers = #tpu.dot_dimension_numbers<[1], [0], [0], [1], [0, 0, 1, 1], [], []>} : vector<32x32xf32>, vector<32x288xf32>, vector<32x288xf32> -> vector<32x288xf32>
    %93 = arith.addf %88, %92 : vector<32x288xf32>
    %c1_69 = arith.constant 1 : index
    %c0_70 = arith.constant 0 : index
    %c0_71 = arith.constant 0 : index
    %94 = vector.load %arg4[%c1_69, %c0_70, %c0_71] : memref<9x32x32xf32, #tpu.memory_space<vmem>>, vector<1x32x32xf32>
    %95 = vector.shape_cast %94 : vector<1x32x32xf32> to vector<32x32xf32>
    %c0_72 = arith.constant 0 : index
    %c1_73 = arith.constant 1 : index
    %96 = vector.load %arg7[%c0_72, %c1_73] : memref<32x326xf32, #tpu.memory_space<vmem>>, vector<32x288xf32>
    %cst_74 = arith.constant dense<0.000000e+00> : vector<32x288xf32>
    %97 = tpu.matmul %95, %96, %cst_74 {dimension_numbers = #tpu.dot_dimension_numbers<[1], [0], [0], [1], [0, 0, 1, 1], [], []>} : vector<32x32xf32>, vector<32x288xf32>, vector<32x288xf32> -> vector<32x288xf32>
    %98 = arith.addf %93, %97 : vector<32x288xf32>
    %c2_75 = arith.constant 2 : index
    %c0_76 = arith.constant 0 : index
    %c0_77 = arith.constant 0 : index
    %99 = vector.load %arg4[%c2_75, %c0_76, %c0_77] : memref<9x32x32xf32, #tpu.memory_space<vmem>>, vector<1x32x32xf32>
    %100 = vector.shape_cast %99 : vector<1x32x32xf32> to vector<32x32xf32>
    %c0_78 = arith.constant 0 : index
    %c2_79 = arith.constant 2 : index
    %101 = vector.load %arg7[%c0_78, %c2_79] : memref<32x326xf32, #tpu.memory_space<vmem>>, vector<32x288xf32>
    %cst_80 = arith.constant dense<0.000000e+00> : vector<32x288xf32>
    %102 = tpu.matmul %100, %101, %cst_80 {dimension_numbers = #tpu.dot_dimension_numbers<[1], [0], [0], [1], [0, 0, 1, 1], [], []>} : vector<32x32xf32>, vector<32x288xf32>, vector<32x288xf32> -> vector<32x288xf32>
    %103 = arith.addf %98, %102 : vector<32x288xf32>
    %c3_81 = arith.constant 3 : index
    %c0_82 = arith.constant 0 : index
    %c0_83 = arith.constant 0 : index
    %104 = vector.load %arg4[%c3_81, %c0_82, %c0_83] : memref<9x32x32xf32, #tpu.memory_space<vmem>>, vector<1x32x32xf32>
    %105 = vector.shape_cast %104 : vector<1x32x32xf32> to vector<32x32xf32>
    %c0_84 = arith.constant 0 : index
    %c18_85 = arith.constant 18 : index
    %106 = vector.load %arg7[%c0_84, %c18_85] : memref<32x326xf32, #tpu.memory_space<vmem>>, vector<32x288xf32>
    %cst_86 = arith.constant dense<0.000000e+00> : vector<32x288xf32>
    %107 = tpu.matmul %105, %106, %cst_86 {dimension_numbers = #tpu.dot_dimension_numbers<[1], [0], [0], [1], [0, 0, 1, 1], [], []>} : vector<32x32xf32>, vector<32x288xf32>, vector<32x288xf32> -> vector<32x288xf32>
    %108 = arith.addf %103, %107 : vector<32x288xf32>
    %c4_87 = arith.constant 4 : index
    %c0_88 = arith.constant 0 : index
    %c0_89 = arith.constant 0 : index
    %109 = vector.load %arg4[%c4_87, %c0_88, %c0_89] : memref<9x32x32xf32, #tpu.memory_space<vmem>>, vector<1x32x32xf32>
    %110 = vector.shape_cast %109 : vector<1x32x32xf32> to vector<32x32xf32>
    %c0_90 = arith.constant 0 : index
    %c19_91 = arith.constant 19 : index
    %111 = vector.load %arg7[%c0_90, %c19_91] : memref<32x326xf32, #tpu.memory_space<vmem>>, vector<32x288xf32>
    %cst_92 = arith.constant dense<0.000000e+00> : vector<32x288xf32>
    %112 = tpu.matmul %110, %111, %cst_92 {dimension_numbers = #tpu.dot_dimension_numbers<[1], [0], [0], [1], [0, 0, 1, 1], [], []>} : vector<32x32xf32>, vector<32x288xf32>, vector<32x288xf32> -> vector<32x288xf32>
    %113 = arith.addf %108, %112 : vector<32x288xf32>
    %c5_93 = arith.constant 5 : index
    %c0_94 = arith.constant 0 : index
    %c0_95 = arith.constant 0 : index
    %114 = vector.load %arg4[%c5_93, %c0_94, %c0_95] : memref<9x32x32xf32, #tpu.memory_space<vmem>>, vector<1x32x32xf32>
    %115 = vector.shape_cast %114 : vector<1x32x32xf32> to vector<32x32xf32>
    %c0_96 = arith.constant 0 : index
    %c20_97 = arith.constant 20 : index
    %116 = vector.load %arg7[%c0_96, %c20_97] : memref<32x326xf32, #tpu.memory_space<vmem>>, vector<32x288xf32>
    %cst_98 = arith.constant dense<0.000000e+00> : vector<32x288xf32>
    %117 = tpu.matmul %115, %116, %cst_98 {dimension_numbers = #tpu.dot_dimension_numbers<[1], [0], [0], [1], [0, 0, 1, 1], [], []>} : vector<32x32xf32>, vector<32x288xf32>, vector<32x288xf32> -> vector<32x288xf32>
    %118 = arith.addf %113, %117 : vector<32x288xf32>
    %c6_99 = arith.constant 6 : index
    %c0_100 = arith.constant 0 : index
    %c0_101 = arith.constant 0 : index
    %119 = vector.load %arg4[%c6_99, %c0_100, %c0_101] : memref<9x32x32xf32, #tpu.memory_space<vmem>>, vector<1x32x32xf32>
    %120 = vector.shape_cast %119 : vector<1x32x32xf32> to vector<32x32xf32>
    %c0_102 = arith.constant 0 : index
    %c36_103 = arith.constant 36 : index
    %121 = vector.load %arg7[%c0_102, %c36_103] : memref<32x326xf32, #tpu.memory_space<vmem>>, vector<32x288xf32>
    %cst_104 = arith.constant dense<0.000000e+00> : vector<32x288xf32>
    %122 = tpu.matmul %120, %121, %cst_104 {dimension_numbers = #tpu.dot_dimension_numbers<[1], [0], [0], [1], [0, 0, 1, 1], [], []>} : vector<32x32xf32>, vector<32x288xf32>, vector<32x288xf32> -> vector<32x288xf32>
    %123 = arith.addf %118, %122 : vector<32x288xf32>
    %c7_105 = arith.constant 7 : index
    %c0_106 = arith.constant 0 : index
    %c0_107 = arith.constant 0 : index
    %124 = vector.load %arg4[%c7_105, %c0_106, %c0_107] : memref<9x32x32xf32, #tpu.memory_space<vmem>>, vector<1x32x32xf32>
    %125 = vector.shape_cast %124 : vector<1x32x32xf32> to vector<32x32xf32>
    %c0_108 = arith.constant 0 : index
    %c37_109 = arith.constant 37 : index
    %126 = vector.load %arg7[%c0_108, %c37_109] : memref<32x326xf32, #tpu.memory_space<vmem>>, vector<32x288xf32>
    %cst_110 = arith.constant dense<0.000000e+00> : vector<32x288xf32>
    %127 = tpu.matmul %125, %126, %cst_110 {dimension_numbers = #tpu.dot_dimension_numbers<[1], [0], [0], [1], [0, 0, 1, 1], [], []>} : vector<32x32xf32>, vector<32x288xf32>, vector<32x288xf32> -> vector<32x288xf32>
    %128 = arith.addf %123, %127 : vector<32x288xf32>
    %c8_111 = arith.constant 8 : index
    %c0_112 = arith.constant 0 : index
    %c0_113 = arith.constant 0 : index
    %129 = vector.load %arg4[%c8_111, %c0_112, %c0_113] : memref<9x32x32xf32, #tpu.memory_space<vmem>>, vector<1x32x32xf32>
    %130 = vector.shape_cast %129 : vector<1x32x32xf32> to vector<32x32xf32>
    %c0_114 = arith.constant 0 : index
    %c38_115 = arith.constant 38 : index
    %131 = vector.load %arg7[%c0_114, %c38_115] : memref<32x326xf32, #tpu.memory_space<vmem>>, vector<32x288xf32>
    %cst_116 = arith.constant dense<0.000000e+00> : vector<32x288xf32>
    %132 = tpu.matmul %130, %131, %cst_116 {dimension_numbers = #tpu.dot_dimension_numbers<[1], [0], [0], [1], [0, 0, 1, 1], [], []>} : vector<32x32xf32>, vector<32x288xf32>, vector<32x288xf32> -> vector<32x288xf32>
    %133 = arith.addf %128, %132 : vector<32x288xf32>
    %c0_117 = arith.constant 0 : index
    %c0_118 = arith.constant 0 : index
    %134 = vector.load %arg5[%c0_117, %c0_118] : memref<32x1xf32, #tpu.memory_space<vmem>>, vector<32x1xf32>
    %135 = vector.broadcast %134 : vector<32x1xf32> to vector<32x288xf32>
    %136 = arith.addf %133, %135 : vector<32x288xf32>
    %cst_119 = arith.constant 0.000000e+00 : f32
    %137 = vector.broadcast %cst_119 : f32 to vector<32x288xf32>
    %138 = arith.maximumf %136, %137 : vector<32x288xf32>
    %139 = vector.extract_strided_slice %138 {offsets = [0, 0], sizes = [32, 16], strides = [1, 1]} : vector<32x288xf32> to vector<32x16xf32>
    %c0_120 = arith.constant 0 : index
    %c0_121 = arith.constant 0 : index
    %c0_122 = arith.constant 0 : index
    %140 = vector.load %arg6[%c0_120, %c0_121, %c0_122] : memref<1x32x256xf32, #tpu.memory_space<vmem>>, vector<1x32x16xf32>
    %141 = vector.shape_cast %140 : vector<1x32x16xf32> to vector<32x16xf32>
    %142 = vector.shape_cast %139 : vector<32x16xf32> to vector<1x32x16xf32>
    tpu.vector_store %arg6[%c0_120, %c0_121, %c0_122], %142 {strides = array<i32>} : memref<1x32x256xf32, #tpu.memory_space<vmem>>, vector<1x32x16xf32>,
    %143 = vector.extract_strided_slice %138 {offsets = [0, 18], sizes = [32, 16], strides = [1, 1]} : vector<32x288xf32> to vector<32x16xf32>
    %c0_123 = arith.constant 0 : index
    %c0_124 = arith.constant 0 : index
    %c16 = arith.constant 16 : index
    %144 = vector.load %arg6[%c0_123, %c0_124, %c16] : memref<1x32x256xf32, #tpu.memory_space<vmem>>, vector<1x32x16xf32>
    %145 = vector.shape_cast %144 : vector<1x32x16xf32> to vector<32x16xf32>
    %146 = vector.shape_cast %143 : vector<32x16xf32> to vector<1x32x16xf32>
    tpu.vector_store %arg6[%c0_123, %c0_124, %c16], %146 {strides = array<i32>} : memref<1x32x256xf32, #tpu.memory_space<vmem>>, vector<1x32x16xf32>,
    %147 = vector.extract_strided_slice %138 {offsets = [0, 36], sizes = [32, 16], strides = [1, 1]} : vector<32x288xf32> to vector<32x16xf32>
    %c0_125 = arith.constant 0 : index
    %c0_126 = arith.constant 0 : index
    %c32 = arith.constant 32 : index
    %148 = vector.load %arg6[%c0_125, %c0_126, %c32] : memref<1x32x256xf32, #tpu.memory_space<vmem>>, vector<1x32x16xf32>
    %149 = vector.shape_cast %148 : vector<1x32x16xf32> to vector<32x16xf32>
    %150 = vector.shape_cast %147 : vector<32x16xf32> to vector<1x32x16xf32>
    tpu.vector_store %arg6[%c0_125, %c0_126, %c32], %150 {strides = array<i32>} : memref<1x32x256xf32, #tpu.memory_space<vmem>>, vector<1x32x16xf32>,
    %151 = vector.extract_strided_slice %138 {offsets = [0, 54], sizes = [32, 16], strides = [1, 1]} : vector<32x288xf32> to vector<32x16xf32>
    %c0_127 = arith.constant 0 : index
    %c0_128 = arith.constant 0 : index
    %c48 = arith.constant 48 : index
    %152 = vector.load %arg6[%c0_127, %c0_128, %c48] : memref<1x32x256xf32, #tpu.memory_space<vmem>>, vector<1x32x16xf32>
    %153 = vector.shape_cast %152 : vector<1x32x16xf32> to vector<32x16xf32>
    %154 = vector.shape_cast %151 : vector<32x16xf32> to vector<1x32x16xf32>
    tpu.vector_store %arg6[%c0_127, %c0_128, %c48], %154 {strides = array<i32>} : memref<1x32x256xf32, #tpu.memory_space<vmem>>, vector<1x32x16xf32>,
    %155 = vector.extract_strided_slice %138 {offsets = [0, 72], sizes = [32, 16], strides = [1, 1]} : vector<32x288xf32> to vector<32x16xf32>
    %c0_129 = arith.constant 0 : index
    %c0_130 = arith.constant 0 : index
    %c64 = arith.constant 64 : index
    %156 = vector.load %arg6[%c0_129, %c0_130, %c64] : memref<1x32x256xf32, #tpu.memory_space<vmem>>, vector<1x32x16xf32>
    %157 = vector.shape_cast %156 : vector<1x32x16xf32> to vector<32x16xf32>
    %158 = vector.shape_cast %155 : vector<32x16xf32> to vector<1x32x16xf32>
    tpu.vector_store %arg6[%c0_129, %c0_130, %c64], %158 {strides = array<i32>} : memref<1x32x256xf32, #tpu.memory_space<vmem>>, vector<1x32x16xf32>,
    %159 = vector.extract_strided_slice %138 {offsets = [0, 90], sizes = [32, 16], strides = [1, 1]} : vector<32x288xf32> to vector<32x16xf32>
    %c0_131 = arith.constant 0 : index
    %c0_132 = arith.constant 0 : index
    %c80 = arith.constant 80 : index
    %160 = vector.load %arg6[%c0_131, %c0_132, %c80] : memref<1x32x256xf32, #tpu.memory_space<vmem>>, vector<1x32x16xf32>
    %161 = vector.shape_cast %160 : vector<1x32x16xf32> to vector<32x16xf32>
    %162 = vector.shape_cast %159 : vector<32x16xf32> to vector<1x32x16xf32>
    tpu.vector_store %arg6[%c0_131, %c0_132, %c80], %162 {strides = array<i32>} : memref<1x32x256xf32, #tpu.memory_space<vmem>>, vector<1x32x16xf32>,
    %163 = vector.extract_strided_slice %138 {offsets = [0, 108], sizes = [32, 16], strides = [1, 1]} : vector<32x288xf32> to vector<32x16xf32>
    %c0_133 = arith.constant 0 : index
    %c0_134 = arith.constant 0 : index
    %c96 = arith.constant 96 : index
    %164 = vector.load %arg6[%c0_133, %c0_134, %c96] : memref<1x32x256xf32, #tpu.memory_space<vmem>>, vector<1x32x16xf32>
    %165 = vector.shape_cast %164 : vector<1x32x16xf32> to vector<32x16xf32>
    %166 = vector.shape_cast %163 : vector<32x16xf32> to vector<1x32x16xf32>
    tpu.vector_store %arg6[%c0_133, %c0_134, %c96], %166 {strides = array<i32>} : memref<1x32x256xf32, #tpu.memory_space<vmem>>, vector<1x32x16xf32>,
    %167 = vector.extract_strided_slice %138 {offsets = [0, 126], sizes = [32, 16], strides = [1, 1]} : vector<32x288xf32> to vector<32x16xf32>
    %c0_135 = arith.constant 0 : index
    %c0_136 = arith.constant 0 : index
    %c112 = arith.constant 112 : index
    %168 = vector.load %arg6[%c0_135, %c0_136, %c112] : memref<1x32x256xf32, #tpu.memory_space<vmem>>, vector<1x32x16xf32>
    %169 = vector.shape_cast %168 : vector<1x32x16xf32> to vector<32x16xf32>
    %170 = vector.shape_cast %167 : vector<32x16xf32> to vector<1x32x16xf32>
    tpu.vector_store %arg6[%c0_135, %c0_136, %c112], %170 {strides = array<i32>} : memref<1x32x256xf32, #tpu.memory_space<vmem>>, vector<1x32x16xf32>,
    %171 = vector.extract_strided_slice %138 {offsets = [0, 144], sizes = [32, 16], strides = [1, 1]} : vector<32x288xf32> to vector<32x16xf32>
    %c0_137 = arith.constant 0 : index
    %c0_138 = arith.constant 0 : index
    %c128 = arith.constant 128 : index
    %172 = vector.load %arg6[%c0_137, %c0_138, %c128] : memref<1x32x256xf32, #tpu.memory_space<vmem>>, vector<1x32x16xf32>
    %173 = vector.shape_cast %172 : vector<1x32x16xf32> to vector<32x16xf32>
    %174 = vector.shape_cast %171 : vector<32x16xf32> to vector<1x32x16xf32>
    tpu.vector_store %arg6[%c0_137, %c0_138, %c128], %174 {strides = array<i32>} : memref<1x32x256xf32, #tpu.memory_space<vmem>>, vector<1x32x16xf32>,
    %175 = vector.extract_strided_slice %138 {offsets = [0, 162], sizes = [32, 16], strides = [1, 1]} : vector<32x288xf32> to vector<32x16xf32>
    %c0_139 = arith.constant 0 : index
    %c0_140 = arith.constant 0 : index
    %c144 = arith.constant 144 : index
    %176 = vector.load %arg6[%c0_139, %c0_140, %c144] : memref<1x32x256xf32, #tpu.memory_space<vmem>>, vector<1x32x16xf32>
    %177 = vector.shape_cast %176 : vector<1x32x16xf32> to vector<32x16xf32>
    %178 = vector.shape_cast %175 : vector<32x16xf32> to vector<1x32x16xf32>
    tpu.vector_store %arg6[%c0_139, %c0_140, %c144], %178 {strides = array<i32>} : memref<1x32x256xf32, #tpu.memory_space<vmem>>, vector<1x32x16xf32>,
    %179 = vector.extract_strided_slice %138 {offsets = [0, 180], sizes = [32, 16], strides = [1, 1]} : vector<32x288xf32> to vector<32x16xf32>
    %c0_141 = arith.constant 0 : index
    %c0_142 = arith.constant 0 : index
    %c160 = arith.constant 160 : index
    %180 = vector.load %arg6[%c0_141, %c0_142, %c160] : memref<1x32x256xf32, #tpu.memory_space<vmem>>, vector<1x32x16xf32>
    %181 = vector.shape_cast %180 : vector<1x32x16xf32> to vector<32x16xf32>
    %182 = vector.shape_cast %179 : vector<32x16xf32> to vector<1x32x16xf32>
    tpu.vector_store %arg6[%c0_141, %c0_142, %c160], %182 {strides = array<i32>} : memref<1x32x256xf32, #tpu.memory_space<vmem>>, vector<1x32x16xf32>,
    %183 = vector.extract_strided_slice %138 {offsets = [0, 198], sizes = [32, 16], strides = [1, 1]} : vector<32x288xf32> to vector<32x16xf32>
    %c0_143 = arith.constant 0 : index
    %c0_144 = arith.constant 0 : index
    %c176 = arith.constant 176 : index
    %184 = vector.load %arg6[%c0_143, %c0_144, %c176] : memref<1x32x256xf32, #tpu.memory_space<vmem>>, vector<1x32x16xf32>
    %185 = vector.shape_cast %184 : vector<1x32x16xf32> to vector<32x16xf32>
    %186 = vector.shape_cast %183 : vector<32x16xf32> to vector<1x32x16xf32>
    tpu.vector_store %arg6[%c0_143, %c0_144, %c176], %186 {strides = array<i32>} : memref<1x32x256xf32, #tpu.memory_space<vmem>>, vector<1x32x16xf32>,
    %187 = vector.extract_strided_slice %138 {offsets = [0, 216], sizes = [32, 16], strides = [1, 1]} : vector<32x288xf32> to vector<32x16xf32>
    %c0_145 = arith.constant 0 : index
    %c0_146 = arith.constant 0 : index
    %c192 = arith.constant 192 : index
    %188 = vector.load %arg6[%c0_145, %c0_146, %c192] : memref<1x32x256xf32, #tpu.memory_space<vmem>>, vector<1x32x16xf32>
    %189 = vector.shape_cast %188 : vector<1x32x16xf32> to vector<32x16xf32>
    %190 = vector.shape_cast %187 : vector<32x16xf32> to vector<1x32x16xf32>
    tpu.vector_store %arg6[%c0_145, %c0_146, %c192], %190 {strides = array<i32>} : memref<1x32x256xf32, #tpu.memory_space<vmem>>, vector<1x32x16xf32>,
    %191 = vector.extract_strided_slice %138 {offsets = [0, 234], sizes = [32, 16], strides = [1, 1]} : vector<32x288xf32> to vector<32x16xf32>
    %c0_147 = arith.constant 0 : index
    %c0_148 = arith.constant 0 : index
    %c208 = arith.constant 208 : index
    %192 = vector.load %arg6[%c0_147, %c0_148, %c208] : memref<1x32x256xf32, #tpu.memory_space<vmem>>, vector<1x32x16xf32>
    %193 = vector.shape_cast %192 : vector<1x32x16xf32> to vector<32x16xf32>
    %194 = vector.shape_cast %191 : vector<32x16xf32> to vector<1x32x16xf32>
    tpu.vector_store %arg6[%c0_147, %c0_148, %c208], %194 {strides = array<i32>} : memref<1x32x256xf32, #tpu.memory_space<vmem>>, vector<1x32x16xf32>,
    %195 = vector.extract_strided_slice %138 {offsets = [0, 252], sizes = [32, 16], strides = [1, 1]} : vector<32x288xf32> to vector<32x16xf32>
    %c0_149 = arith.constant 0 : index
    %c0_150 = arith.constant 0 : index
    %c224 = arith.constant 224 : index
    %196 = vector.load %arg6[%c0_149, %c0_150, %c224] : memref<1x32x256xf32, #tpu.memory_space<vmem>>, vector<1x32x16xf32>
    %197 = vector.shape_cast %196 : vector<1x32x16xf32> to vector<32x16xf32>
    %198 = vector.shape_cast %195 : vector<32x16xf32> to vector<1x32x16xf32>
    tpu.vector_store %arg6[%c0_149, %c0_150, %c224], %198 {strides = array<i32>} : memref<1x32x256xf32, #tpu.memory_space<vmem>>, vector<1x32x16xf32>,
    %199 = vector.extract_strided_slice %138 {offsets = [0, 270], sizes = [32, 16], strides = [1, 1]} : vector<32x288xf32> to vector<32x16xf32>
    %c0_151 = arith.constant 0 : index
    %c0_152 = arith.constant 0 : index
    %c240 = arith.constant 240 : index
    %200 = vector.load %arg6[%c0_151, %c0_152, %c240] : memref<1x32x256xf32, #tpu.memory_space<vmem>>, vector<1x32x16xf32>
    %201 = vector.shape_cast %200 : vector<1x32x16xf32> to vector<32x16xf32>
    %202 = vector.shape_cast %199 : vector<32x16xf32> to vector<1x32x16xf32>
    tpu.vector_store %arg6[%c0_151, %c0_152, %c240], %202 {strides = array<i32>} : memref<1x32x256xf32, #tpu.memory_space<vmem>>, vector<1x32x16xf32>,
    return
  }
  func.func @transform_0(%arg0: i32) -> (i32, i32, i32) {
    %c0_i32 = arith.constant 0 : i32
    %c0_i32_0 = arith.constant 0 : i32
    %c0_i32_1 = arith.constant 0 : i32
    return %arg0, %c0_i32, %c0_i32_0 : i32, i32, i32
  }
  func.func @transform_1(%arg0: i32) -> (i32, i32, i32) {
    %c0_i32 = arith.constant 0 : i32
    %c0_i32_0 = arith.constant 0 : i32
    %c0_i32_1 = arith.constant 0 : i32
    %c0_i32_2 = arith.constant 0 : i32
    return %c0_i32, %c0_i32_0, %c0_i32_1 : i32, i32, i32
  }
  func.func @transform_2(%arg0: i32) -> (i32, i32) {
    %c0_i32 = arith.constant 0 : i32
    %c0_i32_0 = arith.constant 0 : i32
    %c0_i32_1 = arith.constant 0 : i32
    return %c0_i32, %c0_i32_0 : i32, i32
  }
  func.func @transform_3(%arg0: i32) -> (i32, i32, i32) {
    %c0_i32 = arith.constant 0 : i32
    %c0_i32_0 = arith.constant 0 : i32
    %c0_i32_1 = arith.constant 0 : i32
    %c0_i32_2 = arith.constant 0 : i32
    return %c0_i32, %c0_i32_0, %c0_i32_1 : i32, i32, i32
  }
  func.func @transform_4(%arg0: i32) -> (i32, i32) {
    %c0_i32 = arith.constant 0 : i32
    %c0_i32_0 = arith.constant 0 : i32
    %c0_i32_1 = arith.constant 0 : i32
    return %c0_i32, %c0_i32_0 : i32, i32
  }
  func.func @transform_5(%arg0: i32) -> (i32, i32, i32) {
    %c0_i32 = arith.constant 0 : i32
    %c0_i32_0 = arith.constant 0 : i32
    %c0_i32_1 = arith.constant 0 : i32
    return %arg0, %c0_i32, %c0_i32_0 : i32, i32, i32
  }
}

</mosaic_0001>

<llo_original>
// kernel: input_conv_block_forward.1
$region0: #{input_conv_block_forward.1}
  #allocation0 [shape = 'u32[]', space=smem, size = 0x4, offset = 0x4, fixed_abs, tag = 'smem constant byte address 0x4 - core index']
  #allocation1 [shape = 'u32[144,128]{1,0:T(1,128)}', space=vmem, size = 0x12000, scoped, tag = 'internal scratch']
  #allocation2 [shape = 'f32[32,326]{1,0:T(8,128)}', space=vmem, size = 0xc000, scoped, tag = 'scratch operand']
  %s0 = inlined_call_operand.vmem [shape: f32[2,4,326], index: 0, kind: input, shape index: {}]
  %s1 = inlined_call_operand.vmem [shape: f32[9,32,4], index: 1, kind: input, shape index: {}]
  %s2 = inlined_call_operand.vmem [shape: f32[32,1], index: 2, kind: input, shape index: {}]
  %s3 = inlined_call_operand.vmem [shape: f32[9,32,32], index: 3, kind: input, shape index: {}]
  %s4 = inlined_call_operand.vmem [shape: f32[32,1], index: 4, kind: input, shape index: {}]
  %s5 = inlined_call_operand.vmem [shape: f32[2,32,256], index: 5, kind: output, shape index: {}]
  %s6 = sld [smem:[#allocation0]]
  $region53: #{input_conv_block_forward.1} parent=0
    _
  %s8 = ssub.s32 1, %s6
  %s9 = scalar_select 0, %s8, %s6
  loop: start=0, step=1, limit=4
  $region2: #{input_conv_block_forward.1} parent=0 // loop_pre_header
    _
  $region3: #{input_conv_block_forward.1} parent=0 // loop_header
    %s11 = sphi 0, %s15
    %p12 = scmp.ge.s32.totalorder %s11, 4
    %s21 = sphi 0, %s23
    %s24 = sphi 0, %s21
    %s25 = sphi 0, %s24
    %s41 = sphi 0, %s25
    %s45 = sphi 0, %s45
    %s47 = sphi 0, %s45
    %s48 = sphi 0, %s47
    %s62 = sphi 0, %s48
    %s66 = sphi 0, %s66
    %s68 = sphi 0, %s66
    %s69 = sphi 0, %s68
    %s83 = sphi 0, %s69
    %s87 = sphi 0, %s87
    %s89 = sphi 0, %s87
    %s90 = sphi 0, %s89
    %s104 = sphi 0, %s90
    %s108 = sphi 0, %s108
    %s110 = sphi 0, %s108
    %s111 = sphi 0, %s110
    %s125 = sphi 0, %s111
    %s131 = sphi 0, %s133
    %s134 = sphi 0, %s131
    %s135 = sphi 0, %s134
    %s151 = sphi 0, %s135
  $region4: #{input_conv_block_forward.1} parent=0 // loop_header_branch
    %14 = sbr.rel (%p12) target = $region8
  $region5: #{input_conv_block_forward.1} parent=0 // loop_body
    %s16 = ssub.s32 %s11, 1
    %s17 = ssub.s32 %s11, 2
    %s18 = sadd.s32 %s11, 1
    %s19 = ssub.s32 %s11, %s18
    %p20 = scmp.eq.s32.totalorder %s19, 0
    %s22 = sadd.s32 %s21, 1
    %s23 = scalar_select %p20, %s21, %s22
    %p26 = pneg %p20
    %p27 = scmp.eq.s32.totalorder %s11, 1
    %p28 = por %p26, %p27
    %p29 = scmp.ne.s32.totalorder %s21, %s24
    %p30 = scmp.eq.s32.totalorder %s11, 0
    %p31 = por %p29, %p30
    %p32 = scmp.ne.s32.totalorder %s21, %s24
    %p33 = scmp.eq.s32.totalorder %s16, 1
    %p34 = por %p32, %p33
    %p35 = scmp.ne.s32.totalorder %s24, %s25
    %p36 = scmp.eq.s32.totalorder %s16, 0
    %p37 = por %p35, %p36
    %p38 = scmp.ne.s32.totalorder %s24, %s25
    %p39 = scmp.eq.s32.totalorder %s17, 1
    %p40 = por %p38, %p39
    %p42 = scmp.ne.s32.totalorder %s25, %s41
    %p43 = scmp.eq.s32.totalorder %s17, 0
    %p44 = por %p42, %p43
    %s46 = sadd.s32 %s45, 1
    %p49 = scmp.eq.s32.totalorder %s11, 1
    %p50 = scmp.ne.s32.totalorder %s45, %s47
    %p51 = scmp.eq.s32.totalorder %s11, 0
    %p52 = por %p50, %p51
    %p53 = scmp.ne.s32.totalorder %s45, %s47
    %p54 = scmp.eq.s32.totalorder %s16, 1
    %p55 = por %p53, %p54
    %p56 = scmp.ne.s32.totalorder %s47, %s48
    %p57 = scmp.eq.s32.totalorder %s16, 0
    %p58 = por %p56, %p57
    %p59 = scmp.ne.s32.totalorder %s47, %s48
    %p60 = scmp.eq.s32.totalorder %s17, 1
    %p61 = por %p59, %p60
    %p63 = scmp.ne.s32.totalorder %s48, %s62
    %p64 = scmp.eq.s32.totalorder %s17, 0
    %p65 = por %p63, %p64
    %s67 = sadd.s32 %s66, 1
    %p70 = scmp.eq.s32.totalorder %s11, 1
    %p71 = scmp.ne.s32.totalorder %s66, %s68
    %p72 = scmp.eq.s32.totalorder %s11, 0
    %p73 = por %p71, %p72
    %p74 = scmp.ne.s32.totalorder %s66, %s68
    %p75 = scmp.eq.s32.totalorder %s16, 1
    %p76 = por %p74, %p75
    %p77 = scmp.ne.s32.totalorder %s68, %s69
    %p78 = scmp.eq.s32.totalorder %s16, 0
    %p79 = por %p77, %p78
    %p80 = scmp.ne.s32.totalorder %s68, %s69
    %p81 = scmp.eq.s32.totalorder %s17, 1
    %p82 = por %p80, %p81
    %p84 = scmp.ne.s32.totalorder %s69, %s83
    %p85 = scmp.eq.s32.totalorder %s17, 0
    %p86 = por %p84, %p85
    %s88 = sadd.s32 %s87, 1
    %p91 = scmp.eq.s32.totalorder %s11, 1
    %p92 = scmp.ne.s32.totalorder %s87, %s89
    %p93 = scmp.eq.s32.totalorder %s11, 0
    %p94 = por %p92, %p93
    %p95 = scmp.ne.s32.totalorder %s87, %s89
    %p96 = scmp.eq.s32.totalorder %s16, 1
    %p97 = por %p95, %p96
    %p98 = scmp.ne.s32.totalorder %s89, %s90
    %p99 = scmp.eq.s32.totalorder %s16, 0
    %p100 = por %p98, %p99
    %p101 = scmp.ne.s32.totalorder %s89, %s90
    %p102 = scmp.eq.s32.totalorder %s17, 1
    %p103 = por %p101, %p102
    %p105 = scmp.ne.s32.totalorder %s90, %s104
    %p106 = scmp.eq.s32.totalorder %s17, 0
    %p107 = por %p105, %p106
    %s109 = sadd.s32 %s108, 1
    %p112 = scmp.eq.s32.totalorder %s11, 1
    %p113 = scmp.ne.s32.totalorder %s108, %s110
    %p114 = scmp.eq.s32.totalorder %s11, 0
    %p115 = por %p113, %p114
    %p116 = scmp.ne.s32.totalorder %s108, %s110
    %p117 = scmp.eq.s32.totalorder %s16, 1
    %p118 = por %p116, %p117
    %p119 = scmp.ne.s32.totalorder %s110, %s111
    %p120 = scmp.eq.s32.totalorder %s16, 0
    %p121 = por %p119, %p120
    %p122 = scmp.ne.s32.totalorder %s110, %s111
    %p123 = scmp.eq.s32.totalorder %s17, 1
    %p124 = por %p122, %p123
    %p126 = scmp.ne.s32.totalorder %s111, %s125
    %p127 = scmp.eq.s32.totalorder %s17, 0
    %p128 = por %p126, %p127
    %s129 = ssub.s32 %s11, %s18
    %p130 = scmp.eq.s32.totalorder %s129, 0
    %s132 = sadd.s32 %s131, 1
    %s133 = scalar_select %p130, %s131, %s132
    %p136 = pneg %p130
    %p137 = scmp.eq.s32.totalorder %s11, 1
    %p138 = por %p136, %p137
    %p139 = scmp.ne.s32.totalorder %s131, %s134
    %p140 = scmp.eq.s32.totalorder %s11, 0
    %p141 = por %p139, %p140
    %p142 = scmp.ne.s32.totalorder %s131, %s134
    %p143 = scmp.eq.s32.totalorder %s16, 1
    %p144 = por %p142, %p143
    %p145 = scmp.ne.s32.totalorder %s134, %s135
    %p146 = scmp.eq.s32.totalorder %s16, 0
    %p147 = por %p145, %p146
    %p148 = scmp.ne.s32.totalorder %s134, %s135
    %p149 = scmp.eq.s32.totalorder %s17, 1
    %p150 = por %p148, %p149
    %p152 = scmp.ne.s32.totalorder %s135, %s151
    %p153 = scmp.eq.s32.totalorder %s17, 0
    %p154 = por %p152, %p153
    %p155 = scmp.le.s32.totalorder 1, %s11
    %p156 = scmp.lt.s32.totalorder %s11, 3
    %p157 = pnand %p155, %p156
    %p158 = pneg %p157
    // Predicated region
    $region9: #{input_conv_block_forward.1} parent=5 // pred_check
      _
    $region10: #{input_conv_block_forward.1} parent=5 // pred_check_branch
      %160 = sbr.rel (%p157) target = $region12
    $region11: #{input_conv_block_forward.1} parent=5 // pred_region
      %s161 = ssub.s32 %s11, 1
      // Predicated region
      $region13: #{input_conv_block_forward.1} parent=11 // pred_check
        %p162 = pneg %p58
      $region14: #{input_conv_block_forward.1} parent=11 // pred_check_branch
        %164 = sbr.rel (%p162) target = $region16
      $region15: #{input_conv_block_forward.1} parent=11 // pred_region
        _
      $region16: #{input_conv_block_forward.1} parent=11 // pred_fallthru
        _
      // Predicated region
      $region17: #{input_conv_block_forward.1} parent=11 // pred_check
        %p165 = pneg %p79
      $region18: #{input_conv_block_forward.1} parent=11 // pred_check_branch
        %167 = sbr.rel (%p165) target = $region20
      $region19: #{input_conv_block_forward.1} parent=11 // pred_region
        _
      $region20: #{input_conv_block_forward.1} parent=11 // pred_fallthru
        _
      // Predicated region
      $region21: #{input_conv_block_forward.1} parent=11 // pred_check
        %p168 = pneg %p100
      $region22: #{input_conv_block_forward.1} parent=11 // pred_check_branch
        %170 = sbr.rel (%p168) target = $region24
      $region23: #{input_conv_block_forward.1} parent=11 // pred_region
        _
      $region24: #{input_conv_block_forward.1} parent=11 // pred_fallthru
        _
      // Predicated region
      $region25: #{input_conv_block_forward.1} parent=11 // pred_check
        %p171 = pneg %p121
      $region26: #{input_conv_block_forward.1} parent=11 // pred_check_branch
        %173 = sbr.rel (%p171) target = $region28
      $region27: #{input_conv_block_forward.1} parent=11 // pred_region
        _
      $region28: #{input_conv_block_forward.1} parent=11 // pred_fallthru
        _
    $region12: #{input_conv_block_forward.1} parent=5 // pred_fallthru
      _
    %p174 = scmp.lt.s32.totalorder %s11, 2
    // Predicated region
    $region29: #{input_conv_block_forward.1} parent=5 // pred_check
      %p175 = pneg %p174
    $region30: #{input_conv_block_forward.1} parent=5 // pred_check_branch
      %177 = sbr.rel (%p175) target = $region32
    $region31: #{input_conv_block_forward.1} parent=5 // pred_region
      // Predicated region
      $region33: #{input_conv_block_forward.1} parent=31 // pred_check
        %p178 = pneg %p31
      $region34: #{input_conv_block_forward.1} parent=31 // pred_check_branch
        %180 = sbr.rel (%p178) target = $region36
      $region35: #{input_conv_block_forward.1} parent=31 // pred_region
        %p181 = scmp.lt.s32.totalorder %s11, 1
        %s182 = scalar_select %p181, %s11, 1
        %s183 = smul.addr %s182, 3
        %s184 = smul.addr %s183, 4
        %s185 = scalar_lea.vmem %s0, %s184
      $region36: #{input_conv_block_forward.1} parent=31 // pred_fallthru
        _
    $region32: #{input_conv_block_forward.1} parent=5 // pred_fallthru
      _
    %p186 = scmp.le.s32.totalorder 1, %s11
    %p187 = scmp.lt.s32.totalorder %s11, 3
    %p188 = pnand %p186, %p187
    %p189 = pneg %p188
    // Predicated region
    $region37: #{input_conv_block_forward.1} parent=5 // pred_check
      _
    $region38: #{input_conv_block_forward.1} parent=5 // pred_check_branch
      %191 = sbr.rel (%p188) target = $region40
    $region39: #{input_conv_block_forward.1} parent=5 // pred_region
      %s192 = ssub.s32 %s11, 1
      %p193 = scmp.lt.s32.totalorder %s16, 1
      %s194 = scalar_select %p193, %s16, 1
      %s195 = smul.addr %s194, 3
      %s196 = smul.addr %s195, 4
      %s197 = scalar_lea.vmem %s0, %s196
      %p198 = pneg %p37
      %p199 = pneg %p34
      %p200 = pneg %p58
      %p201 = pneg %p55
      %p202 = pneg %p79
      %p203 = pneg %p76
      %p204 = pneg %p100
      %p205 = pneg %p97
      %p206 = pneg %p121
      %p207 = pneg %p118
      %p208 = pneg %p147
      %p209 = pneg %p144
      %p210 = scmp.lt.s32.totalorder %s16, 1
      %s211 = scalar_select %p210, %s16, 1
      %s212 = smul.addr %s211, 8
      %s213 = smul.addr %s212, 8
      %s214 = scalar_lea.vmem %s5, %s213
      %p215 = scmp.lt.s32.totalorder %s16, 1
      %s216 = scalar_select %p215, %s16, 1
      %s217 = smul.addr %s216, 3
      %s218 = smul.addr %s217, 4
      %s219 = scalar_lea.vmem %s0, %s218
      %p220 = scmp.lt.s32.totalorder %s16, 1
      %s221 = scalar_select %p220, %s16, 1
      %s222 = smul.addr %s221, 8
      %s223 = smul.addr %s222, 8
      %s224 = scalar_lea.vmem %s5, %s223
      %v225 = vld [vmem:[%s1] sm:$0xff]
      %v226 = vld [vmem:[%s1 + $0x8] sm:$0xff]
      %v227 = vld [vmem:[%s1 + $0x10] sm:$0xff]
      %v228 = vld [vmem:[%s1 + $0x18] sm:$0xff]
      %v229 = vld [vmem:[%s219] sm:$0xff]
      %v230 = vld [vmem:[%s219 + $0x8] sm:$0xf]
      %s231 = scalar_lea.vmem %s1, 32
      %v232 = vld [vmem:[%s231] sm:$0xff]
      %v233 = vld [vmem:[%s231 + $0x8] sm:$0xff]
      %v234 = vld [vmem:[%s231 + $0x10] sm:$0xff]
      %v235 = vld [vmem:[%s231 + $0x18] sm:$0xff]
      %v238 = vcombine.high %v229, %v229
      %239 = vrot.lane.b32.xlu0 %v229, 127
      %v240 = vpop.permute.xlu0 %239
      %241 = vrot.lane.b32.xlu0 %v238, 127
      %v242 = vpop.permute.xlu0 %241
      %243 = vrot.lane.b32.xlu0 %v230, 127
      %v244 = vpop.permute.xlu0 %243
      %vm245 = vcmask 1039360
      %v246 = vsel %vm245, %v240, %v242
      %v247 = vsel %vm245, %v242, %v244
      %vm248 = vcmask 31744
      %v250 = vsel %vm248, %v232, 0
      %v253 = vsel %vm248, %v233, 0
      %v256 = vsel %vm248, %v234, 0
      %v259 = vsel %vm248, %v235, 0
      %vm261 = vcmask 1043456
      %v262 = vsel %vm261, %v246, 0
      %v264 = vsel %vm261, %v247, 0
      %v266 = vsel %vm261, %v244, 0
      %268 = vmatprep.subr.mxu0 %v264
      %269 = vmatpush1.msra.mxu0 %v262
      %270 = vmatprep.subr.mxu0 0.0
      %271 = vmatpush1.msra.mxu0 0.0
      %272 = vmatprep.subr.mxu0 0.0
      %273 = vmatpush1.msra.mxu0 0.0
      %274 = vmatprep.subr.mxu0 0.0
      %275 = vmatpush1.msra.mxu0 0.0
      %276 = vmatprep.subr.mxu0 0.0
      %277 = vmatpush1.msra.mxu0 0.0
      %278 = vmatprep.subr.mxu0 0.0
      %279 = vmatpush1.msra.mxu0 0.0
      %280 = vmatprep.subr.mxu0 0.0
      %281 = vmatpush1.msra.mxu0 0.0
      %282 = vmatprep.subr.mxu0 0.0
      %283 = vmatpush1.msra.mxu0 0.0
      %284 = vmatprep.subr.mxu0 0.0
      %285 = vmatpush1.msra.mxu0 0.0
      %286 = vmatprep.subr.mxu0 0.0
      %287 = vmatpush1.msra.mxu0 0.0
      %288 = vmatprep.subr.mxu0 0.0
      %289 = vmatpush1.msra.mxu0 0.0
      %290 = vmatprep.subr.mxu0 0.0
      %291 = vmatpush1.msra.mxu0 0.0
      %292 = vmatprep.subr.mxu0 0.0
      %293 = vmatpush1.msra.mxu0 0.0
      %294 = vmatprep.subr.mxu0 0.0
      %295 = vmatpush1.msra.mxu0 0.0
      %296 = vmatprep.subr.mxu0 0.0
      %297 = vmatpush1.msra.mxu0 0.0
      %298 = vmatprep.subr.mxu0 0.0
      %299 = vmatpush1.msra.mxu0 0.0
      %300 = vmatprep.subr.mxu0 0.0
      %301 = vmatpush1.msra.mxu0 0.0
      %302 = vmatprep.subr.mxu0 0.0
      %303 = vmatpush1.msra.mxu0 0.0
      %304 = vmatprep.subr.mxu0 0.0
      %305 = vmatpush1.msra.mxu0 0.0
      %306 = vmatprep.subr.mxu0 0.0
      %307 = vmatpush1.msra.mxu0 0.0
      %308 = vmatprep.subr.mxu0 0.0
      %309 = vmatpush1.msra.mxu0 0.0
      %310 = vmatprep.subr.mxu0 0.0
      %311 = vmatpush1.msra.mxu0 0.0
      %312 = vmatprep.subr.mxu0 0.0
      %313 = vmatpush1.msra.mxu0 0.0
      %314 = vmatprep.subr.mxu0 0.0
      %315 = vmatpush1.msra.mxu0 0.0
      %316 = vmatprep.subr.mxu0 0.0
      %317 = vmatpush1.msra.mxu0 0.0
      %318 = vmatprep.subr.mxu0 0.0
      %319 = vmatpush1.msra.mxu0 0.0
      %320 = vmatprep.subr.mxu0 0.0
      %321 = vmatpush1.msra.mxu0 0.0
      %322 = vmatprep.subr.mxu0 0.0
      %323 = vmatpush1.msra.mxu0 0.0
      %324 = vmatprep.subr.mxu0 0.0
      %325 = vmatpush1.msra.mxu0 0.0
      %326 = vmatprep.subr.mxu0 0.0
      %327 = vmatpush1.msra.mxu0 0.0
      %328 = vmatprep.subr.mxu0 0.0
      %329 = vmatpush1.msra.mxu0 0.0
      %330 = vmatprep.subr.mxu0 0.0
      %331 = vmatpush1.msra.mxu0 0.0
      %332 = vmatprep.mubr.f32.mxu0 0.0
      %333 = vmatmul.mubr.f32.gmra.mrb[0].mxu0 %v250
      %v334 = vpop.f32.mrb[0].mxu0
      %v335 = vadd.f32 0.0, %v334
      %v336 = vpop.f32.mrb[0].mxu0
      %v337 = vadd.f32 0.0, %v336
      %338 = vmatprep.mubr.f32.mxu0 0.0
      %339 = vmatmul.mubr.f32.gmra.mrb[0].mxu0 %v253
      %v340 = vpop.f32.mrb[0].mxu0
      %v341 = vadd.f32 0.0, %v340
      %v342 = vpop.f32.mrb[0].mxu0
      %v343 = vadd.f32 0.0, %v342
      %344 = vmatprep.mubr.f32.mxu0 0.0
      %345 = vmatmul.mubr.f32.gmra.mrb[0].mxu0 %v256
      %v346 = vpop.f32.mrb[0].mxu0
      %v347 = vadd.f32 0.0, %v346
      %v348 = vpop.f32.mrb[0].mxu0
      %v349 = vadd.f32 0.0, %v348
      %350 = vmatprep.mubr.f32.mxu0 0.0
      %351 = vmatmul.mubr.f32.gmra.mrb[0].mxu0 %v259
      %v352 = vpop.f32.mrb[0].mxu0
      %v353 = vadd.f32 0.0, %v352
      %v354 = vpop.f32.mrb[0].mxu0
      %v355 = vadd.f32 0.0, %v354
      %356 = vdwg.mxu0
      %357 = vmatprep.subr.mxu0 0.0
      %358 = vmatpush1.msra.mxu0 %v266
      %359 = vmatprep.subr.mxu0 0.0
      %360 = vmatpush1.msra.mxu0 0.0
      %361 = vmatprep.subr.mxu0 0.0
      %362 = vmatpush1.msra.mxu0 0.0
      %363 = vmatprep.subr.mxu0 0.0
      %364 = vmatpush1.msra.mxu0 0.0
      %365 = vmatprep.subr.mxu0 0.0
      %366 = vmatpush1.msra.mxu0 0.0
      %367 = vmatprep.subr.mxu0 0.0
      %368 = vmatpush1.msra.mxu0 0.0
      %369 = vmatprep.subr.mxu0 0.0
      %370 = vmatpush1.msra.mxu0 0.0
      %371 = vmatprep.subr.mxu0 0.0
      %372 = vmatpush1.msra.mxu0 0.0
      %373 = vmatprep.subr.mxu0 0.0
      %374 = vmatpush1.msra.mxu0 0.0
      %375 = vmatprep.subr.mxu0 0.0
      %376 = vmatpush1.msra.mxu0 0.0
      %377 = vmatprep.subr.mxu0 0.0
      %378 = vmatpush1.msra.mxu0 0.0
      %379 = vmatprep.subr.mxu0 0.0
      %380 = vmatpush1.msra.mxu0 0.0
      %381 = vmatprep.subr.mxu0 0.0
      %382 = vmatpush1.msra.mxu0 0.0
      %383 = vmatprep.subr.mxu0 0.0
      %384 = vmatpush1.msra.mxu0 0.0
      %385 = vmatprep.subr.mxu0 0.0
      %386 = vmatpush1.msra.mxu0 0.0
      %387 = vmatprep.subr.mxu0 0.0
      %388 = vmatpush1.msra.mxu0 0.0
      %389 = vmatprep.subr.mxu0 0.0
      %390 = vmatpush1.msra.mxu0 0.0
      %391 = vmatprep.subr.mxu0 0.0
      %392 = vmatpush1.msra.mxu0 0.0
      %393 = vmatprep.subr.mxu0 0.0
      %394 = vmatpush1.msra.mxu0 0.0
      %395 = vmatprep.subr.mxu0 0.0
      %396 = vmatpush1.msra.mxu0 0.0
      %397 = vmatprep.subr.mxu0 0.0
      %398 = vmatpush1.msra.mxu0 0.0
      %399 = vmatprep.subr.mxu0 0.0
      %400 = vmatpush1.msra.mxu0 0.0
      %401 = vmatprep.subr.mxu0 0.0
      %402 = vmatpush1.msra.mxu0 0.0
      %403 = vmatprep.subr.mxu0 0.0
      %404 = vmatpush1.msra.mxu0 0.0
      %405 = vmatprep.subr.mxu0 0.0
      %406 = vmatpush1.msra.mxu0 0.0
      %407 = vmatprep.subr.mxu0 0.0
      %408 = vmatpush1.msra.mxu0 0.0
      %409 = vmatprep.subr.mxu0 0.0
      %410 = vmatpush1.msra.mxu0 0.0
      %411 = vmatprep.subr.mxu0 0.0
      %412 = vmatpush1.msra.mxu0 0.0
      %413 = vmatprep.subr.mxu0 0.0
      %414 = vmatpush1.msra.mxu0 0.0
      %415 = vmatprep.subr.mxu0 0.0
      %416 = vmatpush1.msra.mxu0 0.0
      %417 = vmatprep.subr.mxu0 0.0
      %418 = vmatpush1.msra.mxu0 0.0
      %419 = vmatprep.subr.mxu0 0.0
      %420 = vmatpush1.msra.mxu0 0.0
      %421 = vmatprep.mubr.f32.mxu0 0.0
      %422 = vmatmul.mubr.f32.gmra.mrb[0].mxu0 %v250
      %v423 = vpop.f32.mrb[0].mxu0
      %v424 = vadd.f32 0.0, %v423
      %v425 = vpop.f32.mrb[0].mxu0
      %426 = vmatprep.mubr.f32.mxu0 0.0
      %427 = vmatmul.mubr.f32.gmra.mrb[0].mxu0 %v253
      %v428 = vpop.f32.mrb[0].mxu0
      %v429 = vadd.f32 0.0, %v428
      %v430 = vpop.f32.mrb[0].mxu0
      %431 = vmatprep.mubr.f32.mxu0 0.0
      %432 = vmatmul.mubr.f32.gmra.mrb[0].mxu0 %v256
      %v433 = vpop.f32.mrb[0].mxu0
      %v434 = vadd.f32 0.0, %v433
      %v435 = vpop.f32.mrb[0].mxu0
      %436 = vmatprep.mubr.f32.mxu0 0.0
      %437 = vmatmul.mubr.f32.gmra.mrb[0].mxu0 %v259
      %v438 = vpop.f32.mrb[0].mxu0
      %v439 = vadd.f32 0.0, %v438
      %v440 = vpop.f32.mrb[0].mxu0
      %441 = vdwg.mxu0
      %v443 = vsel %vm248, %v225, 0
      %v446 = vsel %vm248, %v226, 0
      %v449 = vsel %vm248, %v227, 0
      %v452 = vsel %vm248, %v228, 0
      %v454 = vsel %vm261, %v229, 0
      %v456 = vsel %vm261, %v238, 0
      %v458 = vsel %vm261, %v230, 0
      %460 = vmatprep.subr.mxu0 %v456
      %461 = vmatpush1.msra.mxu0 %v454
      %462 = vmatprep.subr.mxu0 0.0
      %463 = vmatpush1.msra.mxu0 0.0
      %464 = vmatprep.subr.mxu0 0.0
      %465 = vmatpush1.msra.mxu0 0.0
      %466 = vmatprep.subr.mxu0 0.0
      %467 = vmatpush1.msra.mxu0 0.0
      %468 = vmatprep.subr.mxu0 0.0
      %469 = vmatpush1.msra.mxu0 0.0
      %470 = vmatprep.subr.mxu0 0.0
      %471 = vmatpush1.msra.mxu0 0.0
      %472 = vmatprep.subr.mxu0 0.0
      %473 = vmatpush1.msra.mxu0 0.0
      %474 = vmatprep.subr.mxu0 0.0
      %475 = vmatpush1.msra.mxu0 0.0
      %476 = vmatprep.subr.mxu0 0.0
      %477 = vmatpush1.msra.mxu0 0.0
      %478 = vmatprep.subr.mxu0 0.0
      %479 = vmatpush1.msra.mxu0 0.0
      %480 = vmatprep.subr.mxu0 0.0
      %481 = vmatpush1.msra.mxu0 0.0
      %482 = vmatprep.subr.mxu0 0.0
      %483 = vmatpush1.msra.mxu0 0.0
      %484 = vmatprep.subr.mxu0 0.0
      %485 = vmatpush1.msra.mxu0 0.0
      %486 = vmatprep.subr.mxu0 0.0
      %487 = vmatpush1.msra.mxu0 0.0
      %488 = vmatprep.subr.mxu0 0.0
      %489 = vmatpush1.msra.mxu0 0.0
      %490 = vmatprep.subr.mxu0 0.0
      %491 = vmatpush1.msra.mxu0 0.0
      %492 = vmatprep.subr.mxu0 0.0
      %493 = vmatpush1.msra.mxu0 0.0
      %494 = vmatprep.subr.mxu0 0.0
      %495 = vmatpush1.msra.mxu0 0.0
      %496 = vmatprep.subr.mxu0 0.0
      %497 = vmatpush1.msra.mxu0 0.0
      %498 = vmatprep.subr.mxu0 0.0
      %499 = vmatpush1.msra.mxu0 0.0
      %500 = vmatprep.subr.mxu0 0.0
      %501 = vmatpush1.msra.mxu0 0.0
      %502 = vmatprep.subr.mxu0 0.0
      %503 = vmatpush1.msra.mxu0 0.0
      %504 = vmatprep.subr.mxu0 0.0
      %505 = vmatpush1.msra.mxu0 0.0
      %506 = vmatprep.subr.mxu0 0.0
      %507 = vmatpush1.msra.mxu0 0.0
      %508 = vmatprep.subr.mxu0 0.0
      %509 = vmatpush1.msra.mxu0 0.0
      %510 = vmatprep.subr.mxu0 0.0
      %511 = vmatpush1.msra.mxu0 0.0
      %512 = vmatprep.subr.mxu0 0.0
      %513 = vmatpush1.msra.mxu0 0.0
      %514 = vmatprep.subr.mxu0 0.0
      %515 = vmatpush1.msra.mxu0 0.0
      %516 = vmatprep.subr.mxu0 0.0
      %517 = vmatpush1.msra.mxu0 0.0
      %518 = vmatprep.subr.mxu0 0.0
      %519 = vmatpush1.msra.mxu0 0.0
      %520 = vmatprep.subr.mxu0 0.0
      %521 = vmatpush1.msra.mxu0 0.0
      %522 = vmatprep.subr.mxu0 0.0
      %523 = vmatpush1.msra.mxu0 0.0
      %524 = vmatprep.mubr.f32.mxu0 0.0
      %525 = vmatmul.mubr.f32.gmra.mrb[0].mxu0 %v443
      %v526 = vpop.f32.mrb[0].mxu0
      %v527 = vadd.f32 %v335, %v526
      %v528 = vpop.f32.mrb[0].mxu0
      %v529 = vadd.f32 %v337, %v528
      %530 = vmatprep.mubr.f32.mxu0 0.0
      %531 = vmatmul.mubr.f32.gmra.mrb[0].mxu0 %v446
      %v532 = vpop.f32.mrb[0].mxu0
      %v533 = vadd.f32 %v341, %v532
      %v534 = vpop.f32.mrb[0].mxu0
      %v535 = vadd.f32 %v343, %v534
      %536 = vmatprep.mubr.f32.mxu0 0.0
      %537 = vmatmul.mubr.f32.gmra.mrb[0].mxu0 %v449
      %v538 = vpop.f32.mrb[0].mxu0
      %v539 = vadd.f32 %v347, %v538
      %v540 = vpop.f32.mrb[0].mxu0
      %v541 = vadd.f32 %v349, %v540
      %542 = vmatprep.mubr.f32.mxu0 0.0
      %543 = vmatmul.mubr.f32.gmra.mrb[0].mxu0 %v452
      %v544 = vpop.f32.mrb[0].mxu0
      %v545 = vadd.f32 %v353, %v544
      %v546 = vpop.f32.mrb[0].mxu0
      %v547 = vadd.f32 %v355, %v546
      %548 = vdwg.mxu0
      %549 = vmatprep.subr.mxu0 0.0
      %550 = vmatpush1.msra.mxu0 %v458
      %551 = vmatprep.subr.mxu0 0.0
      %552 = vmatpush1.msra.mxu0 0.0
      %553 = vmatprep.subr.mxu0 0.0
      %554 = vmatpush1.msra.mxu0 0.0
      %555 = vmatprep.subr.mxu0 0.0
      %556 = vmatpush1.msra.mxu0 0.0
      %557 = vmatprep.subr.mxu0 0.0
      %558 = vmatpush1.msra.mxu0 0.0
      %559 = vmatprep.subr.mxu0 0.0
      %560 = vmatpush1.msra.mxu0 0.0
      %561 = vmatprep.subr.mxu0 0.0
      %562 = vmatpush1.msra.mxu0 0.0
      %563 = vmatprep.subr.mxu0 0.0
      %564 = vmatpush1.msra.mxu0 0.0
      %565 = vmatprep.subr.mxu0 0.0
      %566 = vmatpush1.msra.mxu0 0.0
      %567 = vmatprep.subr.mxu0 0.0
      %568 = vmatpush1.msra.mxu0 0.0
      %569 = vmatprep.subr.mxu0 0.0
      %570 = vmatpush1.msra.mxu0 0.0
      %571 = vmatprep.subr.mxu0 0.0
      %572 = vmatpush1.msra.mxu0 0.0
      %573 = vmatprep.subr.mxu0 0.0
      %574 = vmatpush1.msra.mxu0 0.0
      %575 = vmatprep.subr.mxu0 0.0
      %576 = vmatpush1.msra.mxu0 0.0
      %577 = vmatprep.subr.mxu0 0.0
      %578 = vmatpush1.msra.mxu0 0.0
      %579 = vmatprep.subr.mxu0 0.0
      %580 = vmatpush1.msra.mxu0 0.0
      %581 = vmatprep.subr.mxu0 0.0
      %582 = vmatpush1.msra.mxu0 0.0
      %583 = vmatprep.subr.mxu0 0.0
      %584 = vmatpush1.msra.mxu0 0.0
      %585 = vmatprep.subr.mxu0 0.0
      %586 = vmatpush1.msra.mxu0 0.0
      %587 = vmatprep.subr.mxu0 0.0
      %588 = vmatpush1.msra.mxu0 0.0
      %589 = vmatprep.subr.mxu0 0.0
      %590 = vmatpush1.msra.mxu0 0.0
      %591 = vmatprep.subr.mxu0 0.0
      %592 = vmatpush1.msra.mxu0 0.0
      %593 = vmatprep.subr.mxu0 0.0
      %594 = vmatpush1.msra.mxu0 0.0
      %595 = vmatprep.subr.mxu0 0.0
      %596 = vmatpush1.msra.mxu0 0.0
      %597 = vmatprep.subr.mxu0 0.0
      %598 = vmatpush1.msra.mxu0 0.0
      %599 = vmatprep.subr.mxu0 0.0
      %600 = vmatpush1.msra.mxu0 0.0
      %601 = vmatprep.subr.mxu0 0.0
      %602 = vmatpush1.msra.mxu0 0.0
      %603 = vmatprep.subr.mxu0 0.0
      %604 = vmatpush1.msra.mxu0 0.0
      %605 = vmatprep.subr.mxu0 0.0
      %606 = vmatpush1.msra.mxu0 0.0
      %607 = vmatprep.subr.mxu0 0.0
      %608 = vmatpush1.msra.mxu0 0.0
      %609 = vmatprep.subr.mxu0 0.0
      %610 = vmatpush1.msra.mxu0 0.0
      %611 = vmatprep.subr.mxu0 0.0
      %612 = vmatpush1.msra.mxu0 0.0
      %613 = vmatprep.mubr.f32.mxu0 0.0
      %614 = vmatmul.mubr.f32.gmra.mrb[0].mxu0 %v443
      %v615 = vpop.f32.mrb[0].mxu0
      %v616 = vadd.f32 %v424, %v615
      %v617 = vpop.f32.mrb[0].mxu0
      %618 = vmatprep.mubr.f32.mxu0 0.0
      %619 = vmatmul.mubr.f32.gmra.mrb[0].mxu0 %v446
      %v620 = vpop.f32.mrb[0].mxu0
      %v621 = vadd.f32 %v429, %v620
      %v622 = vpop.f32.mrb[0].mxu0
      %623 = vmatprep.mubr.f32.mxu0 0.0
      %624 = vmatmul.mubr.f32.gmra.mrb[0].mxu0 %v449
      %v625 = vpop.f32.mrb[0].mxu0
      %v626 = vadd.f32 %v434, %v625
      %v627 = vpop.f32.mrb[0].mxu0
      %628 = vmatprep.mubr.f32.mxu0 0.0
      %629 = vmatmul.mubr.f32.gmra.mrb[0].mxu0 %v452
      %v630 = vpop.f32.mrb[0].mxu0
      %v631 = vadd.f32 %v439, %v630
      %v632 = vpop.f32.mrb[0].mxu0
      %633 = vdwg.mxu0
      %s634 = scalar_lea.vmem %s1, 64
      %v635 = vld [vmem:[%s634] sm:$0xff]
      %v636 = vld [vmem:[%s634 + $0x8] sm:$0xff]
      %v637 = vld [vmem:[%s634 + $0x10] sm:$0xff]
      %v638 = vld [vmem:[%s634 + $0x18] sm:$0xff]
      %v639 = vld [vmem:[%s219] sm:$0xff]
      %v640 = vld [vmem:[%s219 + $0x8] sm:$0xf]
      %v643 = vcombine.high %v639, %v639
      %644 = vrot.lane.b32.xlu0 %v639, 126
      %v645 = vpop.permute.xlu0 %644
      %646 = vrot.lane.b32.xlu0 %v643, 126
      %v647 = vpop.permute.xlu0 %646
      %648 = vrot.lane.b32.xlu0 %v640, 126
      %v649 = vpop.permute.xlu0 %648
      %vm650 = vcmask 1031168
      %v651 = vsel %vm650, %v645, %v647
      %v652 = vsel %vm650, %v647, %v649
      %v654 = vsel %vm248, %v635, 0
      %v657 = vsel %vm248, %v636, 0
      %v660 = vsel %vm248, %v637, 0
      %v663 = vsel %vm248, %v638, 0
      %v665 = vsel %vm261, %v651, 0
      %v667 = vsel %vm261, %v652, 0
      %v669 = vsel %vm261, %v649, 0
      %671 = vmatprep.subr.mxu0 %v667
      %672 = vmatpush1.msra.mxu0 %v665
      %673 = vmatprep.subr.mxu0 0.0
      %674 = vmatpush1.msra.mxu0 0.0
      %675 = vmatprep.subr.mxu0 0.0
      %676 = vmatpush1.msra.mxu0 0.0
      %677 = vmatprep.subr.mxu0 0.0
      %678 = vmatpush1.msra.mxu0 0.0
      %679 = vmatprep.subr.mxu0 0.0
      %680 = vmatpush1.msra.mxu0 0.0
      %681 = vmatprep.subr.mxu0 0.0
      %682 = vmatpush1.msra.mxu0 0.0
      %683 = vmatprep.subr.mxu0 0.0
      %684 = vmatpush1.msra.mxu0 0.0
      %685 = vmatprep.subr.mxu0 0.0
      %686 = vmatpush1.msra.mxu0 0.0
      %687 = vmatprep.subr.mxu0 0.0
      %688 = vmatpush1.msra.mxu0 0.0
      %689 = vmatprep.subr.mxu0 0.0
      %690 = vmatpush1.msra.mxu0 0.0
      %691 = vmatprep.subr.mxu0 0.0
      %692 = vmatpush1.msra.mxu0 0.0
      %693 = vmatprep.subr.mxu0 0.0
      %694 = vmatpush1.msra.mxu0 0.0
      %695 = vmatprep.subr.mxu0 0.0
      %696 = vmatpush1.msra.mxu0 0.0
      %697 = vmatprep.subr.mxu0 0.0
      %698 = vmatpush1.msra.mxu0 0.0
      %699 = vmatprep.subr.mxu0 0.0
      %700 = vmatpush1.msra.mxu0 0.0
      %701 = vmatprep.subr.mxu0 0.0
      %702 = vmatpush1.msra.mxu0 0.0
      %703 = vmatprep.subr.mxu0 0.0
      %704 = vmatpush1.msra.mxu0 0.0
      %705 = vmatprep.subr.mxu0 0.0
      %706 = vmatpush1.msra.mxu0 0.0
      %707 = vmatprep.subr.mxu0 0.0
      %708 = vmatpush1.msra.mxu0 0.0
      %709 = vmatprep.subr.mxu0 0.0
      %710 = vmatpush1.msra.mxu0 0.0
      %711 = vmatprep.subr.mxu0 0.0
      %712 = vmatpush1.msra.mxu0 0.0
      %713 = vmatprep.subr.mxu0 0.0
      %714 = vmatpush1.msra.mxu0 0.0
      %715 = vmatprep.subr.mxu0 0.0
      %716 = vmatpush1.msra.mxu0 0.0
      %717 = vmatprep.subr.mxu0 0.0
      %718 = vmatpush1.msra.mxu0 0.0
      %719 = vmatprep.subr.mxu0 0.0
      %720 = vmatpush1.msra.mxu0 0.0
      %721 = vmatprep.subr.mxu0 0.0
      %722 = vmatpush1.msra.mxu0 0.0
      %723 = vmatprep.subr.mxu0 0.0
      %724 = vmatpush1.msra.mxu0 0.0
      %725 = vmatprep.subr.mxu0 0.0
      %726 = vmatpush1.msra.mxu0 0.0
      %727 = vmatprep.subr.mxu0 0.0
      %728 = vmatpush1.msra.mxu0 0.0
      %729 = vmatprep.subr.mxu0 0.0
      %730 = vmatpush1.msra.mxu0 0.0
      %731 = vmatprep.subr.mxu0 0.0
      %732 = vmatpush1.msra.mxu0 0.0
      %733 = vmatprep.subr.mxu0 0.0
      %734 = vmatpush1.msra.mxu0 0.0
      %735 = vmatprep.mubr.f32.mxu0 0.0
      %736 = vmatmul.mubr.f32.gmra.mrb[0].mxu0 %v654
      %v737 = vpop.f32.mrb[0].mxu0
      %v738 = vadd.f32 0.0, %v737
      %v739 = vpop.f32.mrb[0].mxu0
      %v740 = vadd.f32 0.0, %v739
      %741 = vmatprep.mubr.f32.mxu0 0.0
      %742 = vmatmul.mubr.f32.gmra.mrb[0].mxu0 %v657
      %v743 = vpop.f32.mrb[0].mxu0
      %v744 = vadd.f32 0.0, %v743
      %v745 = vpop.f32.mrb[0].mxu0
      %v746 = vadd.f32 0.0, %v745
      %747 = vmatprep.mubr.f32.mxu0 0.0
      %748 = vmatmul.mubr.f32.gmra.mrb[0].mxu0 %v660
      %v749 = vpop.f32.mrb[0].mxu0
      %v750 = vadd.f32 0.0, %v749
      %v751 = vpop.f32.mrb[0].mxu0
      %v752 = vadd.f32 0.0, %v751
      %753 = vmatprep.mubr.f32.mxu0 0.0
      %754 = vmatmul.mubr.f32.gmra.mrb[0].mxu0 %v663
      %v755 = vpop.f32.mrb[0].mxu0
      %v756 = vadd.f32 0.0, %v755
      %v757 = vpop.f32.mrb[0].mxu0
      %v758 = vadd.f32 0.0, %v757
      %759 = vdwg.mxu0
      %760 = vmatprep.subr.mxu0 0.0
      %761 = vmatpush1.msra.mxu0 %v669
      %762 = vmatprep.subr.mxu0 0.0
      %763 = vmatpush1.msra.mxu0 0.0
      %764 = vmatprep.subr.mxu0 0.0
      %765 = vmatpush1.msra.mxu0 0.0
      %766 = vmatprep.subr.mxu0 0.0
      %767 = vmatpush1.msra.mxu0 0.0
      %768 = vmatprep.subr.mxu0 0.0
      %769 = vmatpush1.msra.mxu0 0.0
      %770 = vmatprep.subr.mxu0 0.0
      %771 = vmatpush1.msra.mxu0 0.0
      %772 = vmatprep.subr.mxu0 0.0
      %773 = vmatpush1.msra.mxu0 0.0
      %774 = vmatprep.subr.mxu0 0.0
      %775 = vmatpush1.msra.mxu0 0.0
      %776 = vmatprep.subr.mxu0 0.0
      %777 = vmatpush1.msra.mxu0 0.0
      %778 = vmatprep.subr.mxu0 0.0
      %779 = vmatpush1.msra.mxu0 0.0
      %780 = vmatprep.subr.mxu0 0.0
      %781 = vmatpush1.msra.mxu0 0.0
      %782 = vmatprep.subr.mxu0 0.0
      %783 = vmatpush1.msra.mxu0 0.0
      %784 = vmatprep.subr.mxu0 0.0
      %785 = vmatpush1.msra.mxu0 0.0
      %786 = vmatprep.subr.mxu0 0.0
      %787 = vmatpush1.msra.mxu0 0.0
      %788 = vmatprep.subr.mxu0 0.0
      %789 = vmatpush1.msra.mxu0 0.0
      %790 = vmatprep.subr.mxu0 0.0
      %791 = vmatpush1.msra.mxu0 0.0
      %792 = vmatprep.subr.mxu0 0.0
      %793 = vmatpush1.msra.mxu0 0.0
      %794 = vmatprep.subr.mxu0 0.0
      %795 = vmatpush1.msra.mxu0 0.0
      %796 = vmatprep.subr.mxu0 0.0
      %797 = vmatpush1.msra.mxu0 0.0
      %798 = vmatprep.subr.mxu0 0.0
      %799 = vmatpush1.msra.mxu0 0.0
      %800 = vmatprep.subr.mxu0 0.0
      %801 = vmatpush1.msra.mxu0 0.0
      %802 = vmatprep.subr.mxu0 0.0
      %803 = vmatpush1.msra.mxu0 0.0
      %804 = vmatprep.subr.mxu0 0.0
      %805 = vmatpush1.msra.mxu0 0.0
      %806 = vmatprep.subr.mxu0 0.0
      %807 = vmatpush1.msra.mxu0 0.0
      %808 = vmatprep.subr.mxu0 0.0
      %809 = vmatpush1.msra.mxu0 0.0
      %810 = vmatprep.subr.mxu0 0.0
      %811 = vmatpush1.msra.mxu0 0.0
      %812 = vmatprep.subr.mxu0 0.0
      %813 = vmatpush1.msra.mxu0 0.0
      %814 = vmatprep.subr.mxu0 0.0
      %815 = vmatpush1.msra.mxu0 0.0
      %816 = vmatprep.subr.mxu0 0.0
      %817 = vmatpush1.msra.mxu0 0.0
      %818 = vmatprep.subr.mxu0 0.0
      %819 = vmatpush1.msra.mxu0 0.0
      %820 = vmatprep.subr.mxu0 0.0
      %821 = vmatpush1.msra.mxu0 0.0
      %822 = vmatprep.subr.mxu0 0.0
      %823 = vmatpush1.msra.mxu0 0.0
      %824 = vmatprep.mubr.f32.mxu0 0.0
      %825 = vmatmul.mubr.f32.gmra.mrb[0].mxu0 %v654
      %v826 = vpop.f32.mrb[0].mxu0
      %v827 = vadd.f32 0.0, %v826
      %v828 = vpop.f32.mrb[0].mxu0
      %829 = vmatprep.mubr.f32.mxu0 0.0
      %830 = vmatmul.mubr.f32.gmra.mrb[0].mxu0 %v657
      %v831 = vpop.f32.mrb[0].mxu0
      %v832 = vadd.f32 0.0, %v831
      %v833 = vpop.f32.mrb[0].mxu0
      %834 = vmatprep.mubr.f32.mxu0 0.0
      %835 = vmatmul.mubr.f32.gmra.mrb[0].mxu0 %v660
      %v836 = vpop.f32.mrb[0].mxu0
      %v837 = vadd.f32 0.0, %v836
      %v838 = vpop.f32.mrb[0].mxu0
      %839 = vmatprep.mubr.f32.mxu0 0.0
      %840 = vmatmul.mubr.f32.gmra.mrb[0].mxu0 %v663
      %v841 = vpop.f32.mrb[0].mxu0
      %v842 = vadd.f32 0.0, %v841
      %v843 = vpop.f32.mrb[0].mxu0
      %844 = vdwg.mxu0
      %v845 = vadd.f32 %v527, %v738
      %v846 = vadd.f32 %v529, %v740
      %v847 = vadd.f32 %v616, %v827
      %v848 = vadd.f32 %v533, %v744
      %v849 = vadd.f32 %v535, %v746
      %v850 = vadd.f32 %v621, %v832
      %v851 = vadd.f32 %v539, %v750
      %v852 = vadd.f32 %v541, %v752
      %v853 = vadd.f32 %v626, %v837
      %v854 = vadd.f32 %v545, %v756
      %v855 = vadd.f32 %v547, %v758
      %v856 = vadd.f32 %v631, %v842
      %s857 = scalar_lea.vmem %s1, 96
      %v858 = vld [vmem:[%s857] sm:$0xff]
      %v859 = vld [vmem:[%s857 + $0x8] sm:$0xff]
      %v860 = vld [vmem:[%s857 + $0x10] sm:$0xff]
      %v861 = vld [vmem:[%s857 + $0x18] sm:$0xff]
      %v862 = vld [vmem:[%s219] sm:$0xff]
      %v863 = vld [vmem:[%s219 + $0x8] sm:$0xf]
      %v866 = vcombine.high %v862, %v862
      %867 = vrot.lane.b32.xlu0 %v862, 110
      %v868 = vpop.permute.xlu0 %867
      %869 = vrot.lane.b32.xlu0 %v866, 110
      %v870 = vpop.permute.xlu0 %869
      %871 = vrot.lane.b32.xlu0 %v863, 110
      %v872 = vpop.permute.xlu0 %871
      %vm873 = vcmask 900096
      %v874 = vsel %vm873, %v868, %v870
      %v875 = vsel %vm873, %v870, %v872
      %v877 = vsel %vm248, %v858, 0
      %v880 = vsel %vm248, %v859, 0
      %v883 = vsel %vm248, %v860, 0
      %v886 = vsel %vm248, %v861, 0
      %v888 = vsel %vm261, %v874, 0
      %v890 = vsel %vm261, %v875, 0
      %v892 = vsel %vm261, %v872, 0
      %894 = vmatprep.subr.mxu0 %v890
      %895 = vmatpush1.msra.mxu0 %v888
      %896 = vmatprep.subr.mxu0 0.0
      %897 = vmatpush1.msra.mxu0 0.0
      %898 = vmatprep.subr.mxu0 0.0
      %899 = vmatpush1.msra.mxu0 0.0
      %900 = vmatprep.subr.mxu0 0.0
      %901 = vmatpush1.msra.mxu0 0.0
      %902 = vmatprep.subr.mxu0 0.0
      %903 = vmatpush1.msra.mxu0 0.0
      %904 = vmatprep.subr.mxu0 0.0
      %905 = vmatpush1.msra.mxu0 0.0
      %906 = vmatprep.subr.mxu0 0.0
      %907 = vmatpush1.msra.mxu0 0.0
      %908 = vmatprep.subr.mxu0 0.0
      %909 = vmatpush1.msra.mxu0 0.0
      %910 = vmatprep.subr.mxu0 0.0
      %911 = vmatpush1.msra.mxu0 0.0
      %912 = vmatprep.subr.mxu0 0.0
      %913 = vmatpush1.msra.mxu0 0.0
      %914 = vmatprep.subr.mxu0 0.0
      %915 = vmatpush1.msra.mxu0 0.0
      %916 = vmatprep.subr.mxu0 0.0
      %917 = vmatpush1.msra.mxu0 0.0
      %918 = vmatprep.subr.mxu0 0.0
      %919 = vmatpush1.msra.mxu0 0.0
      %920 = vmatprep.subr.mxu0 0.0
      %921 = vmatpush1.msra.mxu0 0.0
      %922 = vmatprep.subr.mxu0 0.0
      %923 = vmatpush1.msra.mxu0 0.0
      %924 = vmatprep.subr.mxu0 0.0
      %925 = vmatpush1.msra.mxu0 0.0
      %926 = vmatprep.subr.mxu0 0.0
      %927 = vmatpush1.msra.mxu0 0.0
      %928 = vmatprep.subr.mxu0 0.0
      %929 = vmatpush1.msra.mxu0 0.0
      %930 = vmatprep.subr.mxu0 0.0
      %931 = vmatpush1.msra.mxu0 0.0
      %932 = vmatprep.subr.mxu0 0.0
      %933 = vmatpush1.msra.mxu0 0.0
      %934 = vmatprep.subr.mxu0 0.0
      %935 = vmatpush1.msra.mxu0 0.0
      %936 = vmatprep.subr.mxu0 0.0
      %937 = vmatpush1.msra.mxu0 0.0
      %938 = vmatprep.subr.mxu0 0.0
      %939 = vmatpush1.msra.mxu0 0.0
      %940 = vmatprep.subr.mxu0 0.0
      %941 = vmatpush1.msra.mxu0 0.0
      %942 = vmatprep.subr.mxu0 0.0
      %943 = vmatpush1.msra.mxu0 0.0
      %944 = vmatprep.subr.mxu0 0.0
      %945 = vmatpush1.msra.mxu0 0.0
      %946 = vmatprep.subr.mxu0 0.0
      %947 = vmatpush1.msra.mxu0 0.0
      %948 = vmatprep.subr.mxu0 0.0
      %949 = vmatpush1.msra.mxu0 0.0
      %950 = vmatprep.subr.mxu0 0.0
      %951 = vmatpush1.msra.mxu0 0.0
      %952 = vmatprep.subr.mxu0 0.0
      %953 = vmatpush1.msra.mxu0 0.0
      %954 = vmatprep.subr.mxu0 0.0
      %955 = vmatpush1.msra.mxu0 0.0
      %956 = vmatprep.subr.mxu0 0.0
      %957 = vmatpush1.msra.mxu0 0.0
      %958 = vmatprep.mubr.f32.mxu0 0.0
      %959 = vmatmul.mubr.f32.gmra.mrb[0].mxu0 %v877
      %v960 = vpop.f32.mrb[0].mxu0
      %v961 = vadd.f32 0.0, %v960
      %v962 = vpop.f32.mrb[0].mxu0
      %v963 = vadd.f32 0.0, %v962
      %964 = vmatprep.mubr.f32.mxu0 0.0
      %965 = vmatmul.mubr.f32.gmra.mrb[0].mxu0 %v880
      %v966 = vpop.f32.mrb[0].mxu0
      %v967 = vadd.f32 0.0, %v966
      %v968 = vpop.f32.mrb[0].mxu0
      %v969 = vadd.f32 0.0, %v968
      %970 = vmatprep.mubr.f32.mxu0 0.0
      %971 = vmatmul.mubr.f32.gmra.mrb[0].mxu0 %v883
      %v972 = vpop.f32.mrb[0].mxu0
      %v973 = vadd.f32 0.0, %v972
      %v974 = vpop.f32.mrb[0].mxu0
      %v975 = vadd.f32 0.0, %v974
      %976 = vmatprep.mubr.f32.mxu0 0.0
      %977 = vmatmul.mubr.f32.gmra.mrb[0].mxu0 %v886
      %v978 = vpop.f32.mrb[0].mxu0
      %v979 = vadd.f32 0.0, %v978
      %v980 = vpop.f32.mrb[0].mxu0
      %v981 = vadd.f32 0.0, %v980
      %982 = vdwg.mxu0
      %983 = vmatprep.subr.mxu0 0.0
      %984 = vmatpush1.msra.mxu0 %v892
      %985 = vmatprep.subr.mxu0 0.0
      %986 = vmatpush1.msra.mxu0 0.0
      %987 = vmatprep.subr.mxu0 0.0
      %988 = vmatpush1.msra.mxu0 0.0
      %989 = vmatprep.subr.mxu0 0.0
      %990 = vmatpush1.msra.mxu0 0.0
      %991 = vmatprep.subr.mxu0 0.0
      %992 = vmatpush1.msra.mxu0 0.0
      %993 = vmatprep.subr.mxu0 0.0
      %994 = vmatpush1.msra.mxu0 0.0
      %995 = vmatprep.subr.mxu0 0.0
      %996 = vmatpush1.msra.mxu0 0.0
      %997 = vmatprep.subr.mxu0 0.0
      %998 = vmatpush1.msra.mxu0 0.0
      %999 = vmatprep.subr.mxu0 0.0
      %1000 = vmatpush1.msra.mxu0 0.0
      %1001 = vmatprep.subr.mxu0 0.0
      %1002 = vmatpush1.msra.mxu0 0.0
      %1003 = vmatprep.subr.mxu0 0.0
      %1004 = vmatpush1.msra.mxu0 0.0
      %1005 = vmatprep.subr.mxu0 0.0
      %1006 = vmatpush1.msra.mxu0 0.0
      %1007 = vmatprep.subr.mxu0 0.0
      %1008 = vmatpush1.msra.mxu0 0.0
      %1009 = vmatprep.subr.mxu0 0.0
      %1010 = vmatpush1.msra.mxu0 0.0
      %1011 = vmatprep.subr.mxu0 0.0
      %1012 = vmatpush1.msra.mxu0 0.0
      %1013 = vmatprep.subr.mxu0 0.0
      %1014 = vmatpush1.msra.mxu0 0.0
      %1015 = vmatprep.subr.mxu0 0.0
      %1016 = vmatpush1.msra.mxu0 0.0
      %1017 = vmatprep.subr.mxu0 0.0
      %1018 = vmatpush1.msra.mxu0 0.0
      %1019 = vmatprep.subr.mxu0 0.0
      %1020 = vmatpush1.msra.mxu0 0.0
      %1021 = vmatprep.subr.mxu0 0.0
      %1022 = vmatpush1.msra.mxu0 0.0
      %1023 = vmatprep.subr.mxu0 0.0
      %1024 = vmatpush1.msra.mxu0 0.0
      %1025 = vmatprep.subr.mxu0 0.0
      %1026 = vmatpush1.msra.mxu0 0.0
      %1027 = vmatprep.subr.mxu0 0.0
      %1028 = vmatpush1.msra.mxu0 0.0
      %1029 = vmatprep.subr.mxu0 0.0
      %1030 = vmatpush1.msra.mxu0 0.0
      %1031 = vmatprep.subr.mxu0 0.0
      %1032 = vmatpush1.msra.mxu0 0.0
      %1033 = vmatprep.subr.mxu0 0.0
      %1034 = vmatpush1.msra.mxu0 0.0
      %1035 = vmatprep.subr.mxu0 0.0
      %1036 = vmatpush1.msra.mxu0 0.0
      %1037 = vmatprep.subr.mxu0 0.0
      %1038 = vmatpush1.msra.mxu0 0.0
      %1039 = vmatprep.subr.mxu0 0.0
      %1040 = vmatpush1.msra.mxu0 0.0
      %1041 = vmatprep.subr.mxu0 0.0
      %1042 = vmatpush1.msra.mxu0 0.0
      %1043 = vmatprep.subr.mxu0 0.0
      %1044 = vmatpush1.msra.mxu0 0.0
      %1045 = vmatprep.subr.mxu0 0.0
      %1046 = vmatpush1.msra.mxu0 0.0
      %1047 = vmatprep.mubr.f32.mxu0 0.0
      %1048 = vmatmul.mubr.f32.gmra.mrb[0].mxu0 %v877
      %v1049 = vpop.f32.mrb[0].mxu0
      %v1050 = vadd.f32 0.0, %v1049
      %v1051 = vpop.f32.mrb[0].mxu0
      %1052 = vmatprep.mubr.f32.mxu0 0.0
      %1053 = vmatmul.mubr.f32.gmra.mrb[0].mxu0 %v880
      %v1054 = vpop.f32.mrb[0].mxu0
      %v1055 = vadd.f32 0.0, %v1054
      %v1056 = vpop.f32.mrb[0].mxu0
      %1057 = vmatprep.mubr.f32.mxu0 0.0
      %1058 = vmatmul.mubr.f32.gmra.mrb[0].mxu0 %v883
      %v1059 = vpop.f32.mrb[0].mxu0
      %v1060 = vadd.f32 0.0, %v1059
      %v1061 = vpop.f32.mrb[0].mxu0
      %1062 = vmatprep.mubr.f32.mxu0 0.0
      %1063 = vmatmul.mubr.f32.gmra.mrb[0].mxu0 %v886
      %v1064 = vpop.f32.mrb[0].mxu0
      %v1065 = vadd.f32 0.0, %v1064
      %v1066 = vpop.f32.mrb[0].mxu0
      %1067 = vdwg.mxu0
      %v1068 = vadd.f32 %v845, %v961
      %v1069 = vadd.f32 %v846, %v963
      %v1070 = vadd.f32 %v847, %v1050
      %v1071 = vadd.f32 %v848, %v967
      %v1072 = vadd.f32 %v849, %v969
      %v1073 = vadd.f32 %v850, %v1055
      %v1074 = vadd.f32 %v851, %v973
      %v1075 = vadd.f32 %v852, %v975
      %v1076 = vadd.f32 %v853, %v1060
      %v1077 = vadd.f32 %v854, %v979
      %v1078 = vadd.f32 %v855, %v981
      %v1079 = vadd.f32 %v856, %v1065
      %s1080 = scalar_lea.vmem %s1, 128
      %v1081 = vld [vmem:[%s1080] sm:$0xff]
      %v1082 = vld [vmem:[%s1080 + $0x8] sm:$0xff]
      %v1083 = vld [vmem:[%s1080 + $0x10] sm:$0xff]
      %v1084 = vld [vmem:[%s1080 + $0x18] sm:$0xff]
      %v1085 = vld [vmem:[%s219] sm:$0xff]
      %v1086 = vld [vmem:[%s219 + $0x8] sm:$0xf]
      %v1089 = vcombine.high %v1085, %v1085
      %1090 = vrot.lane.b32.xlu0 %v1085, 109
      %v1091 = vpop.permute.xlu0 %1090
      %1092 = vrot.lane.b32.xlu0 %v1089, 109
      %v1093 = vpop.permute.xlu0 %1092
      %1094 = vrot.lane.b32.xlu0 %v1086, 109
      %v1095 = vpop.permute.xlu0 %1094
      %vm1096 = vcmask 891904
      %v1097 = vsel %vm1096, %v1091, %v1093
      %v1098 = vsel %vm1096, %v1093, %v1095
      %v1100 = vsel %vm248, %v1081, 0
      %v1103 = vsel %vm248, %v1082, 0
      %v1106 = vsel %vm248, %v1083, 0
      %v1109 = vsel %vm248, %v1084, 0
      %v1111 = vsel %vm261, %v1097, 0
      %v1113 = vsel %vm261, %v1098, 0
      %v1115 = vsel %vm261, %v1095, 0
      %1117 = vmatprep.subr.mxu0 %v1113
      %1118 = vmatpush1.msra.mxu0 %v1111
      %1119 = vmatprep.subr.mxu0 0.0
      %1120 = vmatpush1.msra.mxu0 0.0
      %1121 = vmatprep.subr.mxu0 0.0
      %1122 = vmatpush1.msra.mxu0 0.0
      %1123 = vmatprep.subr.mxu0 0.0
      %1124 = vmatpush1.msra.mxu0 0.0
      %1125 = vmatprep.subr.mxu0 0.0
      %1126 = vmatpush1.msra.mxu0 0.0
      %1127 = vmatprep.subr.mxu0 0.0
      %1128 = vmatpush1.msra.mxu0 0.0
      %1129 = vmatprep.subr.mxu0 0.0
      %1130 = vmatpush1.msra.mxu0 0.0
      %1131 = vmatprep.subr.mxu0 0.0
      %1132 = vmatpush1.msra.mxu0 0.0
      %1133 = vmatprep.subr.mxu0 0.0
      %1134 = vmatpush1.msra.mxu0 0.0
      %1135 = vmatprep.subr.mxu0 0.0
      %1136 = vmatpush1.msra.mxu0 0.0
      %1137 = vmatprep.subr.mxu0 0.0
      %1138 = vmatpush1.msra.mxu0 0.0
      %1139 = vmatprep.subr.mxu0 0.0
      %1140 = vmatpush1.msra.mxu0 0.0
      %1141 = vmatprep.subr.mxu0 0.0
      %1142 = vmatpush1.msra.mxu0 0.0
      %1143 = vmatprep.subr.mxu0 0.0
      %1144 = vmatpush1.msra.mxu0 0.0
      %1145 = vmatprep.subr.mxu0 0.0
      %1146 = vmatpush1.msra.mxu0 0.0
      %1147 = vmatprep.subr.mxu0 0.0
      %1148 = vmatpush1.msra.mxu0 0.0
      %1149 = vmatprep.subr.mxu0 0.0
      %1150 = vmatpush1.msra.mxu0 0.0
      %1151 = vmatprep.subr.mxu0 0.0
      %1152 = vmatpush1.msra.mxu0 0.0
      %1153 = vmatprep.subr.mxu0 0.0
      %1154 = vmatpush1.msra.mxu0 0.0
      %1155 = vmatprep.subr.mxu0 0.0
      %1156 = vmatpush1.msra.mxu0 0.0
      %1157 = vmatprep.subr.mxu0 0.0
      %1158 = vmatpush1.msra.mxu0 0.0
      %1159 = vmatprep.subr.mxu0 0.0
      %1160 = vmatpush1.msra.mxu0 0.0
      %1161 = vmatprep.subr.mxu0 0.0
      %1162 = vmatpush1.msra.mxu0 0.0
      %1163 = vmatprep.subr.mxu0 0.0
      %1164 = vmatpush1.msra.mxu0 0.0
      %1165 = vmatprep.subr.mxu0 0.0
      %1166 = vmatpush1.msra.mxu0 0.0
      %1167 = vmatprep.subr.mxu0 0.0
      %1168 = vmatpush1.msra.mxu0 0.0
      %1169 = vmatprep.subr.mxu0 0.0
      %1170 = vmatpush1.msra.mxu0 0.0
      %1171 = vmatprep.subr.mxu0 0.0
      %1172 = vmatpush1.msra.mxu0 0.0
      %1173 = vmatprep.subr.mxu0 0.0
      %1174 = vmatpush1.msra.mxu0 0.0
      %1175 = vmatprep.subr.mxu0 0.0
      %1176 = vmatpush1.msra.mxu0 0.0
      %1177 = vmatprep.subr.mxu0 0.0
      %1178 = vmatpush1.msra.mxu0 0.0
      %1179 = vmatprep.subr.mxu0 0.0
      %1180 = vmatpush1.msra.mxu0 0.0
      %1181 = vmatprep.mubr.f32.mxu0 0.0
      %1182 = vmatmul.mubr.f32.gmra.mrb[0].mxu0 %v1100
      %v1183 = vpop.f32.mrb[0].mxu0
      %v1184 = vadd.f32 0.0, %v1183
      %v1185 = vpop.f32.mrb[0].mxu0
      %v1186 = vadd.f32 0.0, %v1185
      %1187 = vmatprep.mubr.f32.mxu0 0.0
      %1188 = vmatmul.mubr.f32.gmra.mrb[0].mxu0 %v1103
      %v1189 = vpop.f32.mrb[0].mxu0
      %v1190 = vadd.f32 0.0, %v1189
      %v1191 = vpop.f32.mrb[0].mxu0
      %v1192 = vadd.f32 0.0, %v1191
      %1193 = vmatprep.mubr.f32.mxu0 0.0
      %1194 = vmatmul.mubr.f32.gmra.mrb[0].mxu0 %v1106
      %v1195 = vpop.f32.mrb[0].mxu0
      %v1196 = vadd.f32 0.0, %v1195
      %v1197 = vpop.f32.mrb[0].mxu0
      %v1198 = vadd.f32 0.0, %v1197
      %1199 = vmatprep.mubr.f32.mxu0 0.0
      %1200 = vmatmul.mubr.f32.gmra.mrb[0].mxu0 %v1109
      %v1201 = vpop.f32.mrb[0].mxu0
      %v1202 = vadd.f32 0.0, %v1201
      %v1203 = vpop.f32.mrb[0].mxu0
      %v1204 = vadd.f32 0.0, %v1203
      %1205 = vdwg.mxu0
      %1206 = vmatprep.subr.mxu0 0.0
      %1207 = vmatpush1.msra.mxu0 %v1115
      %1208 = vmatprep.subr.mxu0 0.0
      %1209 = vmatpush1.msra.mxu0 0.0
      %1210 = vmatprep.subr.mxu0 0.0
      %1211 = vmatpush1.msra.mxu0 0.0
      %1212 = vmatprep.subr.mxu0 0.0
      %1213 = vmatpush1.msra.mxu0 0.0
      %1214 = vmatprep.subr.mxu0 0.0
      %1215 = vmatpush1.msra.mxu0 0.0
      %1216 = vmatprep.subr.mxu0 0.0
      %1217 = vmatpush1.msra.mxu0 0.0
      %1218 = vmatprep.subr.mxu0 0.0
      %1219 = vmatpush1.msra.mxu0 0.0
      %1220 = vmatprep.subr.mxu0 0.0
      %1221 = vmatpush1.msra.mxu0 0.0
      %1222 = vmatprep.subr.mxu0 0.0
      %1223 = vmatpush1.msra.mxu0 0.0
      %1224 = vmatprep.subr.mxu0 0.0
      %1225 = vmatpush1.msra.mxu0 0.0
      %1226 = vmatprep.subr.mxu0 0.0
      %1227 = vmatpush1.msra.mxu0 0.0
      %1228 = vmatprep.subr.mxu0 0.0
      %1229 = vmatpush1.msra.mxu0 0.0
      %1230 = vmatprep.subr.mxu0 0.0
      %1231 = vmatpush1.msra.mxu0 0.0
      %1232 = vmatprep.subr.mxu0 0.0
      %1233 = vmatpush1.msra.mxu0 0.0
      %1234 = vmatprep.subr.mxu0 0.0
      %1235 = vmatpush1.msra.mxu0 0.0
      %1236 = vmatprep.subr.mxu0 0.0
      %1237 = vmatpush1.msra.mxu0 0.0
      %1238 = vmatprep.subr.mxu0 0.0
      %1239 = vmatpush1.msra.mxu0 0.0
      %1240 = vmatprep.subr.mxu0 0.0
      %1241 = vmatpush1.msra.mxu0 0.0
      %1242 = vmatprep.subr.mxu0 0.0
      %1243 = vmatpush1.msra.mxu0 0.0
      %1244 = vmatprep.subr.mxu0 0.0
      %1245 = vmatpush1.msra.mxu0 0.0
      %1246 = vmatprep.subr.mxu0 0.0
      %1247 = vmatpush1.msra.mxu0 0.0
      %1248 = vmatprep.subr.mxu0 0.0
      %1249 = vmatpush1.msra.mxu0 0.0
      %1250 = vmatprep.subr.mxu0 0.0
      %1251 = vmatpush1.msra.mxu0 0.0
      %1252 = vmatprep.subr.mxu0 0.0
      %1253 = vmatpush1.msra.mxu0 0.0
      %1254 = vmatprep.subr.mxu0 0.0
      %1255 = vmatpush1.msra.mxu0 0.0
      %1256 = vmatprep.subr.mxu0 0.0
      %1257 = vmatpush1.msra.mxu0 0.0
      %1258 = vmatprep.subr.mxu0 0.0
      %1259 = vmatpush1.msra.mxu0 0.0
      %1260 = vmatprep.subr.mxu0 0.0
      %1261 = vmatpush1.msra.mxu0 0.0
      %1262 = vmatprep.subr.mxu0 0.0
      %1263 = vmatpush1.msra.mxu0 0.0
      %1264 = vmatprep.subr.mxu0 0.0
      %1265 = vmatpush1.msra.mxu0 0.0
      %1266 = vmatprep.subr.mxu0 0.0
      %1267 = vmatpush1.msra.mxu0 0.0
      %1268 = vmatprep.subr.mxu0 0.0
      %1269 = vmatpush1.msra.mxu0 0.0
      %1270 = vmatprep.mubr.f32.mxu0 0.0
      %1271 = vmatmul.mubr.f32.gmra.mrb[0].mxu0 %v1100
      %v1272 = vpop.f32.mrb[0].mxu0
      %v1273 = vadd.f32 0.0, %v1272
      %v1274 = vpop.f32.mrb[0].mxu0
      %1275 = vmatprep.mubr.f32.mxu0 0.0
      %1276 = vmatmul.mubr.f32.gmra.mrb[0].mxu0 %v1103
      %v1277 = vpop.f32.mrb[0].mxu0
      %v1278 = vadd.f32 0.0, %v1277
      %v1279 = vpop.f32.mrb[0].mxu0
      %1280 = vmatprep.mubr.f32.mxu0 0.0
      %1281 = vmatmul.mubr.f32.gmra.mrb[0].mxu0 %v1106
      %v1282 = vpop.f32.mrb[0].mxu0
      %v1283 = vadd.f32 0.0, %v1282
      %v1284 = vpop.f32.mrb[0].mxu0
      %1285 = vmatprep.mubr.f32.mxu0 0.0
      %1286 = vmatmul.mubr.f32.gmra.mrb[0].mxu0 %v1109
      %v1287 = vpop.f32.mrb[0].mxu0
      %v1288 = vadd.f32 0.0, %v1287
      %v1289 = vpop.f32.mrb[0].mxu0
      %1290 = vdwg.mxu0
      %v1291 = vadd.f32 %v1068, %v1184
      %v1292 = vadd.f32 %v1069, %v1186
      %v1293 = vadd.f32 %v1070, %v1273
      %v1294 = vadd.f32 %v1071, %v1190
      %v1295 = vadd.f32 %v1072, %v1192
      %v1296 = vadd.f32 %v1073, %v1278
      %v1297 = vadd.f32 %v1074, %v1196
      %v1298 = vadd.f32 %v1075, %v1198
      %v1299 = vadd.f32 %v1076, %v1283
      %v1300 = vadd.f32 %v1077, %v1202
      %v1301 = vadd.f32 %v1078, %v1204
      %v1302 = vadd.f32 %v1079, %v1288
      %s1303 = scalar_lea.vmem %s1, 160
      %v1304 = vld [vmem:[%s1303] sm:$0xff]
      %v1305 = vld [vmem:[%s1303 + $0x8] sm:$0xff]
      %v1306 = vld [vmem:[%s1303 + $0x10] sm:$0xff]
      %v1307 = vld [vmem:[%s1303 + $0x18] sm:$0xff]
      %v1308 = vld [vmem:[%s219] sm:$0xff]
      %v1309 = vld [vmem:[%s219 + $0x8] sm:$0xf]
      %v1312 = vcombine.high %v1308, %v1308
      %1313 = vrot.lane.b32.xlu0 %v1308, 108
      %v1314 = vpop.permute.xlu0 %1313
      %1315 = vrot.lane.b32.xlu0 %v1312, 108
      %v1316 = vpop.permute.xlu0 %1315
      %1317 = vrot.lane.b32.xlu0 %v1309, 108
      %v1318 = vpop.permute.xlu0 %1317
      %vm1319 = vcmask 883712
      %v1320 = vsel %vm1319, %v1314, %v1316
      %v1321 = vsel %vm1319, %v1316, %v1318
      %v1323 = vsel %vm248, %v1304, 0
      %v1326 = vsel %vm248, %v1305, 0
      %v1329 = vsel %vm248, %v1306, 0
      %v1332 = vsel %vm248, %v1307, 0
      %v1334 = vsel %vm261, %v1320, 0
      %v1336 = vsel %vm261, %v1321, 0
      %v1338 = vsel %vm261, %v1318, 0
      %1340 = vmatprep.subr.mxu0 %v1336
      %1341 = vmatpush1.msra.mxu0 %v1334
      %1342 = vmatprep.subr.mxu0 0.0
      %1343 = vmatpush1.msra.mxu0 0.0
      %1344 = vmatprep.subr.mxu0 0.0
      %1345 = vmatpush1.msra.mxu0 0.0
      %1346 = vmatprep.subr.mxu0 0.0
      %1347 = vmatpush1.msra.mxu0 0.0
      %1348 = vmatprep.subr.mxu0 0.0
      %1349 = vmatpush1.msra.mxu0 0.0
      %1350 = vmatprep.subr.mxu0 0.0
      %1351 = vmatpush1.msra.mxu0 0.0
      %1352 = vmatprep.subr.mxu0 0.0
      %1353 = vmatpush1.msra.mxu0 0.0
      %1354 = vmatprep.subr.mxu0 0.0
      %1355 = vmatpush1.msra.mxu0 0.0
      %1356 = vmatprep.subr.mxu0 0.0
      %1357 = vmatpush1.msra.mxu0 0.0
      %1358 = vmatprep.subr.mxu0 0.0
      %1359 = vmatpush1.msra.mxu0 0.0
      %1360 = vmatprep.subr.mxu0 0.0
      %1361 = vmatpush1.msra.mxu0 0.0
      %1362 = vmatprep.subr.mxu0 0.0
      %1363 = vmatpush1.msra.mxu0 0.0
      %1364 = vmatprep.subr.mxu0 0.0
      %1365 = vmatpush1.msra.mxu0 0.0
      %1366 = vmatprep.subr.mxu0 0.0
      %1367 = vmatpush1.msra.mxu0 0.0
      %1368 = vmatprep.subr.mxu0 0.0
      %1369 = vmatpush1.msra.mxu0 0.0
      %1370 = vmatprep.subr.mxu0 0.0
      %1371 = vmatpush1.msra.mxu0 0.0
      %1372 = vmatprep.subr.mxu0 0.0
      %1373 = vmatpush1.msra.mxu0 0.0
      %1374 = vmatprep.subr.mxu0 0.0
      %1375 = vmatpush1.msra.mxu0 0.0
      %1376 = vmatprep.subr.mxu0 0.0
      %1377 = vmatpush1.msra.mxu0 0.0
      %1378 = vmatprep.subr.mxu0 0.0
      %1379 = vmatpush1.msra.mxu0 0.0
      %1380 = vmatprep.subr.mxu0 0.0
      %1381 = vmatpush1.msra.mxu0 0.0
      %1382 = vmatprep.subr.mxu0 0.0
      %1383 = vmatpush1.msra.mxu0 0.0
      %1384 = vmatprep.subr.mxu0 0.0
      %1385 = vmatpush1.msra.mxu0 0.0
      %1386 = vmatprep.subr.mxu0 0.0
      %1387 = vmatpush1.msra.mxu0 0.0
      %1388 = vmatprep.subr.mxu0 0.0
      %1389 = vmatpush1.msra.mxu0 0.0
      %1390 = vmatprep.subr.mxu0 0.0
      %1391 = vmatpush1.msra.mxu0 0.0
      %1392 = vmatprep.subr.mxu0 0.0
      %1393 = vmatpush1.msra.mxu0 0.0
      %1394 = vmatprep.subr.mxu0 0.0
      %1395 = vmatpush1.msra.mxu0 0.0
      %1396 = vmatprep.subr.mxu0 0.0
      %1397 = vmatpush1.msra.mxu0 0.0
      %1398 = vmatprep.subr.mxu0 0.0
      %1399 = vmatpush1.msra.mxu0 0.0
      %1400 = vmatprep.subr.mxu0 0.0
      %1401 = vmatpush1.msra.mxu0 0.0
      %1402 = vmatprep.subr.mxu0 0.0
      %1403 = vmatpush1.msra.mxu0 0.0
      %1404 = vmatprep.mubr.f32.mxu0 0.0
      %1405 = vmatmul.mubr.f32.gmra.mrb[0].mxu0 %v1323
      %v1406 = vpop.f32.mrb[0].mxu0
      %v1407 = vadd.f32 0.0, %v1406
      %v1408 = vpop.f32.mrb[0].mxu0
      %v1409 = vadd.f32 0.0, %v1408
      %1410 = vmatprep.mubr.f32.mxu0 0.0
      %1411 = vmatmul.mubr.f32.gmra.mrb[0].mxu0 %v1326
      %v1412 = vpop.f32.mrb[0].mxu0
      %v1413 = vadd.f32 0.0, %v1412
      %v1414 = vpop.f32.mrb[0].mxu0
      %v1415 = vadd.f32 0.0, %v1414
      %1416 = vmatprep.mubr.f32.mxu0 0.0
      %1417 = vmatmul.mubr.f32.gmra.mrb[0].mxu0 %v1329
      %v1418 = vpop.f32.mrb[0].mxu0
      %v1419 = vadd.f32 0.0, %v1418
      %v1420 = vpop.f32.mrb[0].mxu0
      %v1421 = vadd.f32 0.0, %v1420
      %1422 = vmatprep.mubr.f32.mxu0 0.0
      %1423 = vmatmul.mubr.f32.gmra.mrb[0].mxu0 %v1332
      %v1424 = vpop.f32.mrb[0].mxu0
      %v1425 = vadd.f32 0.0, %v1424
      %v1426 = vpop.f32.mrb[0].mxu0
      %v1427 = vadd.f32 0.0, %v1426
      %1428 = vdwg.mxu0
      %1429 = vmatprep.subr.mxu0 0.0
      %1430 = vmatpush1.msra.mxu0 %v1338
      %1431 = vmatprep.subr.mxu0 0.0
      %1432 = vmatpush1.msra.mxu0 0.0
      %1433 = vmatprep.subr.mxu0 0.0
      %1434 = vmatpush1.msra.mxu0 0.0
      %1435 = vmatprep.subr.mxu0 0.0
      %1436 = vmatpush1.msra.mxu0 0.0
      %1437 = vmatprep.subr.mxu0 0.0
      %1438 = vmatpush1.msra.mxu0 0.0
      %1439 = vmatprep.subr.mxu0 0.0
      %1440 = vmatpush1.msra.mxu0 0.0
      %1441 = vmatprep.subr.mxu0 0.0
      %1442 = vmatpush1.msra.mxu0 0.0
      %1443 = vmatprep.subr.mxu0 0.0
      %1444 = vmatpush1.msra.mxu0 0.0
      %1445 = vmatprep.subr.mxu0 0.0
      %1446 = vmatpush1.msra.mxu0 0.0
      %1447 = vmatprep.subr.mxu0 0.0
      %1448 = vmatpush1.msra.mxu0 0.0
      %1449 = vmatprep.subr.mxu0 0.0
      %1450 = vmatpush1.msra.mxu0 0.0
      %1451 = vmatprep.subr.mxu0 0.0
      %1452 = vmatpush1.msra.mxu0 0.0
      %1453 = vmatprep.subr.mxu0 0.0
      %1454 = vmatpush1.msra.mxu0 0.0
      %1455 = vmatprep.subr.mxu0 0.0
      %1456 = vmatpush1.msra.mxu0 0.0
      %1457 = vmatprep.subr.mxu0 0.0
      %1458 = vmatpush1.msra.mxu0 0.0
      %1459 = vmatprep.subr.mxu0 0.0
      %1460 = vmatpush1.msra.mxu0 0.0
      %1461 = vmatprep.subr.mxu0 0.0
      %1462 = vmatpush1.msra.mxu0 0.0
      %1463 = vmatprep.subr.mxu0 0.0
      %1464 = vmatpush1.msra.mxu0 0.0
      %1465 = vmatprep.subr.mxu0 0.0
      %1466 = vmatpush1.msra.mxu0 0.0
      %1467 = vmatprep.subr.mxu0 0.0
      %1468 = vmatpush1.msra.mxu0 0.0
      %1469 = vmatprep.subr.mxu0 0.0
      %1470 = vmatpush1.msra.mxu0 0.0
      %1471 = vmatprep.subr.mxu0 0.0
      %1472 = vmatpush1.msra.mxu0 0.0
      %1473 = vmatprep.subr.mxu0 0.0
      %1474 = vmatpush1.msra.mxu0 0.0
      %1475 = vmatprep.subr.mxu0 0.0
      %1476 = vmatpush1.msra.mxu0 0.0
      %1477 = vmatprep.subr.mxu0 0.0
      %1478 = vmatpush1.msra.mxu0 0.0
      %1479 = vmatprep.subr.mxu0 0.0
      %1480 = vmatpush1.msra.mxu0 0.0
      %1481 = vmatprep.subr.mxu0 0.0
      %1482 = vmatpush1.msra.mxu0 0.0
      %1483 = vmatprep.subr.mxu0 0.0
      %1484 = vmatpush1.msra.mxu0 0.0
      %1485 = vmatprep.subr.mxu0 0.0
      %1486 = vmatpush1.msra.mxu0 0.0
      %1487 = vmatprep.subr.mxu0 0.0
      %1488 = vmatpush1.msra.mxu0 0.0
      %1489 = vmatprep.subr.mxu0 0.0
      %1490 = vmatpush1.msra.mxu0 0.0
      %1491 = vmatprep.subr.mxu0 0.0
      %1492 = vmatpush1.msra.mxu0 0.0
      %1493 = vmatprep.mubr.f32.mxu0 0.0
      %1494 = vmatmul.mubr.f32.gmra.mrb[0].mxu0 %v1323
      %v1495 = vpop.f32.mrb[0].mxu0
      %v1496 = vadd.f32 0.0, %v1495
      %v1497 = vpop.f32.mrb[0].mxu0
      %1498 = vmatprep.mubr.f32.mxu0 0.0
      %1499 = vmatmul.mubr.f32.gmra.mrb[0].mxu0 %v1326
      %v1500 = vpop.f32.mrb[0].mxu0
      %v1501 = vadd.f32 0.0, %v1500
      %v1502 = vpop.f32.mrb[0].mxu0
      %1503 = vmatprep.mubr.f32.mxu0 0.0
      %1504 = vmatmul.mubr.f32.gmra.mrb[0].mxu0 %v1329
      %v1505 = vpop.f32.mrb[0].mxu0
      %v1506 = vadd.f32 0.0, %v1505
      %v1507 = vpop.f32.mrb[0].mxu0
      %1508 = vmatprep.mubr.f32.mxu0 0.0
      %1509 = vmatmul.mubr.f32.gmra.mrb[0].mxu0 %v1332
      %v1510 = vpop.f32.mrb[0].mxu0
      %v1511 = vadd.f32 0.0, %v1510
      %v1512 = vpop.f32.mrb[0].mxu0
      %1513 = vdwg.mxu0
      %v1514 = vadd.f32 %v1291, %v1407
      %v1515 = vadd.f32 %v1292, %v1409
      %v1516 = vadd.f32 %v1293, %v1496
      %v1517 = vadd.f32 %v1294, %v1413
      %v1518 = vadd.f32 %v1295, %v1415
      %v1519 = vadd.f32 %v1296, %v1501
      %v1520 = vadd.f32 %v1297, %v1419
      %v1521 = vadd.f32 %v1298, %v1421
      %v1522 = vadd.f32 %v1299, %v1506
      %v1523 = vadd.f32 %v1300, %v1425
      %v1524 = vadd.f32 %v1301, %v1427
      %v1525 = vadd.f32 %v1302, %v1511
      %s1526 = scalar_lea.vmem %s1, 192
      %v1527 = vld [vmem:[%s1526] sm:$0xff]
      %v1528 = vld [vmem:[%s1526 + $0x8] sm:$0xff]
      %v1529 = vld [vmem:[%s1526 + $0x10] sm:$0xff]
      %v1530 = vld [vmem:[%s1526 + $0x18] sm:$0xff]
      %v1531 = vld [vmem:[%s219] sm:$0xff]
      %v1532 = vld [vmem:[%s219 + $0x8] sm:$0xf]
      %v1535 = vcombine.high %v1531, %v1531
      %1536 = vrot.lane.b32.xlu0 %v1531, 92
      %v1537 = vpop.permute.xlu0 %1536
      %1538 = vrot.lane.b32.xlu0 %v1535, 92
      %v1539 = vpop.permute.xlu0 %1538
      %1540 = vrot.lane.b32.xlu0 %v1532, 92
      %v1541 = vpop.permute.xlu0 %1540
      %vm1542 = vcmask 752640
      %v1543 = vsel %vm1542, %v1537, %v1539
      %v1544 = vsel %vm1542, %v1539, %v1541
      %v1546 = vsel %vm248, %v1527, 0
      %v1549 = vsel %vm248, %v1528, 0
      %v1552 = vsel %vm248, %v1529, 0
      %v1555 = vsel %vm248, %v1530, 0
      %v1557 = vsel %vm261, %v1543, 0
      %v1559 = vsel %vm261, %v1544, 0
      %v1561 = vsel %vm261, %v1541, 0
      %1563 = vmatprep.subr.mxu0 %v1559
      %1564 = vmatpush1.msra.mxu0 %v1557
      %1565 = vmatprep.subr.mxu0 0.0
      %1566 = vmatpush1.msra.mxu0 0.0
      %1567 = vmatprep.subr.mxu0 0.0
      %1568 = vmatpush1.msra.mxu0 0.0
      %1569 = vmatprep.subr.mxu0 0.0
      %1570 = vmatpush1.msra.mxu0 0.0
      %1571 = vmatprep.subr.mxu0 0.0
      %1572 = vmatpush1.msra.mxu0 0.0
      %1573 = vmatprep.subr.mxu0 0.0
      %1574 = vmatpush1.msra.mxu0 0.0
      %1575 = vmatprep.subr.mxu0 0.0
      %1576 = vmatpush1.msra.mxu0 0.0
      %1577 = vmatprep.subr.mxu0 0.0
      %1578 = vmatpush1.msra.mxu0 0.0
      %1579 = vmatprep.subr.mxu0 0.0
      %1580 = vmatpush1.msra.mxu0 0.0
      %1581 = vmatprep.subr.mxu0 0.0
      %1582 = vmatpush1.msra.mxu0 0.0
      %1583 = vmatprep.subr.mxu0 0.0
      %1584 = vmatpush1.msra.mxu0 0.0
      %1585 = vmatprep.subr.mxu0 0.0
      %1586 = vmatpush1.msra.mxu0 0.0
      %1587 = vmatprep.subr.mxu0 0.0
      %1588 = vmatpush1.msra.mxu0 0.0
      %1589 = vmatprep.subr.mxu0 0.0
      %1590 = vmatpush1.msra.mxu0 0.0
      %1591 = vmatprep.subr.mxu0 0.0
      %1592 = vmatpush1.msra.mxu0 0.0
      %1593 = vmatprep.subr.mxu0 0.0
      %1594 = vmatpush1.msra.mxu0 0.0
      %1595 = vmatprep.subr.mxu0 0.0
      %1596 = vmatpush1.msra.mxu0 0.0
      %1597 = vmatprep.subr.mxu0 0.0
      %1598 = vmatpush1.msra.mxu0 0.0
      %1599 = vmatprep.subr.mxu0 0.0
      %1600 = vmatpush1.msra.mxu0 0.0
      %1601 = vmatprep.subr.mxu0 0.0
      %1602 = vmatpush1.msra.mxu0 0.0
      %1603 = vmatprep.subr.mxu0 0.0
      %1604 = vmatpush1.msra.mxu0 0.0
      %1605 = vmatprep.subr.mxu0 0.0
      %1606 = vmatpush1.msra.mxu0 0.0
      %1607 = vmatprep.subr.mxu0 0.0
      %1608 = vmatpush1.msra.mxu0 0.0
      %1609 = vmatprep.subr.mxu0 0.0
      %1610 = vmatpush1.msra.mxu0 0.0
      %1611 = vmatprep.subr.mxu0 0.0
      %1612 = vmatpush1.msra.mxu0 0.0
      %1613 = vmatprep.subr.mxu0 0.0
      %1614 = vmatpush1.msra.mxu0 0.0
      %1615 = vmatprep.subr.mxu0 0.0
      %1616 = vmatpush1.msra.mxu0 0.0
      %1617 = vmatprep.subr.mxu0 0.0
      %1618 = vmatpush1.msra.mxu0 0.0
      %1619 = vmatprep.subr.mxu0 0.0
      %1620 = vmatpush1.msra.mxu0 0.0
      %1621 = vmatprep.subr.mxu0 0.0
      %1622 = vmatpush1.msra.mxu0 0.0
      %1623 = vmatprep.subr.mxu0 0.0
      %1624 = vmatpush1.msra.mxu0 0.0
      %1625 = vmatprep.subr.mxu0 0.0
      %1626 = vmatpush1.msra.mxu0 0.0
      %1627 = vmatprep.mubr.f32.mxu0 0.0
      %1628 = vmatmul.mubr.f32.gmra.mrb[0].mxu0 %v1546
      %v1629 = vpop.f32.mrb[0].mxu0
      %v1630 = vadd.f32 0.0, %v1629
      %v1631 = vpop.f32.mrb[0].mxu0
      %v1632 = vadd.f32 0.0, %v1631
      %1633 = vmatprep.mubr.f32.mxu0 0.0
      %1634 = vmatmul.mubr.f32.gmra.mrb[0].mxu0 %v1549
      %v1635 = vpop.f32.mrb[0].mxu0
      %v1636 = vadd.f32 0.0, %v1635
      %v1637 = vpop.f32.mrb[0].mxu0
      %v1638 = vadd.f32 0.0, %v1637
      %1639 = vmatprep.mubr.f32.mxu0 0.0
      %1640 = vmatmul.mubr.f32.gmra.mrb[0].mxu0 %v1552
      %v1641 = vpop.f32.mrb[0].mxu0
      %v1642 = vadd.f32 0.0, %v1641
      %v1643 = vpop.f32.mrb[0].mxu0
      %v1644 = vadd.f32 0.0, %v1643
      %1645 = vmatprep.mubr.f32.mxu0 0.0
      %1646 = vmatmul.mubr.f32.gmra.mrb[0].mxu0 %v1555
      %v1647 = vpop.f32.mrb[0].mxu0
      %v1648 = vadd.f32 0.0, %v1647
      %v1649 = vpop.f32.mrb[0].mxu0
      %v1650 = vadd.f32 0.0, %v1649
      %1651 = vdwg.mxu0
      %1652 = vmatprep.subr.mxu0 0.0
      %1653 = vmatpush1.msra.mxu0 %v1561
      %1654 = vmatprep.subr.mxu0 0.0
      %1655 = vmatpush1.msra.mxu0 0.0
      %1656 = vmatprep.subr.mxu0 0.0
      %1657 = vmatpush1.msra.mxu0 0.0
      %1658 = vmatprep.subr.mxu0 0.0
      %1659 = vmatpush1.msra.mxu0 0.0
      %1660 = vmatprep.subr.mxu0 0.0
      %1661 = vmatpush1.msra.mxu0 0.0
      %1662 = vmatprep.subr.mxu0 0.0
      %1663 = vmatpush1.msra.mxu0 0.0
      %1664 = vmatprep.subr.mxu0 0.0
      %1665 = vmatpush1.msra.mxu0 0.0
      %1666 = vmatprep.subr.mxu0 0.0
      %1667 = vmatpush1.msra.mxu0 0.0
      %1668 = vmatprep.subr.mxu0 0.0
      %1669 = vmatpush1.msra.mxu0 0.0
      %1670 = vmatprep.subr.mxu0 0.0
      %1671 = vmatpush1.msra.mxu0 0.0
      %1672 = vmatprep.subr.mxu0 0.0
      %1673 = vmatpush1.msra.mxu0 0.0
      %1674 = vmatprep.subr.mxu0 0.0
      %1675 = vmatpush1.msra.mxu0 0.0
      %1676 = vmatprep.subr.mxu0 0.0
      %1677 = vmatpush1.msra.mxu0 0.0
      %1678 = vmatprep.subr.mxu0 0.0
      %1679 = vmatpush1.msra.mxu0 0.0
      %1680 = vmatprep.subr.mxu0 0.0
      %1681 = vmatpush1.msra.mxu0 0.0
      %1682 = vmatprep.subr.mxu0 0.0
      %1683 = vmatpush1.msra.mxu0 0.0
      %1684 = vmatprep.subr.mxu0 0.0
      %1685 = vmatpush1.msra.mxu0 0.0
      %1686 = vmatprep.subr.mxu0 0.0
      %1687 = vmatpush1.msra.mxu0 0.0
      %1688 = vmatprep.subr.mxu0 0.0
      %1689 = vmatpush1.msra.mxu0 0.0
      %1690 = vmatprep.subr.mxu0 0.0
      %1691 = vmatpush1.msra.mxu0 0.0
      %1692 = vmatprep.subr.mxu0 0.0
      %1693 = vmatpush1.msra.mxu0 0.0
      %1694 = vmatprep.subr.mxu0 0.0
      %1695 = vmatpush1.msra.mxu0 0.0
      %1696 = vmatprep.subr.mxu0 0.0
      %1697 = vmatpush1.msra.mxu0 0.0
      %1698 = vmatprep.subr.mxu0 0.0
      %1699 = vmatpush1.msra.mxu0 0.0
      %1700 = vmatprep.subr.mxu0 0.0
      %1701 = vmatpush1.msra.mxu0 0.0
      %1702 = vmatprep.subr.mxu0 0.0
      %1703 = vmatpush1.msra.mxu0 0.0
      %1704 = vmatprep.subr.mxu0 0.0
      %1705 = vmatpush1.msra.mxu0 0.0
      %1706 = vmatprep.subr.mxu0 0.0
      %1707 = vmatpush1.msra.mxu0 0.0
      %1708 = vmatprep.subr.mxu0 0.0
      %1709 = vmatpush1.msra.mxu0 0.0
      %1710 = vmatprep.subr.mxu0 0.0
      %1711 = vmatpush1.msra.mxu0 0.0
      %1712 = vmatprep.subr.mxu0 0.0
      %1713 = vmatpush1.msra.mxu0 0.0
      %1714 = vmatprep.subr.mxu0 0.0
      %1715 = vmatpush1.msra.mxu0 0.0
      %1716 = vmatprep.mubr.f32.mxu0 0.0
      %1717 = vmatmul.mubr.f32.gmra.mrb[0].mxu0 %v1546
      %v1718 = vpop.f32.mrb[0].mxu0
      %v1719 = vadd.f32 0.0, %v1718
      %v1720 = vpop.f32.mrb[0].mxu0
      %1721 = vmatprep.mubr.f32.mxu0 0.0
      %1722 = vmatmul.mubr.f32.gmra.mrb[0].mxu0 %v1549
      %v1723 = vpop.f32.mrb[0].mxu0
      %v1724 = vadd.f32 0.0, %v1723
      %v1725 = vpop.f32.mrb[0].mxu0
      %1726 = vmatprep.mubr.f32.mxu0 0.0
      %1727 = vmatmul.mubr.f32.gmra.mrb[0].mxu0 %v1552
      %v1728 = vpop.f32.mrb[0].mxu0
      %v1729 = vadd.f32 0.0, %v1728
      %v1730 = vpop.f32.mrb[0].mxu0
      %1731 = vmatprep.mubr.f32.mxu0 0.0
      %1732 = vmatmul.mubr.f32.gmra.mrb[0].mxu0 %v1555
      %v1733 = vpop.f32.mrb[0].mxu0
      %v1734 = vadd.f32 0.0, %v1733
      %v1735 = vpop.f32.mrb[0].mxu0
      %1736 = vdwg.mxu0
      %v1737 = vadd.f32 %v1514, %v1630
      %v1738 = vadd.f32 %v1515, %v1632
      %v1739 = vadd.f32 %v1516, %v1719
      %v1740 = vadd.f32 %v1517, %v1636
      %v1741 = vadd.f32 %v1518, %v1638
      %v1742 = vadd.f32 %v1519, %v1724
      %v1743 = vadd.f32 %v1520, %v1642
      %v1744 = vadd.f32 %v1521, %v1644
      %v1745 = vadd.f32 %v1522, %v1729
      %v1746 = vadd.f32 %v1523, %v1648
      %v1747 = vadd.f32 %v1524, %v1650
      %v1748 = vadd.f32 %v1525, %v1734
      %s1749 = scalar_lea.vmem %s1, 224
      %v1750 = vld [vmem:[%s1749] sm:$0xff]
      %v1751 = vld [vmem:[%s1749 + $0x8] sm:$0xff]
      %v1752 = vld [vmem:[%s1749 + $0x10] sm:$0xff]
      %v1753 = vld [vmem:[%s1749 + $0x18] sm:$0xff]
      %v1754 = vld [vmem:[%s219] sm:$0xff]
      %v1755 = vld [vmem:[%s219 + $0x8] sm:$0xf]
      %v1758 = vcombine.high %v1754, %v1754
      %1759 = vrot.lane.b32.xlu0 %v1754, 91
      %v1760 = vpop.permute.xlu0 %1759
      %1761 = vrot.lane.b32.xlu0 %v1758, 91
      %v1762 = vpop.permute.xlu0 %1761
      %1763 = vrot.lane.b32.xlu0 %v1755, 91
      %v1764 = vpop.permute.xlu0 %1763
      %vm1765 = vcmask 744448
      %v1766 = vsel %vm1765, %v1760, %v1762
      %v1767 = vsel %vm1765, %v1762, %v1764
      %v1769 = vsel %vm248, %v1750, 0
      %v1772 = vsel %vm248, %v1751, 0
      %v1775 = vsel %vm248, %v1752, 0
      %v1778 = vsel %vm248, %v1753, 0
      %v1780 = vsel %vm261, %v1766, 0
      %v1782 = vsel %vm261, %v1767, 0
      %v1784 = vsel %vm261, %v1764, 0
      %1786 = vmatprep.subr.mxu0 %v1782
      %1787 = vmatpush1.msra.mxu0 %v1780
      %1788 = vmatprep.subr.mxu0 0.0
      %1789 = vmatpush1.msra.mxu0 0.0
      %1790 = vmatprep.subr.mxu0 0.0
      %1791 = vmatpush1.msra.mxu0 0.0
      %1792 = vmatprep.subr.mxu0 0.0
      %1793 = vmatpush1.msra.mxu0 0.0
      %1794 = vmatprep.subr.mxu0 0.0
      %1795 = vmatpush1.msra.mxu0 0.0
      %1796 = vmatprep.subr.mxu0 0.0
      %1797 = vmatpush1.msra.mxu0 0.0
      %1798 = vmatprep.subr.mxu0 0.0
      %1799 = vmatpush1.msra.mxu0 0.0
      %1800 = vmatprep.subr.mxu0 0.0
      %1801 = vmatpush1.msra.mxu0 0.0
      %1802 = vmatprep.subr.mxu0 0.0
      %1803 = vmatpush1.msra.mxu0 0.0
      %1804 = vmatprep.subr.mxu0 0.0
      %1805 = vmatpush1.msra.mxu0 0.0
      %1806 = vmatprep.subr.mxu0 0.0
      %1807 = vmatpush1.msra.mxu0 0.0
      %1808 = vmatprep.subr.mxu0 0.0
      %1809 = vmatpush1.msra.mxu0 0.0
      %1810 = vmatprep.subr.mxu0 0.0
      %1811 = vmatpush1.msra.mxu0 0.0
      %1812 = vmatprep.subr.mxu0 0.0
      %1813 = vmatpush1.msra.mxu0 0.0
      %1814 = vmatprep.subr.mxu0 0.0
      %1815 = vmatpush1.msra.mxu0 0.0
      %1816 = vmatprep.subr.mxu0 0.0
      %1817 = vmatpush1.msra.mxu0 0.0
      %1818 = vmatprep.subr.mxu0 0.0
      %1819 = vmatpush1.msra.mxu0 0.0
      %1820 = vmatprep.subr.mxu0 0.0
      %1821 = vmatpush1.msra.mxu0 0.0
      %1822 = vmatprep.subr.mxu0 0.0
      %1823 = vmatpush1.msra.mxu0 0.0
      %1824 = vmatprep.subr.mxu0 0.0
      %1825 = vmatpush1.msra.mxu0 0.0
      %1826 = vmatprep.subr.mxu0 0.0
      %1827 = vmatpush1.msra.mxu0 0.0
      %1828 = vmatprep.subr.mxu0 0.0
      %1829 = vmatpush1.msra.mxu0 0.0
      %1830 = vmatprep.subr.mxu0 0.0
      %1831 = vmatpush1.msra.mxu0 0.0
      %1832 = vmatprep.subr.mxu0 0.0
      %1833 = vmatpush1.msra.mxu0 0.0
      %1834 = vmatprep.subr.mxu0 0.0
      %1835 = vmatpush1.msra.mxu0 0.0
      %1836 = vmatprep.subr.mxu0 0.0
      %1837 = vmatpush1.msra.mxu0 0.0
      %1838 = vmatprep.subr.mxu0 0.0
      %1839 = vmatpush1.msra.mxu0 0.0
      %1840 = vmatprep.subr.mxu0 0.0
      %1841 = vmatpush1.msra.mxu0 0.0
      %1842 = vmatprep.subr.mxu0 0.0
      %1843 = vmatpush1.msra.mxu0 0.0
      %1844 = vmatprep.subr.mxu0 0.0
      %1845 = vmatpush1.msra.mxu0 0.0
      %1846 = vmatprep.subr.mxu0 0.0
      %1847 = vmatpush1.msra.mxu0 0.0
      %1848 = vmatprep.subr.mxu0 0.0
      %1849 = vmatpush1.msra.mxu0 0.0
      %1850 = vmatprep.mubr.f32.mxu0 0.0
      %1851 = vmatmul.mubr.f32.gmra.mrb[0].mxu0 %v1769
      %v1852 = vpop.f32.mrb[0].mxu0
      %v1853 = vadd.f32 0.0, %v1852
      %v1854 = vpop.f32.mrb[0].mxu0
      %v1855 = vadd.f32 0.0, %v1854
      %1856 = vmatprep.mubr.f32.mxu0 0.0
      %1857 = vmatmul.mubr.f32.gmra.mrb[0].mxu0 %v1772
      %v1858 = vpop.f32.mrb[0].mxu0
      %v1859 = vadd.f32 0.0, %v1858
      %v1860 = vpop.f32.mrb[0].mxu0
      %v1861 = vadd.f32 0.0, %v1860
      %1862 = vmatprep.mubr.f32.mxu0 0.0
      %1863 = vmatmul.mubr.f32.gmra.mrb[0].mxu0 %v1775
      %v1864 = vpop.f32.mrb[0].mxu0
      %v1865 = vadd.f32 0.0, %v1864
      %v1866 = vpop.f32.mrb[0].mxu0
      %v1867 = vadd.f32 0.0, %v1866
      %1868 = vmatprep.mubr.f32.mxu0 0.0
      %1869 = vmatmul.mubr.f32.gmra.mrb[0].mxu0 %v1778
      %v1870 = vpop.f32.mrb[0].mxu0
      %v1871 = vadd.f32 0.0, %v1870
      %v1872 = vpop.f32.mrb[0].mxu0
      %v1873 = vadd.f32 0.0, %v1872
      %1874 = vdwg.mxu0
      %1875 = vmatprep.subr.mxu0 0.0
      %1876 = vmatpush1.msra.mxu0 %v1784
      %1877 = vmatprep.subr.mxu0 0.0
      %1878 = vmatpush1.msra.mxu0 0.0
      %1879 = vmatprep.subr.mxu0 0.0
      %1880 = vmatpush1.msra.mxu0 0.0
      %1881 = vmatprep.subr.mxu0 0.0
      %1882 = vmatpush1.msra.mxu0 0.0
      %1883 = vmatprep.subr.mxu0 0.0
      %1884 = vmatpush1.msra.mxu0 0.0
      %1885 = vmatprep.subr.mxu0 0.0
      %1886 = vmatpush1.msra.mxu0 0.0
      %1887 = vmatprep.subr.mxu0 0.0
      %1888 = vmatpush1.msra.mxu0 0.0
      %1889 = vmatprep.subr.mxu0 0.0
      %1890 = vmatpush1.msra.mxu0 0.0
      %1891 = vmatprep.subr.mxu0 0.0
      %1892 = vmatpush1.msra.mxu0 0.0
      %1893 = vmatprep.subr.mxu0 0.0
      %1894 = vmatpush1.msra.mxu0 0.0
      %1895 = vmatprep.subr.mxu0 0.0
      %1896 = vmatpush1.msra.mxu0 0.0
      %1897 = vmatprep.subr.mxu0 0.0
      %1898 = vmatpush1.msra.mxu0 0.0
      %1899 = vmatprep.subr.mxu0 0.0
      %1900 = vmatpush1.msra.mxu0 0.0
      %1901 = vmatprep.subr.mxu0 0.0
      %1902 = vmatpush1.msra.mxu0 0.0
      %1903 = vmatprep.subr.mxu0 0.0
      %1904 = vmatpush1.msra.mxu0 0.0
      %1905 = vmatprep.subr.mxu0 0.0
      %1906 = vmatpush1.msra.mxu0 0.0
      %1907 = vmatprep.subr.mxu0 0.0
      %1908 = vmatpush1.msra.mxu0 0.0
      %1909 = vmatprep.subr.mxu0 0.0
      %1910 = vmatpush1.msra.mxu0 0.0
      %1911 = vmatprep.subr.mxu0 0.0
      %1912 = vmatpush1.msra.mxu0 0.0
      %1913 = vmatprep.subr.mxu0 0.0
      %1914 = vmatpush1.msra.mxu0 0.0
      %1915 = vmatprep.subr.mxu0 0.0
      %1916 = vmatpush1.msra.mxu0 0.0
      %1917 = vmatprep.subr.mxu0 0.0
      %1918 = vmatpush1.msra.mxu0 0.0
      %1919 = vmatprep.subr.mxu0 0.0
      %1920 = vmatpush1.msra.mxu0 0.0
      %1921 = vmatprep.subr.mxu0 0.0
      %1922 = vmatpush1.msra.mxu0 0.0
      %1923 = vmatprep.subr.mxu0 0.0
      %1924 = vmatpush1.msra.mxu0 0.0
      %1925 = vmatprep.subr.mxu0 0.0
      %1926 = vmatpush1.msra.mxu0 0.0
      %1927 = vmatprep.subr.mxu0 0.0
      %1928 = vmatpush1.msra.mxu0 0.0
      %1929 = vmatprep.subr.mxu0 0.0
      %1930 = vmatpush1.msra.mxu0 0.0
      %1931 = vmatprep.subr.mxu0 0.0
      %1932 = vmatpush1.msra.mxu0 0.0
      %1933 = vmatprep.subr.mxu0 0.0
      %1934 = vmatpush1.msra.mxu0 0.0
      %1935 = vmatprep.subr.mxu0 0.0
      %1936 = vmatpush1.msra.mxu0 0.0
      %1937 = vmatprep.subr.mxu0 0.0
      %1938 = vmatpush1.msra.mxu0 0.0
      %1939 = vmatprep.mubr.f32.mxu0 0.0
      %1940 = vmatmul.mubr.f32.gmra.mrb[0].mxu0 %v1769
      %v1941 = vpop.f32.mrb[0].mxu0
      %v1942 = vadd.f32 0.0, %v1941
      %v1943 = vpop.f32.mrb[0].mxu0
      %1944 = vmatprep.mubr.f32.mxu0 0.0
      %1945 = vmatmul.mubr.f32.gmra.mrb[0].mxu0 %v1772
      %v1946 = vpop.f32.mrb[0].mxu0
      %v1947 = vadd.f32 0.0, %v1946
      %v1948 = vpop.f32.mrb[0].mxu0
      %1949 = vmatprep.mubr.f32.mxu0 0.0
      %1950 = vmatmul.mubr.f32.gmra.mrb[0].mxu0 %v1775
      %v1951 = vpop.f32.mrb[0].mxu0
      %v1952 = vadd.f32 0.0, %v1951
      %v1953 = vpop.f32.mrb[0].mxu0
      %1954 = vmatprep.mubr.f32.mxu0 0.0
      %1955 = vmatmul.mubr.f32.gmra.mrb[0].mxu0 %v1778
      %v1956 = vpop.f32.mrb[0].mxu0
      %v1957 = vadd.f32 0.0, %v1956
      %v1958 = vpop.f32.mrb[0].mxu0
      %1959 = vdwg.mxu0
      %v1960 = vadd.f32 %v1737, %v1853
      %v1961 = vadd.f32 %v1738, %v1855
      %v1962 = vadd.f32 %v1739, %v1942
      %v1963 = vadd.f32 %v1740, %v1859
      %v1964 = vadd.f32 %v1741, %v1861
      %v1965 = vadd.f32 %v1742, %v1947
      %v1966 = vadd.f32 %v1743, %v1865
      %v1967 = vadd.f32 %v1744, %v1867
      %v1968 = vadd.f32 %v1745, %v1952
      %v1969 = vadd.f32 %v1746, %v1871
      %v1970 = vadd.f32 %v1747, %v1873
      %v1971 = vadd.f32 %v1748, %v1957
      %s1972 = scalar_lea.vmem %s1, 256
      %v1973 = vld [vmem:[%s1972] sm:$0xff]
      %v1974 = vld [vmem:[%s1972 + $0x8] sm:$0xff]
      %v1975 = vld [vmem:[%s1972 + $0x10] sm:$0xff]
      %v1976 = vld [vmem:[%s1972 + $0x18] sm:$0xff]
      %v1977 = vld [vmem:[%s219] sm:$0xff]
      %v1978 = vld [vmem:[%s219 + $0x8] sm:$0xf]
      %v1981 = vcombine.high %v1977, %v1977
      %1982 = vrot.lane.b32.xlu0 %v1977, 90
      %v1983 = vpop.permute.xlu0 %1982
      %1984 = vrot.lane.b32.xlu0 %v1981, 90
      %v1985 = vpop.permute.xlu0 %1984
      %1986 = vrot.lane.b32.xlu0 %v1978, 90
      %v1987 = vpop.permute.xlu0 %1986
      %vm1988 = vcmask 736256
      %v1989 = vsel %vm1988, %v1983, %v1985
      %v1990 = vsel %vm1988, %v1985, %v1987
      %v1992 = vsel %vm248, %v1973, 0
      %v1995 = vsel %vm248, %v1974, 0
      %v1998 = vsel %vm248, %v1975, 0
      %v2001 = vsel %vm248, %v1976, 0
      %v2003 = vsel %vm261, %v1989, 0
      %v2005 = vsel %vm261, %v1990, 0
      %v2007 = vsel %vm261, %v1987, 0
      %2009 = vmatprep.subr.mxu0 %v2005
      %2010 = vmatpush1.msra.mxu0 %v2003
      %2011 = vmatprep.subr.mxu0 0.0
      %2012 = vmatpush1.msra.mxu0 0.0
      %2013 = vmatprep.subr.mxu0 0.0
      %2014 = vmatpush1.msra.mxu0 0.0
      %2015 = vmatprep.subr.mxu0 0.0
      %2016 = vmatpush1.msra.mxu0 0.0
      %2017 = vmatprep.subr.mxu0 0.0
      %2018 = vmatpush1.msra.mxu0 0.0
      %2019 = vmatprep.subr.mxu0 0.0
      %2020 = vmatpush1.msra.mxu0 0.0
      %2021 = vmatprep.subr.mxu0 0.0
      %2022 = vmatpush1.msra.mxu0 0.0
      %2023 = vmatprep.subr.mxu0 0.0
      %2024 = vmatpush1.msra.mxu0 0.0
      %2025 = vmatprep.subr.mxu0 0.0
      %2026 = vmatpush1.msra.mxu0 0.0
      %2027 = vmatprep.subr.mxu0 0.0
      %2028 = vmatpush1.msra.mxu0 0.0
      %2029 = vmatprep.subr.mxu0 0.0
      %2030 = vmatpush1.msra.mxu0 0.0
      %2031 = vmatprep.subr.mxu0 0.0
      %2032 = vmatpush1.msra.mxu0 0.0
      %2033 = vmatprep.subr.mxu0 0.0
      %2034 = vmatpush1.msra.mxu0 0.0
      %2035 = vmatprep.subr.mxu0 0.0
      %2036 = vmatpush1.msra.mxu0 0.0
      %2037 = vmatprep.subr.mxu0 0.0
      %2038 = vmatpush1.msra.mxu0 0.0
      %2039 = vmatprep.subr.mxu0 0.0
      %2040 = vmatpush1.msra.mxu0 0.0
      %2041 = vmatprep.subr.mxu0 0.0
      %2042 = vmatpush1.msra.mxu0 0.0
      %2043 = vmatprep.subr.mxu0 0.0
      %2044 = vmatpush1.msra.mxu0 0.0
      %2045 = vmatprep.subr.mxu0 0.0
      %2046 = vmatpush1.msra.mxu0 0.0
      %2047 = vmatprep.subr.mxu0 0.0
      %2048 = vmatpush1.msra.mxu0 0.0
      %2049 = vmatprep.subr.mxu0 0.0
      %2050 = vmatpush1.msra.mxu0 0.0
      %2051 = vmatprep.subr.mxu0 0.0
      %2052 = vmatpush1.msra.mxu0 0.0
      %2053 = vmatprep.subr.mxu0 0.0
      %2054 = vmatpush1.msra.mxu0 0.0
      %2055 = vmatprep.subr.mxu0 0.0
      %2056 = vmatpush1.msra.mxu0 0.0
      %2057 = vmatprep.subr.mxu0 0.0
      %2058 = vmatpush1.msra.mxu0 0.0
      %2059 = vmatprep.subr.mxu0 0.0
      %2060 = vmatpush1.msra.mxu0 0.0
      %2061 = vmatprep.subr.mxu0 0.0
      %2062 = vmatpush1.msra.mxu0 0.0
      %2063 = vmatprep.subr.mxu0 0.0
      %2064 = vmatpush1.msra.mxu0 0.0
      %2065 = vmatprep.subr.mxu0 0.0
      %2066 = vmatpush1.msra.mxu0 0.0
      %2067 = vmatprep.subr.mxu0 0.0
      %2068 = vmatpush1.msra.mxu0 0.0
      %2069 = vmatprep.subr.mxu0 0.0
      %2070 = vmatpush1.msra.mxu0 0.0
      %2071 = vmatprep.subr.mxu0 0.0
      %2072 = vmatpush1.msra.mxu0 0.0
      %2073 = vmatprep.mubr.f32.mxu0 0.0
      %2074 = vmatmul.mubr.f32.gmra.mrb[0].mxu0 %v1992
      %v2075 = vpop.f32.mrb[0].mxu0
      %v2076 = vadd.f32 0.0, %v2075
      %v2077 = vpop.f32.mrb[0].mxu0
      %v2078 = vadd.f32 0.0, %v2077
      %2079 = vmatprep.mubr.f32.mxu0 0.0
      %2080 = vmatmul.mubr.f32.gmra.mrb[0].mxu0 %v1995
      %v2081 = vpop.f32.mrb[0].mxu0
      %v2082 = vadd.f32 0.0, %v2081
      %v2083 = vpop.f32.mrb[0].mxu0
      %v2084 = vadd.f32 0.0, %v2083
      %2085 = vmatprep.mubr.f32.mxu0 0.0
      %2086 = vmatmul.mubr.f32.gmra.mrb[0].mxu0 %v1998
      %v2087 = vpop.f32.mrb[0].mxu0
      %v2088 = vadd.f32 0.0, %v2087
      %v2089 = vpop.f32.mrb[0].mxu0
      %v2090 = vadd.f32 0.0, %v2089
      %2091 = vmatprep.mubr.f32.mxu0 0.0
      %2092 = vmatmul.mubr.f32.gmra.mrb[0].mxu0 %v2001
      %v2093 = vpop.f32.mrb[0].mxu0
      %v2094 = vadd.f32 0.0, %v2093
      %v2095 = vpop.f32.mrb[0].mxu0
      %v2096 = vadd.f32 0.0, %v2095
      %2097 = vdwg.mxu0
      %2098 = vmatprep.subr.mxu0 0.0
      %2099 = vmatpush1.msra.mxu0 %v2007
      %2100 = vmatprep.subr.mxu0 0.0
      %2101 = vmatpush1.msra.mxu0 0.0
      %2102 = vmatprep.subr.mxu0 0.0
      %2103 = vmatpush1.msra.mxu0 0.0
      %2104 = vmatprep.subr.mxu0 0.0
      %2105 = vmatpush1.msra.mxu0 0.0
      %2106 = vmatprep.subr.mxu0 0.0
      %2107 = vmatpush1.msra.mxu0 0.0
      %2108 = vmatprep.subr.mxu0 0.0
      %2109 = vmatpush1.msra.mxu0 0.0
      %2110 = vmatprep.subr.mxu0 0.0
      %2111 = vmatpush1.msra.mxu0 0.0
      %2112 = vmatprep.subr.mxu0 0.0
      %2113 = vmatpush1.msra.mxu0 0.0
      %2114 = vmatprep.subr.mxu0 0.0
      %2115 = vmatpush1.msra.mxu0 0.0
      %2116 = vmatprep.subr.mxu0 0.0
      %2117 = vmatpush1.msra.mxu0 0.0
      %2118 = vmatprep.subr.mxu0 0.0
      %2119 = vmatpush1.msra.mxu0 0.0
      %2120 = vmatprep.subr.mxu0 0.0
      %2121 = vmatpush1.msra.mxu0 0.0
      %2122 = vmatprep.subr.mxu0 0.0
      %2123 = vmatpush1.msra.mxu0 0.0
      %2124 = vmatprep.subr.mxu0 0.0
      %2125 = vmatpush1.msra.mxu0 0.0
      %2126 = vmatprep.subr.mxu0 0.0
      %2127 = vmatpush1.msra.mxu0 0.0
      %2128 = vmatprep.subr.mxu0 0.0
      %2129 = vmatpush1.msra.mxu0 0.0
      %2130 = vmatprep.subr.mxu0 0.0
      %2131 = vmatpush1.msra.mxu0 0.0
      %2132 = vmatprep.subr.mxu0 0.0
      %2133 = vmatpush1.msra.mxu0 0.0
      %2134 = vmatprep.subr.mxu0 0.0
      %2135 = vmatpush1.msra.mxu0 0.0
      %2136 = vmatprep.subr.mxu0 0.0
      %2137 = vmatpush1.msra.mxu0 0.0
      %2138 = vmatprep.subr.mxu0 0.0
      %2139 = vmatpush1.msra.mxu0 0.0
      %2140 = vmatprep.subr.mxu0 0.0
      %2141 = vmatpush1.msra.mxu0 0.0
      %2142 = vmatprep.subr.mxu0 0.0
      %2143 = vmatpush1.msra.mxu0 0.0
      %2144 = vmatprep.subr.mxu0 0.0
      %2145 = vmatpush1.msra.mxu0 0.0
      %2146 = vmatprep.subr.mxu0 0.0
      %2147 = vmatpush1.msra.mxu0 0.0
      %2148 = vmatprep.subr.mxu0 0.0
      %2149 = vmatpush1.msra.mxu0 0.0
      %2150 = vmatprep.subr.mxu0 0.0
      %2151 = vmatpush1.msra.mxu0 0.0
      %2152 = vmatprep.subr.mxu0 0.0
      %2153 = vmatpush1.msra.mxu0 0.0
      %2154 = vmatprep.subr.mxu0 0.0
      %2155 = vmatpush1.msra.mxu0 0.0
      %2156 = vmatprep.subr.mxu0 0.0
      %2157 = vmatpush1.msra.mxu0 0.0
      %2158 = vmatprep.subr.mxu0 0.0
      %2159 = vmatpush1.msra.mxu0 0.0
      %2160 = vmatprep.subr.mxu0 0.0
      %2161 = vmatpush1.msra.mxu0 0.0
      %2162 = vmatprep.mubr.f32.mxu0 0.0
      %2163 = vmatmul.mubr.f32.gmra.mrb[0].mxu0 %v1992
      %v2164 = vpop.f32.mrb[0].mxu0
      %v2165 = vadd.f32 0.0, %v2164
      %v2166 = vpop.f32.mrb[0].mxu0
      %2167 = vmatprep.mubr.f32.mxu0 0.0
      %2168 = vmatmul.mubr.f32.gmra.mrb[0].mxu0 %v1995
      %v2169 = vpop.f32.mrb[0].mxu0
      %v2170 = vadd.f32 0.0, %v2169
      %v2171 = vpop.f32.mrb[0].mxu0
      %2172 = vmatprep.mubr.f32.mxu0 0.0
      %2173 = vmatmul.mubr.f32.gmra.mrb[0].mxu0 %v1998
      %v2174 = vpop.f32.mrb[0].mxu0
      %v2175 = vadd.f32 0.0, %v2174
      %v2176 = vpop.f32.mrb[0].mxu0
      %2177 = vmatprep.mubr.f32.mxu0 0.0
      %2178 = vmatmul.mubr.f32.gmra.mrb[0].mxu0 %v2001
      %v2179 = vpop.f32.mrb[0].mxu0
      %v2180 = vadd.f32 0.0, %v2179
      %v2181 = vpop.f32.mrb[0].mxu0
      %2182 = vdwg.mxu0
      %v2183 = vadd.f32 %v1960, %v2076
      %v2184 = vadd.f32 %v1961, %v2078
      %v2185 = vadd.f32 %v1962, %v2165
      %v2186 = vadd.f32 %v1963, %v2082
      %v2187 = vadd.f32 %v1964, %v2084
      %v2188 = vadd.f32 %v1965, %v2170
      %v2189 = vadd.f32 %v1966, %v2088
      %v2190 = vadd.f32 %v1967, %v2090
      %v2191 = vadd.f32 %v1968, %v2175
      %v2192 = vadd.f32 %v1969, %v2094
      %v2193 = vadd.f32 %v1970, %v2096
      %v2194 = vadd.f32 %v1971, %v2180
      %v2195 = vlaneseq
      %v2196 = vand.u32 %v2195, 127
      %v2197 = vadd.s32 %v2196, 128
      %v2198 = vadd.s32 %v2196, 256
      %vm2199 = vcmp.lt.s32.totalorder %v2196, 0
      %v2200 = vsub.s32 0, %v2196
      %v2201 = vsel %vm2199, %v2200, %v2196
      %v2202 = vmul.u32.u64.compose %v2201, 3817748708
      %v2203 = vextract.low.u32 %v2202
      %v2204 = vextract.high.u32 %v2202
      %v2205 = vshrl.u32 %v2204, 4
      %v2206 = vmul.u32 %v2205, 18
      %v2207 = vsub.s32 %v2201, %v2206
      %v2208 = vsub.s32 0, %v2207
      %v2209 = vsel %vm2199, %v2208, %v2207
      %vm2210 = vcmp.lt.s32.totalorder %v2197, 0
      %v2211 = vsub.s32 0, %v2197
      %v2212 = vsel %vm2210, %v2211, %v2197
      %v2213 = vmul.u32.u64.compose %v2212, 3817748708
      %v2214 = vextract.low.u32 %v2213
      %v2215 = vextract.high.u32 %v2213
      %v2216 = vshrl.u32 %v2215, 4
      %v2217 = vmul.u32 %v2216, 18
      %v2218 = vsub.s32 %v2212, %v2217
      %v2219 = vsub.s32 0, %v2218
      %v2220 = vsel %vm2210, %v2219, %v2218
      %vm2221 = vcmp.lt.s32.totalorder %v2198, 0
      %v2222 = vsub.s32 0, %v2198
      %v2223 = vsel %vm2221, %v2222, %v2198
      %v2224 = vmul.u32.u64.compose %v2223, 3817748708
      %v2225 = vextract.low.u32 %v2224
      %v2226 = vextract.high.u32 %v2224
      %v2227 = vshrl.u32 %v2226, 4
      %v2228 = vmul.u32 %v2227, 18
      %v2229 = vsub.s32 %v2223, %v2228
      %v2230 = vsub.s32 0, %v2229
      %v2231 = vsel %vm2221, %v2230, %v2229
      %vm2232 = vcmp.ne.s32.totalorder %v2209, 0
      %vm2233 = vcmp.ne.s32.totalorder %v2220, 0
      %vm2234 = vcmp.ne.s32.totalorder %v2231, 0
      %vm2235 = vcmp.lt.s32.totalorder %v2209, 0
      %vm2236 = vcmp.lt.s32.totalorder %v2220, 0
      %vm2237 = vcmp.lt.s32.totalorder %v2231, 0
      %vm2238 = vmand %vm2235, %vm2232
      %vm2239 = vmand %vm2236, %vm2233
      %vm2240 = vmand %vm2237, %vm2234
      %v2241 = vadd.s32 %v2209, 18
      %v2242 = vadd.s32 %v2220, 18
      %v2243 = vadd.s32 %v2231, 18
      %v2244 = vsel %vm2238, %v2241, %v2209
      %v2245 = vsel %vm2239, %v2242, %v2220
      %v2246 = vsel %vm2240, %v2243, %v2231
      %vm2247 = vcmp.lt.s32.totalorder %v2244, 16
      %vm2248 = vcmp.lt.s32.totalorder %v2245, 16
      %vm2249 = vcmp.lt.s32.totalorder %v2246, 16
      %v2250 = vld [vmem:[%s2] sm:$0xff]
      %v2251 = vld [vmem:[%s2 + $0x8] sm:$0xff]
      %v2252 = vld [vmem:[%s2 + $0x10] sm:$0xff]
      %v2253 = vld [vmem:[%s2 + $0x18] sm:$0xff]
      %2255 = vset.pattern.permute.xlu0 0
      %2256 = vperm.xlu0 %2255, %v2250
      %v2257 = vpop.permute.xlu0 %2256
      %2260 = vset.pattern.permute.xlu0 0
      %2261 = vperm.xlu0 %2260, %v2251
      %v2262 = vpop.permute.xlu0 %2261
      %2265 = vset.pattern.permute.xlu0 0
      %2266 = vperm.xlu0 %2265, %v2252
      %v2267 = vpop.permute.xlu0 %2266
      %2270 = vset.pattern.permute.xlu0 0
      %2271 = vperm.xlu0 %2270, %v2253
      %v2272 = vpop.permute.xlu0 %2271
      %v2274 = vadd.f32 %v2183, %v2257
      %v2275 = vadd.f32 %v2184, %v2257
      %v2276 = vadd.f32 %v2185, %v2257
      %v2277 = vadd.f32 %v2186, %v2262
      %v2278 = vadd.f32 %v2187, %v2262
      %v2279 = vadd.f32 %v2188, %v2262
      %v2280 = vadd.f32 %v2189, %v2267
      %v2281 = vadd.f32 %v2190, %v2267
      %v2282 = vadd.f32 %v2191, %v2267
      %v2283 = vadd.f32 %v2192, %v2272
      %v2284 = vadd.f32 %v2193, %v2272
      %v2285 = vadd.f32 %v2194, %v2272
      %v2286 = vmax.f32 %v2274, 0.0
      %v2287 = vmax.f32 %v2275, 0.0
      %v2288 = vmax.f32 %v2276, 0.0
      %v2289 = vmax.f32 %v2277, 0.0
      %v2290 = vmax.f32 %v2278, 0.0
      %v2291 = vmax.f32 %v2279, 0.0
      %v2292 = vmax.f32 %v2280, 0.0
      %v2293 = vmax.f32 %v2281, 0.0
      %v2294 = vmax.f32 %v2282, 0.0
      %v2295 = vmax.f32 %v2283, 0.0
      %v2296 = vmax.f32 %v2284, 0.0
      %v2297 = vmax.f32 %v2285, 0.0
      %v2298 = vsel %vm2247, 1, 0
      %v2299 = vsel %vm2248, 1, 0
      %v2300 = vsel %vm2249, 1, 0
      %vm2301 = vcmp.eq.s32.totalorder %v2298, 1
      %vm2302 = vcmp.eq.s32.totalorder %v2299, 1
      %vm2303 = vcmp.eq.s32.totalorder %v2300, 1
      %v2304 = vsel %vm2301, %v2286, 0.0
      %v2305 = vsel %vm2302, %v2287, 0.0
      %v2306 = vsel %vm2303, %v2288, 0.0
      %v2307 = vsel %vm2301, %v2289, 0.0
      %v2308 = vsel %vm2302, %v2290, 0.0
      %v2309 = vsel %vm2303, %v2291, 0.0
      %v2310 = vsel %vm2301, %v2292, 0.0
      %v2311 = vsel %vm2302, %v2293, 0.0
      %v2312 = vsel %vm2303, %v2294, 0.0
      %v2313 = vsel %vm2301, %v2295, 0.0
      %v2314 = vsel %vm2302, %v2296, 0.0
      %v2315 = vsel %vm2303, %v2297, 0.0
      %vm2316 = vcmask 154624
      %2317 = vst.msk [vmem:[#allocation2] sm:$0xff] %vm2316, 0.0
      %2318 = vst.msk [vmem:[#allocation2 + $0x18] sm:$0xff] %vm2316, 0.0
      %2319 = vst.msk [vmem:[#allocation2 + $0x30] sm:$0xff] %vm2316, 0.0
      %2320 = vst.msk [vmem:[#allocation2 + $0x48] sm:$0xff] %vm2316, 0.0
      %vm2321 = vcmask 572824
      %2322 = vst.msk [vmem:[#allocation2 + $0x10] sm:$0xff] %vm2321, 0.0
      %2323 = vst.msk [vmem:[#allocation2 + $0x28] sm:$0xff] %vm2321, 0.0
      %2324 = vst.msk [vmem:[#allocation2 + $0x40] sm:$0xff] %vm2321, 0.0
      %2325 = vst.msk [vmem:[#allocation2 + $0x58] sm:$0xff] %vm2321, 0.0
      %2338 = vrot.lane.b32.xlu0 %v2304, 19
      %v2339 = vpop.permute.xlu0 %2338
      %2340 = vrot.lane.b32.xlu0 %v2305, 19
      %v2341 = vpop.permute.xlu0 %2340
      %2342 = vrot.lane.b32.xlu0 %v2306, 19
      %v2343 = vpop.permute.xlu0 %2342
      %2344 = vrot.lane.b32.xlu0 %v2307, 19
      %v2345 = vpop.permute.xlu0 %2344
      %2346 = vrot.lane.b32.xlu0 %v2308, 19
      %v2347 = vpop.permute.xlu0 %2346
      %2348 = vrot.lane.b32.xlu0 %v2309, 19
      %v2349 = vpop.permute.xlu0 %2348
      %2350 = vrot.lane.b32.xlu0 %v2310, 19
      %v2351 = vpop.permute.xlu0 %2350
      %2352 = vrot.lane.b32.xlu0 %v2311, 19
      %v2353 = vpop.permute.xlu0 %2352
      %2354 = vrot.lane.b32.xlu0 %v2312, 19
      %v2355 = vpop.permute.xlu0 %2354
      %2356 = vrot.lane.b32.xlu0 %v2313, 19
      %v2357 = vpop.permute.xlu0 %2356
      %2358 = vrot.lane.b32.xlu0 %v2314, 19
      %v2359 = vpop.permute.xlu0 %2358
      %2360 = vrot.lane.b32.xlu0 %v2315, 19
      %v2361 = vpop.permute.xlu0 %2360
      %v2362 = vsel %vm2316, %v2339, %v2341
      %v2363 = vsel %vm2316, %v2341, %v2343
      %v2364 = vsel %vm2316, %v2345, %v2347
      %v2365 = vsel %vm2316, %v2347, %v2349
      %v2366 = vsel %vm2316, %v2351, %v2353
      %v2367 = vsel %vm2316, %v2353, %v2355
      %v2368 = vsel %vm2316, %v2357, %v2359
      %v2369 = vsel %vm2316, %v2359, %v2361
      %vm2382 = vcmask 1047704
      %2383 = vst.msk [vmem:[#allocation2] sm:$0xff] %vm2382, %v2339
      %2384 = vst [vmem:[#allocation2 + $0x8] sm:$0xff] %v2362
      %vm2385 = vcmask 416768
      %2386 = vst.msk [vmem:[#allocation2 + $0x10] sm:$0xff] %vm2385, %v2363
      %2387 = vst.msk [vmem:[#allocation2 + $0x18] sm:$0xff] %vm2382, %v2345
      %2388 = vst [vmem:[#allocation2 + $0x20] sm:$0xff] %v2364
      %2389 = vst.msk [vmem:[#allocation2 + $0x28] sm:$0xff] %vm2385, %v2365
      %2390 = vst.msk [vmem:[#allocation2 + $0x30] sm:$0xff] %vm2382, %v2351
      %2391 = vst [vmem:[#allocation2 + $0x38] sm:$0xff] %v2366
      %2392 = vst.msk [vmem:[#allocation2 + $0x40] sm:$0xff] %vm2385, %v2367
      %2393 = vst.msk [vmem:[#allocation2 + $0x48] sm:$0xff] %vm2382, %v2357
      %2394 = vst [vmem:[#allocation2 + $0x50] sm:$0xff] %v2368
      %2395 = vst.msk [vmem:[#allocation2 + $0x58] sm:$0xff] %vm2385, %v2369
      %v2396 = vld [vmem:[%s3] sm:$0xff]
      %v2397 = vld [vmem:[%s3 + $0x8] sm:$0xff]
      %v2398 = vld [vmem:[%s3 + $0x10] sm:$0xff]
      %v2399 = vld [vmem:[%s3 + $0x18] sm:$0xff]
      %v2400 = vld [vmem:[#allocation2] sm:$0xff]
      %v2401 = vld [vmem:[#allocation2 + $0x8] sm:$0xff]
      %v2402 = vld [vmem:[#allocation2 + $0x10] sm:$0xff]
      %v2403 = vld [vmem:[#allocation2 + $0x18] sm:$0xff]
      %v2404 = vld [vmem:[#allocation2 + $0x20] sm:$0xff]
      %v2405 = vld [vmem:[#allocation2 + $0x28] sm:$0xff]
      %v2406 = vld [vmem:[#allocation2 + $0x30] sm:$0xff]
      %v2407 = vld [vmem:[#allocation2 + $0x38] sm:$0xff]
      %v2408 = vld [vmem:[#allocation2 + $0x40] sm:$0xff]
      %v2409 = vld [vmem:[#allocation2 + $0x48] sm:$0xff]
      %v2410 = vld [vmem:[#allocation2 + $0x50] sm:$0xff]
      %v2411 = vld [vmem:[#allocation2 + $0x58] sm:$0xff]
      %s2412 = scalar_lea.vmem %s3, 32
      %v2413 = vld [vmem:[%s2412] sm:$0xff]
      %v2414 = vld [vmem:[%s2412 + $0x8] sm:$0xff]
      %v2415 = vld [vmem:[%s2412 + $0x10] sm:$0xff]
      %v2416 = vld [vmem:[%s2412 + $0x18] sm:$0xff]
      %2429 = vrot.lane.b32.xlu0 %v2400, 127
      %v2430 = vpop.permute.xlu0 %2429
      %2431 = vrot.lane.b32.xlu0 %v2401, 127
      %v2432 = vpop.permute.xlu0 %2431
      %2433 = vrot.lane.b32.xlu0 %v2402, 127
      %v2434 = vpop.permute.xlu0 %2433
      %2435 = vrot.lane.b32.xlu0 %v2403, 127
      %v2436 = vpop.permute.xlu0 %2435
      %2437 = vrot.lane.b32.xlu0 %v2404, 127
      %v2438 = vpop.permute.xlu0 %2437
      %2439 = vrot.lane.b32.xlu0 %v2405, 127
      %v2440 = vpop.permute.xlu0 %2439
      %2441 = vrot.lane.b32.xlu0 %v2406, 127
      %v2442 = vpop.permute.xlu0 %2441
      %2443 = vrot.lane.b32.xlu0 %v2407, 127
      %v2444 = vpop.permute.xlu0 %2443
      %2445 = vrot.lane.b32.xlu0 %v2408, 127
      %v2446 = vpop.permute.xlu0 %2445
      %2447 = vrot.lane.b32.xlu0 %v2409, 127
      %v2448 = vpop.permute.xlu0 %2447
      %2449 = vrot.lane.b32.xlu0 %v2410, 127
      %v2450 = vpop.permute.xlu0 %2449
      %2451 = vrot.lane.b32.xlu0 %v2411, 127
      %v2452 = vpop.permute.xlu0 %2451
      %v2453 = vsel %vm245, %v2430, %v2432
      %v2454 = vsel %vm245, %v2432, %v2434
      %v2455 = vsel %vm245, %v2436, %v2438
      %v2456 = vsel %vm245, %v2438, %v2440
      %v2457 = vsel %vm245, %v2442, %v2444
      %v2458 = vsel %vm245, %v2444, %v2446
      %v2459 = vsel %vm245, %v2448, %v2450
      %v2460 = vsel %vm245, %v2450, %v2452
      %vm2473 = vcmask 261120
      %v2475 = vsel %vm2473, %v2413, 0
      %v2478 = vsel %vm2473, %v2414, 0
      %v2481 = vsel %vm2473, %v2415, 0
      %v2484 = vsel %vm2473, %v2416, 0
      %2486 = vmatprep.subr.mxu0 %v2454
      %2487 = vmatpush1.msra.mxu0 %v2453
      %2488 = vmatprep.subr.mxu0 %v2456
      %2489 = vmatpush1.msra.mxu0 %v2455
      %2490 = vmatprep.subr.mxu0 %v2458
      %2491 = vmatpush1.msra.mxu0 %v2457
      %2492 = vmatprep.subr.mxu0 %v2460
      %2493 = vmatpush1.msra.mxu0 %v2459
      %2494 = vmatprep.subr.mxu0 0.0
      %2495 = vmatpush1.msra.mxu0 0.0
      %2496 = vmatprep.subr.mxu0 0.0
      %2497 = vmatpush1.msra.mxu0 0.0
      %2498 = vmatprep.subr.mxu0 0.0
      %2499 = vmatpush1.msra.mxu0 0.0
      %2500 = vmatprep.subr.mxu0 0.0
      %2501 = vmatpush1.msra.mxu0 0.0
      %2502 = vmatprep.subr.mxu0 0.0
      %2503 = vmatpush1.msra.mxu0 0.0
      %2504 = vmatprep.subr.mxu0 0.0
      %2505 = vmatpush1.msra.mxu0 0.0
      %2506 = vmatprep.subr.mxu0 0.0
      %2507 = vmatpush1.msra.mxu0 0.0
      %2508 = vmatprep.subr.mxu0 0.0
      %2509 = vmatpush1.msra.mxu0 0.0
      %2510 = vmatprep.subr.mxu0 0.0
      %2511 = vmatpush1.msra.mxu0 0.0
      %2512 = vmatprep.subr.mxu0 0.0
      %2513 = vmatpush1.msra.mxu0 0.0
      %2514 = vmatprep.subr.mxu0 0.0
      %2515 = vmatpush1.msra.mxu0 0.0
      %2516 = vmatprep.subr.mxu0 0.0
      %2517 = vmatpush1.msra.mxu0 0.0
      %2518 = vmatprep.subr.mxu0 0.0
      %2519 = vmatpush1.msra.mxu0 0.0
      %2520 = vmatprep.subr.mxu0 0.0
      %2521 = vmatpush1.msra.mxu0 0.0
      %2522 = vmatprep.subr.mxu0 0.0
      %2523 = vmatpush1.msra.mxu0 0.0
      %2524 = vmatprep.subr.mxu0 0.0
      %2525 = vmatpush1.msra.mxu0 0.0
      %2526 = vmatprep.subr.mxu0 0.0
      %2527 = vmatpush1.msra.mxu0 0.0
      %2528 = vmatprep.subr.mxu0 0.0
      %2529 = vmatpush1.msra.mxu0 0.0
      %2530 = vmatprep.subr.mxu0 0.0
      %2531 = vmatpush1.msra.mxu0 0.0
      %2532 = vmatprep.subr.mxu0 0.0
      %2533 = vmatpush1.msra.mxu0 0.0
      %2534 = vmatprep.subr.mxu0 0.0
      %2535 = vmatpush1.msra.mxu0 0.0
      %2536 = vmatprep.subr.mxu0 0.0
      %2537 = vmatpush1.msra.mxu0 0.0
      %2538 = vmatprep.subr.mxu0 0.0
      %2539 = vmatpush1.msra.mxu0 0.0
      %2540 = vmatprep.subr.mxu0 0.0
      %2541 = vmatpush1.msra.mxu0 0.0
      %2542 = vmatprep.subr.mxu0 0.0
      %2543 = vmatpush1.msra.mxu0 0.0
      %2544 = vmatprep.subr.mxu0 0.0
      %2545 = vmatpush1.msra.mxu0 0.0
      %2546 = vmatprep.subr.mxu0 0.0
      %2547 = vmatpush1.msra.mxu0 0.0
      %2548 = vmatprep.subr.mxu0 0.0
      %2549 = vmatpush1.msra.mxu0 0.0
      %2550 = vmatprep.mubr.f32.mxu0 0.0
      %2551 = vmatmul.mubr.f32.gmra.mrb[0].mxu0 %v2475
      %v2552 = vpop.f32.mrb[0].mxu0
      %v2553 = vadd.f32 0.0, %v2552
      %v2554 = vpop.f32.mrb[0].mxu0
      %v2555 = vadd.f32 0.0, %v2554
      %2556 = vmatprep.mubr.f32.mxu0 0.0
      %2557 = vmatmul.mubr.f32.gmra.mrb[0].mxu0 %v2478
      %v2558 = vpop.f32.mrb[0].mxu0
      %v2559 = vadd.f32 0.0, %v2558
      %v2560 = vpop.f32.mrb[0].mxu0
      %v2561 = vadd.f32 0.0, %v2560
      %2562 = vmatprep.mubr.f32.mxu0 0.0
      %2563 = vmatmul.mubr.f32.gmra.mrb[0].mxu0 %v2481
      %v2564 = vpop.f32.mrb[0].mxu0
      %v2565 = vadd.f32 0.0, %v2564
      %v2566 = vpop.f32.mrb[0].mxu0
      %v2567 = vadd.f32 0.0, %v2566
      %2568 = vmatprep.mubr.f32.mxu0 0.0
      %2569 = vmatmul.mubr.f32.gmra.mrb[0].mxu0 %v2484
      %v2570 = vpop.f32.mrb[0].mxu0
      %v2571 = vadd.f32 0.0, %v2570
      %v2572 = vpop.f32.mrb[0].mxu0
      %v2573 = vadd.f32 0.0, %v2572
      %2574 = vdwg.mxu0
      %2575 = vmatprep.subr.mxu0 0.0
      %2576 = vmatpush1.msra.mxu0 %v2434
      %2577 = vmatprep.subr.mxu0 0.0
      %2578 = vmatpush1.msra.mxu0 %v2440
      %2579 = vmatprep.subr.mxu0 0.0
      %2580 = vmatpush1.msra.mxu0 %v2446
      %2581 = vmatprep.subr.mxu0 0.0
      %2582 = vmatpush1.msra.mxu0 %v2452
      %2583 = vmatprep.subr.mxu0 0.0
      %2584 = vmatpush1.msra.mxu0 0.0
      %2585 = vmatprep.subr.mxu0 0.0
      %2586 = vmatpush1.msra.mxu0 0.0
      %2587 = vmatprep.subr.mxu0 0.0
      %2588 = vmatpush1.msra.mxu0 0.0
      %2589 = vmatprep.subr.mxu0 0.0
      %2590 = vmatpush1.msra.mxu0 0.0
      %2591 = vmatprep.subr.mxu0 0.0
      %2592 = vmatpush1.msra.mxu0 0.0
      %2593 = vmatprep.subr.mxu0 0.0
      %2594 = vmatpush1.msra.mxu0 0.0
      %2595 = vmatprep.subr.mxu0 0.0
      %2596 = vmatpush1.msra.mxu0 0.0
      %2597 = vmatprep.subr.mxu0 0.0
      %2598 = vmatpush1.msra.mxu0 0.0
      %2599 = vmatprep.subr.mxu0 0.0
      %2600 = vmatpush1.msra.mxu0 0.0
      %2601 = vmatprep.subr.mxu0 0.0
      %2602 = vmatpush1.msra.mxu0 0.0
      %2603 = vmatprep.subr.mxu0 0.0
      %2604 = vmatpush1.msra.mxu0 0.0
      %2605 = vmatprep.subr.mxu0 0.0
      %2606 = vmatpush1.msra.mxu0 0.0
      %2607 = vmatprep.subr.mxu0 0.0
      %2608 = vmatpush1.msra.mxu0 0.0
      %2609 = vmatprep.subr.mxu0 0.0
      %2610 = vmatpush1.msra.mxu0 0.0
      %2611 = vmatprep.subr.mxu0 0.0
      %2612 = vmatpush1.msra.mxu0 0.0
      %2613 = vmatprep.subr.mxu0 0.0
      %2614 = vmatpush1.msra.mxu0 0.0
      %2615 = vmatprep.subr.mxu0 0.0
      %2616 = vmatpush1.msra.mxu0 0.0
      %2617 = vmatprep.subr.mxu0 0.0
      %2618 = vmatpush1.msra.mxu0 0.0
      %2619 = vmatprep.subr.mxu0 0.0
      %2620 = vmatpush1.msra.mxu0 0.0
      %2621 = vmatprep.subr.mxu0 0.0
      %2622 = vmatpush1.msra.mxu0 0.0
      %2623 = vmatprep.subr.mxu0 0.0
      %2624 = vmatpush1.msra.mxu0 0.0
      %2625 = vmatprep.subr.mxu0 0.0
      %2626 = vmatpush1.msra.mxu0 0.0
      %2627 = vmatprep.subr.mxu0 0.0
      %2628 = vmatpush1.msra.mxu0 0.0
      %2629 = vmatprep.subr.mxu0 0.0
      %2630 = vmatpush1.msra.mxu0 0.0
      %2631 = vmatprep.subr.mxu0 0.0
      %2632 = vmatpush1.msra.mxu0 0.0
      %2633 = vmatprep.subr.mxu0 0.0
      %2634 = vmatpush1.msra.mxu0 0.0
      %2635 = vmatprep.subr.mxu0 0.0
      %2636 = vmatpush1.msra.mxu0 0.0
      %2637 = vmatprep.subr.mxu0 0.0
      %2638 = vmatpush1.msra.mxu0 0.0
      %2639 = vmatprep.mubr.f32.mxu0 0.0
      %2640 = vmatmul.mubr.f32.gmra.mrb[0].mxu0 %v2475
      %v2641 = vpop.f32.mrb[0].mxu0
      %v2642 = vadd.f32 0.0, %v2641
      %v2643 = vpop.f32.mrb[0].mxu0
      %2644 = vmatprep.mubr.f32.mxu0 0.0
      %2645 = vmatmul.mubr.f32.gmra.mrb[0].mxu0 %v2478
      %v2646 = vpop.f32.mrb[0].mxu0
      %v2647 = vadd.f32 0.0, %v2646
      %v2648 = vpop.f32.mrb[0].mxu0
      %2649 = vmatprep.mubr.f32.mxu0 0.0
      %2650 = vmatmul.mubr.f32.gmra.mrb[0].mxu0 %v2481
      %v2651 = vpop.f32.mrb[0].mxu0
      %v2652 = vadd.f32 0.0, %v2651
      %v2653 = vpop.f32.mrb[0].mxu0
      %2654 = vmatprep.mubr.f32.mxu0 0.0
      %2655 = vmatmul.mubr.f32.gmra.mrb[0].mxu0 %v2484
      %v2656 = vpop.f32.mrb[0].mxu0
      %v2657 = vadd.f32 0.0, %v2656
      %v2658 = vpop.f32.mrb[0].mxu0
      %2659 = vdwg.mxu0
      %v2661 = vsel %vm2473, %v2396, 0
      %v2664 = vsel %vm2473, %v2397, 0
      %v2667 = vsel %vm2473, %v2398, 0
      %v2670 = vsel %vm2473, %v2399, 0
      %2672 = vmatprep.subr.mxu0 %v2401
      %2673 = vmatpush1.msra.mxu0 %v2400
      %2674 = vmatprep.subr.mxu0 %v2404
      %2675 = vmatpush1.msra.mxu0 %v2403
      %2676 = vmatprep.subr.mxu0 %v2407
      %2677 = vmatpush1.msra.mxu0 %v2406
      %2678 = vmatprep.subr.mxu0 %v2410
      %2679 = vmatpush1.msra.mxu0 %v2409
      %2680 = vmatprep.subr.mxu0 0.0
      %2681 = vmatpush1.msra.mxu0 0.0
      %2682 = vmatprep.subr.mxu0 0.0
      %2683 = vmatpush1.msra.mxu0 0.0
      %2684 = vmatprep.subr.mxu0 0.0
      %2685 = vmatpush1.msra.mxu0 0.0
      %2686 = vmatprep.subr.mxu0 0.0
      %2687 = vmatpush1.msra.mxu0 0.0
      %2688 = vmatprep.subr.mxu0 0.0
      %2689 = vmatpush1.msra.mxu0 0.0
      %2690 = vmatprep.subr.mxu0 0.0
      %2691 = vmatpush1.msra.mxu0 0.0
      %2692 = vmatprep.subr.mxu0 0.0
      %2693 = vmatpush1.msra.mxu0 0.0
      %2694 = vmatprep.subr.mxu0 0.0
      %2695 = vmatpush1.msra.mxu0 0.0
      %2696 = vmatprep.subr.mxu0 0.0
      %2697 = vmatpush1.msra.mxu0 0.0
      %2698 = vmatprep.subr.mxu0 0.0
      %2699 = vmatpush1.msra.mxu0 0.0
      %2700 = vmatprep.subr.mxu0 0.0
      %2701 = vmatpush1.msra.mxu0 0.0
      %2702 = vmatprep.subr.mxu0 0.0
      %2703 = vmatpush1.msra.mxu0 0.0
      %2704 = vmatprep.subr.mxu0 0.0
      %2705 = vmatpush1.msra.mxu0 0.0
      %2706 = vmatprep.subr.mxu0 0.0
      %2707 = vmatpush1.msra.mxu0 0.0
      %2708 = vmatprep.subr.mxu0 0.0
      %2709 = vmatpush1.msra.mxu0 0.0
      %2710 = vmatprep.subr.mxu0 0.0
      %2711 = vmatpush1.msra.mxu0 0.0
      %2712 = vmatprep.subr.mxu0 0.0
      %2713 = vmatpush1.msra.mxu0 0.0
      %2714 = vmatprep.subr.mxu0 0.0
      %2715 = vmatpush1.msra.mxu0 0.0
      %2716 = vmatprep.subr.mxu0 0.0
      %2717 = vmatpush1.msra.mxu0 0.0
      %2718 = vmatprep.subr.mxu0 0.0
      %2719 = vmatpush1.msra.mxu0 0.0
      %2720 = vmatprep.subr.mxu0 0.0
      %2721 = vmatpush1.msra.mxu0 0.0
      %2722 = vmatprep.subr.mxu0 0.0
      %2723 = vmatpush1.msra.mxu0 0.0
      %2724 = vmatprep.subr.mxu0 0.0
      %2725 = vmatpush1.msra.mxu0 0.0
      %2726 = vmatprep.subr.mxu0 0.0
      %2727 = vmatpush1.msra.mxu0 0.0
      %2728 = vmatprep.subr.mxu0 0.0
      %2729 = vmatpush1.msra.mxu0 0.0
      %2730 = vmatprep.subr.mxu0 0.0
      %2731 = vmatpush1.msra.mxu0 0.0
      %2732 = vmatprep.subr.mxu0 0.0
      %2733 = vmatpush1.msra.mxu0 0.0
      %2734 = vmatprep.subr.mxu0 0.0
      %2735 = vmatpush1.msra.mxu0 0.0
      %2736 = vmatprep.mubr.f32.mxu0 0.0
      %2737 = vmatmul.mubr.f32.gmra.mrb[0].mxu0 %v2661
      %v2738 = vpop.f32.mrb[0].mxu0
      %v2739 = vadd.f32 %v2553, %v2738
      %v2740 = vpop.f32.mrb[0].mxu0
      %v2741 = vadd.f32 %v2555, %v2740
      %2742 = vmatprep.mubr.f32.mxu0 0.0
      %2743 = vmatmul.mubr.f32.gmra.mrb[0].mxu0 %v2664
      %v2744 = vpop.f32.mrb[0].mxu0
      %v2745 = vadd.f32 %v2559, %v2744
      %v2746 = vpop.f32.mrb[0].mxu0
      %v2747 = vadd.f32 %v2561, %v2746
      %2748 = vmatprep.mubr.f32.mxu0 0.0
      %2749 = vmatmul.mubr.f32.gmra.mrb[0].mxu0 %v2667
      %v2750 = vpop.f32.mrb[0].mxu0
      %v2751 = vadd.f32 %v2565, %v2750
      %v2752 = vpop.f32.mrb[0].mxu0
      %v2753 = vadd.f32 %v2567, %v2752
      %2754 = vmatprep.mubr.f32.mxu0 0.0
      %2755 = vmatmul.mubr.f32.gmra.mrb[0].mxu0 %v2670
      %v2756 = vpop.f32.mrb[0].mxu0
      %v2757 = vadd.f32 %v2571, %v2756
      %v2758 = vpop.f32.mrb[0].mxu0
      %v2759 = vadd.f32 %v2573, %v2758
      %2760 = vdwg.mxu0
      %2761 = vmatprep.subr.mxu0 0.0
      %2762 = vmatpush1.msra.mxu0 %v2402
      %2763 = vmatprep.subr.mxu0 0.0
      %2764 = vmatpush1.msra.mxu0 %v2405
      %2765 = vmatprep.subr.mxu0 0.0
      %2766 = vmatpush1.msra.mxu0 %v2408
      %2767 = vmatprep.subr.mxu0 0.0
      %2768 = vmatpush1.msra.mxu0 %v2411
      %2769 = vmatprep.subr.mxu0 0.0
      %2770 = vmatpush1.msra.mxu0 0.0
      %2771 = vmatprep.subr.mxu0 0.0
      %2772 = vmatpush1.msra.mxu0 0.0
      %2773 = vmatprep.subr.mxu0 0.0
      %2774 = vmatpush1.msra.mxu0 0.0
      %2775 = vmatprep.subr.mxu0 0.0
      %2776 = vmatpush1.msra.mxu0 0.0
      %2777 = vmatprep.subr.mxu0 0.0
      %2778 = vmatpush1.msra.mxu0 0.0
      %2779 = vmatprep.subr.mxu0 0.0
      %2780 = vmatpush1.msra.mxu0 0.0
      %2781 = vmatprep.subr.mxu0 0.0
      %2782 = vmatpush1.msra.mxu0 0.0
      %2783 = vmatprep.subr.mxu0 0.0
      %2784 = vmatpush1.msra.mxu0 0.0
      %2785 = vmatprep.subr.mxu0 0.0
      %2786 = vmatpush1.msra.mxu0 0.0
      %2787 = vmatprep.subr.mxu0 0.0
      %2788 = vmatpush1.msra.mxu0 0.0
      %2789 = vmatprep.subr.mxu0 0.0
      %2790 = vmatpush1.msra.mxu0 0.0
      %2791 = vmatprep.subr.mxu0 0.0
      %2792 = vmatpush1.msra.mxu0 0.0
      %2793 = vmatprep.subr.mxu0 0.0
      %2794 = vmatpush1.msra.mxu0 0.0
      %2795 = vmatprep.subr.mxu0 0.0
      %2796 = vmatpush1.msra.mxu0 0.0
      %2797 = vmatprep.subr.mxu0 0.0
      %2798 = vmatpush1.msra.mxu0 0.0
      %2799 = vmatprep.subr.mxu0 0.0
      %2800 = vmatpush1.msra.mxu0 0.0
      %2801 = vmatprep.subr.mxu0 0.0
      %2802 = vmatpush1.msra.mxu0 0.0
      %2803 = vmatprep.subr.mxu0 0.0
      %2804 = vmatpush1.msra.mxu0 0.0
      %2805 = vmatprep.subr.mxu0 0.0
      %2806 = vmatpush1.msra.mxu0 0.0
      %2807 = vmatprep.subr.mxu0 0.0
      %2808 = vmatpush1.msra.mxu0 0.0
      %2809 = vmatprep.subr.mxu0 0.0
      %2810 = vmatpush1.msra.mxu0 0.0
      %2811 = vmatprep.subr.mxu0 0.0
      %2812 = vmatpush1.msra.mxu0 0.0
      %2813 = vmatprep.subr.mxu0 0.0
      %2814 = vmatpush1.msra.mxu0 0.0
      %2815 = vmatprep.subr.mxu0 0.0
      %2816 = vmatpush1.msra.mxu0 0.0
      %2817 = vmatprep.subr.mxu0 0.0
      %2818 = vmatpush1.msra.mxu0 0.0
      %2819 = vmatprep.subr.mxu0 0.0
      %2820 = vmatpush1.msra.mxu0 0.0
      %2821 = vmatprep.subr.mxu0 0.0
      %2822 = vmatpush1.msra.mxu0 0.0
      %2823 = vmatprep.subr.mxu0 0.0
      %2824 = vmatpush1.msra.mxu0 0.0
      %2825 = vmatprep.mubr.f32.mxu0 0.0
      %2826 = vmatmul.mubr.f32.gmra.mrb[0].mxu0 %v2661
      %v2827 = vpop.f32.mrb[0].mxu0
      %v2828 = vadd.f32 %v2642, %v2827
      %v2829 = vpop.f32.mrb[0].mxu0
      %2830 = vmatprep.mubr.f32.mxu0 0.0
      %2831 = vmatmul.mubr.f32.gmra.mrb[0].mxu0 %v2664
      %v2832 = vpop.f32.mrb[0].mxu0
      %v2833 = vadd.f32 %v2647, %v2832
      %v2834 = vpop.f32.mrb[0].mxu0
      %2835 = vmatprep.mubr.f32.mxu0 0.0
      %2836 = vmatmul.mubr.f32.gmra.mrb[0].mxu0 %v2667
      %v2837 = vpop.f32.mrb[0].mxu0
      %v2838 = vadd.f32 %v2652, %v2837
      %v2839 = vpop.f32.mrb[0].mxu0
      %2840 = vmatprep.mubr.f32.mxu0 0.0
      %2841 = vmatmul.mubr.f32.gmra.mrb[0].mxu0 %v2670
      %v2842 = vpop.f32.mrb[0].mxu0
      %v2843 = vadd.f32 %v2657, %v2842
      %v2844 = vpop.f32.mrb[0].mxu0
      %2845 = vdwg.mxu0
      %s2846 = scalar_lea.vmem %s3, 64
      %v2847 = vld [vmem:[%s2846] sm:$0xff]
      %v2848 = vld [vmem:[%s2846 + $0x8] sm:$0xff]
      %v2849 = vld [vmem:[%s2846 + $0x10] sm:$0xff]
      %v2850 = vld [vmem:[%s2846 + $0x18] sm:$0xff]
      %2851 = vrot.lane.b32.xlu0 %v2400, 126
      %v2852 = vpop.permute.xlu0 %2851
      %2853 = vrot.lane.b32.xlu0 %v2401, 126
      %v2854 = vpop.permute.xlu0 %2853
      %2855 = vrot.lane.b32.xlu0 %v2402, 126
      %v2856 = vpop.permute.xlu0 %2855
      %2857 = vrot.lane.b32.xlu0 %v2403, 126
      %v2858 = vpop.permute.xlu0 %2857
      %2859 = vrot.lane.b32.xlu0 %v2404, 126
      %v2860 = vpop.permute.xlu0 %2859
      %2861 = vrot.lane.b32.xlu0 %v2405, 126
      %v2862 = vpop.permute.xlu0 %2861
      %2863 = vrot.lane.b32.xlu0 %v2406, 126
      %v2864 = vpop.permute.xlu0 %2863
      %2865 = vrot.lane.b32.xlu0 %v2407, 126
      %v2866 = vpop.permute.xlu0 %2865
      %2867 = vrot.lane.b32.xlu0 %v2408, 126
      %v2868 = vpop.permute.xlu0 %2867
      %2869 = vrot.lane.b32.xlu0 %v2409, 126
      %v2870 = vpop.permute.xlu0 %2869
      %2871 = vrot.lane.b32.xlu0 %v2410, 126
      %v2872 = vpop.permute.xlu0 %2871
      %2873 = vrot.lane.b32.xlu0 %v2411, 126
      %v2874 = vpop.permute.xlu0 %2873
      %v2875 = vsel %vm650, %v2852, %v2854
      %v2876 = vsel %vm650, %v2854, %v2856
      %v2877 = vsel %vm650, %v2858, %v2860
      %v2878 = vsel %vm650, %v2860, %v2862
      %v2879 = vsel %vm650, %v2864, %v2866
      %v2880 = vsel %vm650, %v2866, %v2868
      %v2881 = vsel %vm650, %v2870, %v2872
      %v2882 = vsel %vm650, %v2872, %v2874
      %v2896 = vsel %vm2473, %v2847, 0
      %v2899 = vsel %vm2473, %v2848, 0
      %v2902 = vsel %vm2473, %v2849, 0
      %v2905 = vsel %vm2473, %v2850, 0
      %2907 = vmatprep.subr.mxu0 %v2876
      %2908 = vmatpush1.msra.mxu0 %v2875
      %2909 = vmatprep.subr.mxu0 %v2878
      %2910 = vmatpush1.msra.mxu0 %v2877
      %2911 = vmatprep.subr.mxu0 %v2880
      %2912 = vmatpush1.msra.mxu0 %v2879
      %2913 = vmatprep.subr.mxu0 %v2882
      %2914 = vmatpush1.msra.mxu0 %v2881
      %2915 = vmatprep.subr.mxu0 0.0
      %2916 = vmatpush1.msra.mxu0 0.0
      %2917 = vmatprep.subr.mxu0 0.0
      %2918 = vmatpush1.msra.mxu0 0.0
      %2919 = vmatprep.subr.mxu0 0.0
      %2920 = vmatpush1.msra.mxu0 0.0
      %2921 = vmatprep.subr.mxu0 0.0
      %2922 = vmatpush1.msra.mxu0 0.0
      %2923 = vmatprep.subr.mxu0 0.0
      %2924 = vmatpush1.msra.mxu0 0.0
      %2925 = vmatprep.subr.mxu0 0.0
      %2926 = vmatpush1.msra.mxu0 0.0
      %2927 = vmatprep.subr.mxu0 0.0
      %2928 = vmatpush1.msra.mxu0 0.0
      %2929 = vmatprep.subr.mxu0 0.0
      %2930 = vmatpush1.msra.mxu0 0.0
      %2931 = vmatprep.subr.mxu0 0.0
      %2932 = vmatpush1.msra.mxu0 0.0
      %2933 = vmatprep.subr.mxu0 0.0
      %2934 = vmatpush1.msra.mxu0 0.0
      %2935 = vmatprep.subr.mxu0 0.0
      %2936 = vmatpush1.msra.mxu0 0.0
      %2937 = vmatprep.subr.mxu0 0.0
      %2938 = vmatpush1.msra.mxu0 0.0
      %2939 = vmatprep.subr.mxu0 0.0
      %2940 = vmatpush1.msra.mxu0 0.0
      %2941 = vmatprep.subr.mxu0 0.0
      %2942 = vmatpush1.msra.mxu0 0.0
      %2943 = vmatprep.subr.mxu0 0.0
      %2944 = vmatpush1.msra.mxu0 0.0
      %2945 = vmatprep.subr.mxu0 0.0
      %2946 = vmatpush1.msra.mxu0 0.0
      %2947 = vmatprep.subr.mxu0 0.0
      %2948 = vmatpush1.msra.mxu0 0.0
      %2949 = vmatprep.subr.mxu0 0.0
      %2950 = vmatpush1.msra.mxu0 0.0
      %2951 = vmatprep.subr.mxu0 0.0
      %2952 = vmatpush1.msra.mxu0 0.0
      %2953 = vmatprep.subr.mxu0 0.0
      %2954 = vmatpush1.msra.mxu0 0.0
      %2955 = vmatprep.subr.mxu0 0.0
      %2956 = vmatpush1.msra.mxu0 0.0
      %2957 = vmatprep.subr.mxu0 0.0
      %2958 = vmatpush1.msra.mxu0 0.0
      %2959 = vmatprep.subr.mxu0 0.0
      %2960 = vmatpush1.msra.mxu0 0.0
      %2961 = vmatprep.subr.mxu0 0.0
      %2962 = vmatpush1.msra.mxu0 0.0
      %2963 = vmatprep.subr.mxu0 0.0
      %2964 = vmatpush1.msra.mxu0 0.0
      %2965 = vmatprep.subr.mxu0 0.0
      %2966 = vmatpush1.msra.mxu0 0.0
      %2967 = vmatprep.subr.mxu0 0.0
      %2968 = vmatpush1.msra.mxu0 0.0
      %2969 = vmatprep.subr.mxu0 0.0
      %2970 = vmatpush1.msra.mxu0 0.0
      %2971 = vmatprep.mubr.f32.mxu0 0.0
      %2972 = vmatmul.mubr.f32.gmra.mrb[0].mxu0 %v2896
      %v2973 = vpop.f32.mrb[0].mxu0
      %v2974 = vadd.f32 0.0, %v2973
      %v2975 = vpop.f32.mrb[0].mxu0
      %v2976 = vadd.f32 0.0, %v2975
      %2977 = vmatprep.mubr.f32.mxu0 0.0
      %2978 = vmatmul.mubr.f32.gmra.mrb[0].mxu0 %v2899
      %v2979 = vpop.f32.mrb[0].mxu0
      %v2980 = vadd.f32 0.0, %v2979
      %v2981 = vpop.f32.mrb[0].mxu0
      %v2982 = vadd.f32 0.0, %v2981
      %2983 = vmatprep.mubr.f32.mxu0 0.0
      %2984 = vmatmul.mubr.f32.gmra.mrb[0].mxu0 %v2902
      %v2985 = vpop.f32.mrb[0].mxu0
      %v2986 = vadd.f32 0.0, %v2985
      %v2987 = vpop.f32.mrb[0].mxu0
      %v2988 = vadd.f32 0.0, %v2987
      %2989 = vmatprep.mubr.f32.mxu0 0.0
      %2990 = vmatmul.mubr.f32.gmra.mrb[0].mxu0 %v2905
      %v2991 = vpop.f32.mrb[0].mxu0
      %v2992 = vadd.f32 0.0, %v2991
      %v2993 = vpop.f32.mrb[0].mxu0
      %v2994 = vadd.f32 0.0, %v2993
      %2995 = vdwg.mxu0
      %2996 = vmatprep.subr.mxu0 0.0
      %2997 = vmatpush1.msra.mxu0 %v2856
      %2998 = vmatprep.subr.mxu0 0.0
      %2999 = vmatpush1.msra.mxu0 %v2862
      %3000 = vmatprep.subr.mxu0 0.0
      %3001 = vmatpush1.msra.mxu0 %v2868
      %3002 = vmatprep.subr.mxu0 0.0
      %3003 = vmatpush1.msra.mxu0 %v2874
      %3004 = vmatprep.subr.mxu0 0.0
      %3005 = vmatpush1.msra.mxu0 0.0
      %3006 = vmatprep.subr.mxu0 0.0
      %3007 = vmatpush1.msra.mxu0 0.0
      %3008 = vmatprep.subr.mxu0 0.0
      %3009 = vmatpush1.msra.mxu0 0.0
      %3010 = vmatprep.subr.mxu0 0.0
      %3011 = vmatpush1.msra.mxu0 0.0
      %3012 = vmatprep.subr.mxu0 0.0
      %3013 = vmatpush1.msra.mxu0 0.0
      %3014 = vmatprep.subr.mxu0 0.0
      %3015 = vmatpush1.msra.mxu0 0.0
      %3016 = vmatprep.subr.mxu0 0.0
      %3017 = vmatpush1.msra.mxu0 0.0
      %3018 = vmatprep.subr.mxu0 0.0
      %3019 = vmatpush1.msra.mxu0 0.0
      %3020 = vmatprep.subr.mxu0 0.0
      %3021 = vmatpush1.msra.mxu0 0.0
      %3022 = vmatprep.subr.mxu0 0.0
      %3023 = vmatpush1.msra.mxu0 0.0
      %3024 = vmatprep.subr.mxu0 0.0
      %3025 = vmatpush1.msra.mxu0 0.0
      %3026 = vmatprep.subr.mxu0 0.0
      %3027 = vmatpush1.msra.mxu0 0.0
      %3028 = vmatprep.subr.mxu0 0.0
      %3029 = vmatpush1.msra.mxu0 0.0
      %3030 = vmatprep.subr.mxu0 0.0
      %3031 = vmatpush1.msra.mxu0 0.0
      %3032 = vmatprep.subr.mxu0 0.0
      %3033 = vmatpush1.msra.mxu0 0.0
      %3034 = vmatprep.subr.mxu0 0.0
      %3035 = vmatpush1.msra.mxu0 0.0
      %3036 = vmatprep.subr.mxu0 0.0
      %3037 = vmatpush1.msra.mxu0 0.0
      %3038 = vmatprep.subr.mxu0 0.0
      %3039 = vmatpush1.msra.mxu0 0.0
      %3040 = vmatprep.subr.mxu0 0.0
      %3041 = vmatpush1.msra.mxu0 0.0
      %3042 = vmatprep.subr.mxu0 0.0
      %3043 = vmatpush1.msra.mxu0 0.0
      %3044 = vmatprep.subr.mxu0 0.0
      %3045 = vmatpush1.msra.mxu0 0.0
      %3046 = vmatprep.subr.mxu0 0.0
      %3047 = vmatpush1.msra.mxu0 0.0
      %3048 = vmatprep.subr.mxu0 0.0
      %3049 = vmatpush1.msra.mxu0 0.0
      %3050 = vmatprep.subr.mxu0 0.0
      %3051 = vmatpush1.msra.mxu0 0.0
      %3052 = vmatprep.subr.mxu0 0.0
      %3053 = vmatpush1.msra.mxu0 0.0
      %3054 = vmatprep.subr.mxu0 0.0
      %3055 = vmatpush1.msra.mxu0 0.0
      %3056 = vmatprep.subr.mxu0 0.0
      %3057 = vmatpush1.msra.mxu0 0.0
      %3058 = vmatprep.subr.mxu0 0.0
      %3059 = vmatpush1.msra.mxu0 0.0
      %3060 = vmatprep.mubr.f32.mxu0 0.0
      %3061 = vmatmul.mubr.f32.gmra.mrb[0].mxu0 %v2896
      %v3062 = vpop.f32.mrb[0].mxu0
      %v3063 = vadd.f32 0.0, %v3062
      %v3064 = vpop.f32.mrb[0].mxu0
      %3065 = vmatprep.mubr.f32.mxu0 0.0
      %3066 = vmatmul.mubr.f32.gmra.mrb[0].mxu0 %v2899
      %v3067 = vpop.f32.mrb[0].mxu0
      %v3068 = vadd.f32 0.0, %v3067
      %v3069 = vpop.f32.mrb[0].mxu0
      %3070 = vmatprep.mubr.f32.mxu0 0.0
      %3071 = vmatmul.mubr.f32.gmra.mrb[0].mxu0 %v2902
      %v3072 = vpop.f32.mrb[0].mxu0
      %v3073 = vadd.f32 0.0, %v3072
      %v3074 = vpop.f32.mrb[0].mxu0
      %3075 = vmatprep.mubr.f32.mxu0 0.0
      %3076 = vmatmul.mubr.f32.gmra.mrb[0].mxu0 %v2905
      %v3077 = vpop.f32.mrb[0].mxu0
      %v3078 = vadd.f32 0.0, %v3077
      %v3079 = vpop.f32.mrb[0].mxu0
      %3080 = vdwg.mxu0
      %v3081 = vadd.f32 %v2739, %v2974
      %v3082 = vadd.f32 %v2741, %v2976
      %v3083 = vadd.f32 %v2828, %v3063
      %v3084 = vadd.f32 %v2745, %v2980
      %v3085 = vadd.f32 %v2747, %v2982
      %v3086 = vadd.f32 %v2833, %v3068
      %v3087 = vadd.f32 %v2751, %v2986
      %v3088 = vadd.f32 %v2753, %v2988
      %v3089 = vadd.f32 %v2838, %v3073
      %v3090 = vadd.f32 %v2757, %v2992
      %v3091 = vadd.f32 %v2759, %v2994
      %v3092 = vadd.f32 %v2843, %v3078
      %s3093 = scalar_lea.vmem %s3, 96
      %v3094 = vld [vmem:[%s3093] sm:$0xff]
      %v3095 = vld [vmem:[%s3093 + $0x8] sm:$0xff]
      %v3096 = vld [vmem:[%s3093 + $0x10] sm:$0xff]
      %v3097 = vld [vmem:[%s3093 + $0x18] sm:$0xff]
      %3098 = vrot.lane.b32.xlu0 %v2400, 110
      %v3099 = vpop.permute.xlu0 %3098
      %3100 = vrot.lane.b32.xlu0 %v2401, 110
      %v3101 = vpop.permute.xlu0 %3100
      %3102 = vrot.lane.b32.xlu0 %v2402, 110
      %v3103 = vpop.permute.xlu0 %3102
      %3104 = vrot.lane.b32.xlu0 %v2403, 110
      %v3105 = vpop.permute.xlu0 %3104
      %3106 = vrot.lane.b32.xlu0 %v2404, 110
      %v3107 = vpop.permute.xlu0 %3106
      %3108 = vrot.lane.b32.xlu0 %v2405, 110
      %v3109 = vpop.permute.xlu0 %3108
      %3110 = vrot.lane.b32.xlu0 %v2406, 110
      %v3111 = vpop.permute.xlu0 %3110
      %3112 = vrot.lane.b32.xlu0 %v2407, 110
      %v3113 = vpop.permute.xlu0 %3112
      %3114 = vrot.lane.b32.xlu0 %v2408, 110
      %v3115 = vpop.permute.xlu0 %3114
      %3116 = vrot.lane.b32.xlu0 %v2409, 110
      %v3117 = vpop.permute.xlu0 %3116
      %3118 = vrot.lane.b32.xlu0 %v2410, 110
      %v3119 = vpop.permute.xlu0 %3118
      %3120 = vrot.lane.b32.xlu0 %v2411, 110
      %v3121 = vpop.permute.xlu0 %3120
      %v3122 = vsel %vm873, %v3099, %v3101
      %v3123 = vsel %vm873, %v3101, %v3103
      %v3124 = vsel %vm873, %v3105, %v3107
      %v3125 = vsel %vm873, %v3107, %v3109
      %v3126 = vsel %vm873, %v3111, %v3113
      %v3127 = vsel %vm873, %v3113, %v3115
      %v3128 = vsel %vm873, %v3117, %v3119
      %v3129 = vsel %vm873, %v3119, %v3121
      %v3143 = vsel %vm2473, %v3094, 0
      %v3146 = vsel %vm2473, %v3095, 0
      %v3149 = vsel %vm2473, %v3096, 0
      %v3152 = vsel %vm2473, %v3097, 0
      %3154 = vmatprep.subr.mxu0 %v3123
      %3155 = vmatpush1.msra.mxu0 %v3122
      %3156 = vmatprep.subr.mxu0 %v3125
      %3157 = vmatpush1.msra.mxu0 %v3124
      %3158 = vmatprep.subr.mxu0 %v3127
      %3159 = vmatpush1.msra.mxu0 %v3126
      %3160 = vmatprep.subr.mxu0 %v3129
      %3161 = vmatpush1.msra.mxu0 %v3128
      %3162 = vmatprep.subr.mxu0 0.0
      %3163 = vmatpush1.msra.mxu0 0.0
      %3164 = vmatprep.subr.mxu0 0.0
      %3165 = vmatpush1.msra.mxu0 0.0
      %3166 = vmatprep.subr.mxu0 0.0
      %3167 = vmatpush1.msra.mxu0 0.0
      %3168 = vmatprep.subr.mxu0 0.0
      %3169 = vmatpush1.msra.mxu0 0.0
      %3170 = vmatprep.subr.mxu0 0.0
      %3171 = vmatpush1.msra.mxu0 0.0
      %3172 = vmatprep.subr.mxu0 0.0
      %3173 = vmatpush1.msra.mxu0 0.0
      %3174 = vmatprep.subr.mxu0 0.0
      %3175 = vmatpush1.msra.mxu0 0.0
      %3176 = vmatprep.subr.mxu0 0.0
      %3177 = vmatpush1.msra.mxu0 0.0
      %3178 = vmatprep.subr.mxu0 0.0
      %3179 = vmatpush1.msra.mxu0 0.0
      %3180 = vmatprep.subr.mxu0 0.0
      %3181 = vmatpush1.msra.mxu0 0.0
      %3182 = vmatprep.subr.mxu0 0.0
      %3183 = vmatpush1.msra.mxu0 0.0
      %3184 = vmatprep.subr.mxu0 0.0
      %3185 = vmatpush1.msra.mxu0 0.0
      %3186 = vmatprep.subr.mxu0 0.0
      %3187 = vmatpush1.msra.mxu0 0.0
      %3188 = vmatprep.subr.mxu0 0.0
      %3189 = vmatpush1.msra.mxu0 0.0
      %3190 = vmatprep.subr.mxu0 0.0
      %3191 = vmatpush1.msra.mxu0 0.0
      %3192 = vmatprep.subr.mxu0 0.0
      %3193 = vmatpush1.msra.mxu0 0.0
      %3194 = vmatprep.subr.mxu0 0.0
      %3195 = vmatpush1.msra.mxu0 0.0
      %3196 = vmatprep.subr.mxu0 0.0
      %3197 = vmatpush1.msra.mxu0 0.0
      %3198 = vmatprep.subr.mxu0 0.0
      %3199 = vmatpush1.msra.mxu0 0.0
      %3200 = vmatprep.subr.mxu0 0.0
      %3201 = vmatpush1.msra.mxu0 0.0
      %3202 = vmatprep.subr.mxu0 0.0
      %3203 = vmatpush1.msra.mxu0 0.0
      %3204 = vmatprep.subr.mxu0 0.0
      %3205 = vmatpush1.msra.mxu0 0.0
      %3206 = vmatprep.subr.mxu0 0.0
      %3207 = vmatpush1.msra.mxu0 0.0
      %3208 = vmatprep.subr.mxu0 0.0
      %3209 = vmatpush1.msra.mxu0 0.0
      %3210 = vmatprep.subr.mxu0 0.0
      %3211 = vmatpush1.msra.mxu0 0.0
      %3212 = vmatprep.subr.mxu0 0.0
      %3213 = vmatpush1.msra.mxu0 0.0
      %3214 = vmatprep.subr.mxu0 0.0
      %3215 = vmatpush1.msra.mxu0 0.0
      %3216 = vmatprep.subr.mxu0 0.0
      %3217 = vmatpush1.msra.mxu0 0.0
      %3218 = vmatprep.mubr.f32.mxu0 0.0
      %3219 = vmatmul.mubr.f32.gmra.mrb[0].mxu0 %v3143
      %v3220 = vpop.f32.mrb[0].mxu0
      %v3221 = vadd.f32 0.0, %v3220
      %v3222 = vpop.f32.mrb[0].mxu0
      %v3223 = vadd.f32 0.0, %v3222
      %3224 = vmatprep.mubr.f32.mxu0 0.0
      %3225 = vmatmul.mubr.f32.gmra.mrb[0].mxu0 %v3146
      %v3226 = vpop.f32.mrb[0].mxu0
      %v3227 = vadd.f32 0.0, %v3226
      %v3228 = vpop.f32.mrb[0].mxu0
      %v3229 = vadd.f32 0.0, %v3228
      %3230 = vmatprep.mubr.f32.mxu0 0.0
      %3231 = vmatmul.mubr.f32.gmra.mrb[0].mxu0 %v3149
      %v3232 = vpop.f32.mrb[0].mxu0
      %v3233 = vadd.f32 0.0, %v3232
      %v3234 = vpop.f32.mrb[0].mxu0
      %v3235 = vadd.f32 0.0, %v3234
      %3236 = vmatprep.mubr.f32.mxu0 0.0
      %3237 = vmatmul.mubr.f32.gmra.mrb[0].mxu0 %v3152
      %v3238 = vpop.f32.mrb[0].mxu0
      %v3239 = vadd.f32 0.0, %v3238
      %v3240 = vpop.f32.mrb[0].mxu0
      %v3241 = vadd.f32 0.0, %v3240
      %3242 = vdwg.mxu0
      %3243 = vmatprep.subr.mxu0 0.0
      %3244 = vmatpush1.msra.mxu0 %v3103
      %3245 = vmatprep.subr.mxu0 0.0
      %3246 = vmatpush1.msra.mxu0 %v3109
      %3247 = vmatprep.subr.mxu0 0.0
      %3248 = vmatpush1.msra.mxu0 %v3115
      %3249 = vmatprep.subr.mxu0 0.0
      %3250 = vmatpush1.msra.mxu0 %v3121
      %3251 = vmatprep.subr.mxu0 0.0
      %3252 = vmatpush1.msra.mxu0 0.0
      %3253 = vmatprep.subr.mxu0 0.0
      %3254 = vmatpush1.msra.mxu0 0.0
      %3255 = vmatprep.subr.mxu0 0.0
      %3256 = vmatpush1.msra.mxu0 0.0
      %3257 = vmatprep.subr.mxu0 0.0
      %3258 = vmatpush1.msra.mxu0 0.0
      %3259 = vmatprep.subr.mxu0 0.0
      %3260 = vmatpush1.msra.mxu0 0.0
      %3261 = vmatprep.subr.mxu0 0.0
      %3262 = vmatpush1.msra.mxu0 0.0
      %3263 = vmatprep.subr.mxu0 0.0
      %3264 = vmatpush1.msra.mxu0 0.0
      %3265 = vmatprep.subr.mxu0 0.0
      %3266 = vmatpush1.msra.mxu0 0.0
      %3267 = vmatprep.subr.mxu0 0.0
      %3268 = vmatpush1.msra.mxu0 0.0
      %3269 = vmatprep.subr.mxu0 0.0
      %3270 = vmatpush1.msra.mxu0 0.0
      %3271 = vmatprep.subr.mxu0 0.0
      %3272 = vmatpush1.msra.mxu0 0.0
      %3273 = vmatprep.subr.mxu0 0.0
      %3274 = vmatpush1.msra.mxu0 0.0
      %3275 = vmatprep.subr.mxu0 0.0
      %3276 = vmatpush1.msra.mxu0 0.0
      %3277 = vmatprep.subr.mxu0 0.0
      %3278 = vmatpush1.msra.mxu0 0.0
      %3279 = vmatprep.subr.mxu0 0.0
      %3280 = vmatpush1.msra.mxu0 0.0
      %3281 = vmatprep.subr.mxu0 0.0
      %3282 = vmatpush1.msra.mxu0 0.0
      %3283 = vmatprep.subr.mxu0 0.0
      %3284 = vmatpush1.msra.mxu0 0.0
      %3285 = vmatprep.subr.mxu0 0.0
      %3286 = vmatpush1.msra.mxu0 0.0
      %3287 = vmatprep.subr.mxu0 0.0
      %3288 = vmatpush1.msra.mxu0 0.0
      %3289 = vmatprep.subr.mxu0 0.0
      %3290 = vmatpush1.msra.mxu0 0.0
      %3291 = vmatprep.subr.mxu0 0.0
      %3292 = vmatpush1.msra.mxu0 0.0
      %3293 = vmatprep.subr.mxu0 0.0
      %3294 = vmatpush1.msra.mxu0 0.0
      %3295 = vmatprep.subr.mxu0 0.0
      %3296 = vmatpush1.msra.mxu0 0.0
      %3297 = vmatprep.subr.mxu0 0.0
      %3298 = vmatpush1.msra.mxu0 0.0
      %3299 = vmatprep.subr.mxu0 0.0
      %3300 = vmatpush1.msra.mxu0 0.0
      %3301 = vmatprep.subr.mxu0 0.0
      %3302 = vmatpush1.msra.mxu0 0.0
      %3303 = vmatprep.subr.mxu0 0.0
      %3304 = vmatpush1.msra.mxu0 0.0
      %3305 = vmatprep.subr.mxu0 0.0
      %3306 = vmatpush1.msra.mxu0 0.0
      %3307 = vmatprep.mubr.f32.mxu0 0.0
      %3308 = vmatmul.mubr.f32.gmra.mrb[0].mxu0 %v3143
      %v3309 = vpop.f32.mrb[0].mxu0
      %v3310 = vadd.f32 0.0, %v3309
      %v3311 = vpop.f32.mrb[0].mxu0
      %3312 = vmatprep.mubr.f32.mxu0 0.0
      %3313 = vmatmul.mubr.f32.gmra.mrb[0].mxu0 %v3146
      %v3314 = vpop.f32.mrb[0].mxu0
      %v3315 = vadd.f32 0.0, %v3314
      %v3316 = vpop.f32.mrb[0].mxu0
      %3317 = vmatprep.mubr.f32.mxu0 0.0
      %3318 = vmatmul.mubr.f32.gmra.mrb[0].mxu0 %v3149
      %v3319 = vpop.f32.mrb[0].mxu0
      %v3320 = vadd.f32 0.0, %v3319
      %v3321 = vpop.f32.mrb[0].mxu0
      %3322 = vmatprep.mubr.f32.mxu0 0.0
      %3323 = vmatmul.mubr.f32.gmra.mrb[0].mxu0 %v3152
      %v3324 = vpop.f32.mrb[0].mxu0
      %v3325 = vadd.f32 0.0, %v3324
      %v3326 = vpop.f32.mrb[0].mxu0
      %3327 = vdwg.mxu0
      %v3328 = vadd.f32 %v3081, %v3221
      %v3329 = vadd.f32 %v3082, %v3223
      %v3330 = vadd.f32 %v3083, %v3310
      %v3331 = vadd.f32 %v3084, %v3227
      %v3332 = vadd.f32 %v3085, %v3229
      %v3333 = vadd.f32 %v3086, %v3315
      %v3334 = vadd.f32 %v3087, %v3233
      %v3335 = vadd.f32 %v3088, %v3235
      %v3336 = vadd.f32 %v3089, %v3320
      %v3337 = vadd.f32 %v3090, %v3239
      %v3338 = vadd.f32 %v3091, %v3241
      %v3339 = vadd.f32 %v3092, %v3325
      %s3340 = scalar_lea.vmem %s3, 128
      %v3341 = vld [vmem:[%s3340] sm:$0xff]
      %v3342 = vld [vmem:[%s3340 + $0x8] sm:$0xff]
      %v3343 = vld [vmem:[%s3340 + $0x10] sm:$0xff]
      %v3344 = vld [vmem:[%s3340 + $0x18] sm:$0xff]
      %3345 = vrot.lane.b32.xlu0 %v2400, 109
      %v3346 = vpop.permute.xlu0 %3345
      %3347 = vrot.lane.b32.xlu0 %v2401, 109
      %v3348 = vpop.permute.xlu0 %3347
      %3349 = vrot.lane.b32.xlu0 %v2402, 109
      %v3350 = vpop.permute.xlu0 %3349
      %3351 = vrot.lane.b32.xlu0 %v2403, 109
      %v3352 = vpop.permute.xlu0 %3351
      %3353 = vrot.lane.b32.xlu0 %v2404, 109
      %v3354 = vpop.permute.xlu0 %3353
      %3355 = vrot.lane.b32.xlu0 %v2405, 109
      %v3356 = vpop.permute.xlu0 %3355
      %3357 = vrot.lane.b32.xlu0 %v2406, 109
      %v3358 = vpop.permute.xlu0 %3357
      %3359 = vrot.lane.b32.xlu0 %v2407, 109
      %v3360 = vpop.permute.xlu0 %3359
      %3361 = vrot.lane.b32.xlu0 %v2408, 109
      %v3362 = vpop.permute.xlu0 %3361
      %3363 = vrot.lane.b32.xlu0 %v2409, 109
      %v3364 = vpop.permute.xlu0 %3363
      %3365 = vrot.lane.b32.xlu0 %v2410, 109
      %v3366 = vpop.permute.xlu0 %3365
      %3367 = vrot.lane.b32.xlu0 %v2411, 109
      %v3368 = vpop.permute.xlu0 %3367
      %v3369 = vsel %vm1096, %v3346, %v3348
      %v3370 = vsel %vm1096, %v3348, %v3350
      %v3371 = vsel %vm1096, %v3352, %v3354
      %v3372 = vsel %vm1096, %v3354, %v3356
      %v3373 = vsel %vm1096, %v3358, %v3360
      %v3374 = vsel %vm1096, %v3360, %v3362
      %v3375 = vsel %vm1096, %v3364, %v3366
      %v3376 = vsel %vm1096, %v3366, %v3368
      %v3390 = vsel %vm2473, %v3341, 0
      %v3393 = vsel %vm2473, %v3342, 0
      %v3396 = vsel %vm2473, %v3343, 0
      %v3399 = vsel %vm2473, %v3344, 0
      %3401 = vmatprep.subr.mxu0 %v3370
      %3402 = vmatpush1.msra.mxu0 %v3369
      %3403 = vmatprep.subr.mxu0 %v3372
      %3404 = vmatpush1.msra.mxu0 %v3371
      %3405 = vmatprep.subr.mxu0 %v3374
      %3406 = vmatpush1.msra.mxu0 %v3373
      %3407 = vmatprep.subr.mxu0 %v3376
      %3408 = vmatpush1.msra.mxu0 %v3375
      %3409 = vmatprep.subr.mxu0 0.0
      %3410 = vmatpush1.msra.mxu0 0.0
      %3411 = vmatprep.subr.mxu0 0.0
      %3412 = vmatpush1.msra.mxu0 0.0
      %3413 = vmatprep.subr.mxu0 0.0
      %3414 = vmatpush1.msra.mxu0 0.0
      %3415 = vmatprep.subr.mxu0 0.0
      %3416 = vmatpush1.msra.mxu0 0.0
      %3417 = vmatprep.subr.mxu0 0.0
      %3418 = vmatpush1.msra.mxu0 0.0
      %3419 = vmatprep.subr.mxu0 0.0
      %3420 = vmatpush1.msra.mxu0 0.0
      %3421 = vmatprep.subr.mxu0 0.0
      %3422 = vmatpush1.msra.mxu0 0.0
      %3423 = vmatprep.subr.mxu0 0.0
      %3424 = vmatpush1.msra.mxu0 0.0
      %3425 = vmatprep.subr.mxu0 0.0
      %3426 = vmatpush1.msra.mxu0 0.0
      %3427 = vmatprep.subr.mxu0 0.0
      %3428 = vmatpush1.msra.mxu0 0.0
      %3429 = vmatprep.subr.mxu0 0.0
      %3430 = vmatpush1.msra.mxu0 0.0
      %3431 = vmatprep.subr.mxu0 0.0
      %3432 = vmatpush1.msra.mxu0 0.0
      %3433 = vmatprep.subr.mxu0 0.0
      %3434 = vmatpush1.msra.mxu0 0.0
      %3435 = vmatprep.subr.mxu0 0.0
      %3436 = vmatpush1.msra.mxu0 0.0
      %3437 = vmatprep.subr.mxu0 0.0
      %3438 = vmatpush1.msra.mxu0 0.0
      %3439 = vmatprep.subr.mxu0 0.0
      %3440 = vmatpush1.msra.mxu0 0.0
      %3441 = vmatprep.subr.mxu0 0.0
      %3442 = vmatpush1.msra.mxu0 0.0
      %3443 = vmatprep.subr.mxu0 0.0
      %3444 = vmatpush1.msra.mxu0 0.0
      %3445 = vmatprep.subr.mxu0 0.0
      %3446 = vmatpush1.msra.mxu0 0.0
      %3447 = vmatprep.subr.mxu0 0.0
      %3448 = vmatpush1.msra.mxu0 0.0
      %3449 = vmatprep.subr.mxu0 0.0
      %3450 = vmatpush1.msra.mxu0 0.0
      %3451 = vmatprep.subr.mxu0 0.0
      %3452 = vmatpush1.msra.mxu0 0.0
      %3453 = vmatprep.subr.mxu0 0.0
      %3454 = vmatpush1.msra.mxu0 0.0
      %3455 = vmatprep.subr.mxu0 0.0
      %3456 = vmatpush1.msra.mxu0 0.0
      %3457 = vmatprep.subr.mxu0 0.0
      %3458 = vmatpush1.msra.mxu0 0.0
      %3459 = vmatprep.subr.mxu0 0.0
      %3460 = vmatpush1.msra.mxu0 0.0
      %3461 = vmatprep.subr.mxu0 0.0
      %3462 = vmatpush1.msra.mxu0 0.0
      %3463 = vmatprep.subr.mxu0 0.0
      %3464 = vmatpush1.msra.mxu0 0.0
      %3465 = vmatprep.mubr.f32.mxu0 0.0
      %3466 = vmatmul.mubr.f32.gmra.mrb[0].mxu0 %v3390
      %v3467 = vpop.f32.mrb[0].mxu0
      %v3468 = vadd.f32 0.0, %v3467
      %v3469 = vpop.f32.mrb[0].mxu0
      %v3470 = vadd.f32 0.0, %v3469
      %3471 = vmatprep.mubr.f32.mxu0 0.0
      %3472 = vmatmul.mubr.f32.gmra.mrb[0].mxu0 %v3393
      %v3473 = vpop.f32.mrb[0].mxu0
      %v3474 = vadd.f32 0.0, %v3473
      %v3475 = vpop.f32.mrb[0].mxu0
      %v3476 = vadd.f32 0.0, %v3475
      %3477 = vmatprep.mubr.f32.mxu0 0.0
      %3478 = vmatmul.mubr.f32.gmra.mrb[0].mxu0 %v3396
      %v3479 = vpop.f32.mrb[0].mxu0
      %v3480 = vadd.f32 0.0, %v3479
      %v3481 = vpop.f32.mrb[0].mxu0
      %v3482 = vadd.f32 0.0, %v3481
      %3483 = vmatprep.mubr.f32.mxu0 0.0
      %3484 = vmatmul.mubr.f32.gmra.mrb[0].mxu0 %v3399
      %v3485 = vpop.f32.mrb[0].mxu0
      %v3486 = vadd.f32 0.0, %v3485
      %v3487 = vpop.f32.mrb[0].mxu0
      %v3488 = vadd.f32 0.0, %v3487
      %3489 = vdwg.mxu0
      %3490 = vmatprep.subr.mxu0 0.0
      %3491 = vmatpush1.msra.mxu0 %v3350
      %3492 = vmatprep.subr.mxu0 0.0
      %3493 = vmatpush1.msra.mxu0 %v3356
      %3494 = vmatprep.subr.mxu0 0.0
      %3495 = vmatpush1.msra.mxu0 %v3362
      %3496 = vmatprep.subr.mxu0 0.0
      %3497 = vmatpush1.msra.mxu0 %v3368
      %3498 = vmatprep.subr.mxu0 0.0
      %3499 = vmatpush1.msra.mxu0 0.0
      %3500 = vmatprep.subr.mxu0 0.0
      %3501 = vmatpush1.msra.mxu0 0.0
      %3502 = vmatprep.subr.mxu0 0.0
      %3503 = vmatpush1.msra.mxu0 0.0
      %3504 = vmatprep.subr.mxu0 0.0
      %3505 = vmatpush1.msra.mxu0 0.0
      %3506 = vmatprep.subr.mxu0 0.0
      %3507 = vmatpush1.msra.mxu0 0.0
      %3508 = vmatprep.subr.mxu0 0.0
      %3509 = vmatpush1.msra.mxu0 0.0
      %3510 = vmatprep.subr.mxu0 0.0
      %3511 = vmatpush1.msra.mxu0 0.0
      %3512 = vmatprep.subr.mxu0 0.0
      %3513 = vmatpush1.msra.mxu0 0.0
      %3514 = vmatprep.subr.mxu0 0.0
      %3515 = vmatpush1.msra.mxu0 0.0
      %3516 = vmatprep.subr.mxu0 0.0
      %3517 = vmatpush1.msra.mxu0 0.0
      %3518 = vmatprep.subr.mxu0 0.0
      %3519 = vmatpush1.msra.mxu0 0.0
      %3520 = vmatprep.subr.mxu0 0.0
      %3521 = vmatpush1.msra.mxu0 0.0
      %3522 = vmatprep.subr.mxu0 0.0
      %3523 = vmatpush1.msra.mxu0 0.0
      %3524 = vmatprep.subr.mxu0 0.0
      %3525 = vmatpush1.msra.mxu0 0.0
      %3526 = vmatprep.subr.mxu0 0.0
      %3527 = vmatpush1.msra.mxu0 0.0
      %3528 = vmatprep.subr.mxu0 0.0
      %3529 = vmatpush1.msra.mxu0 0.0
      %3530 = vmatprep.subr.mxu0 0.0
      %3531 = vmatpush1.msra.mxu0 0.0
      %3532 = vmatprep.subr.mxu0 0.0
      %3533 = vmatpush1.msra.mxu0 0.0
      %3534 = vmatprep.subr.mxu0 0.0
      %3535 = vmatpush1.msra.mxu0 0.0
      %3536 = vmatprep.subr.mxu0 0.0
      %3537 = vmatpush1.msra.mxu0 0.0
      %3538 = vmatprep.subr.mxu0 0.0
      %3539 = vmatpush1.msra.mxu0 0.0
      %3540 = vmatprep.subr.mxu0 0.0
      %3541 = vmatpush1.msra.mxu0 0.0
      %3542 = vmatprep.subr.mxu0 0.0
      %3543 = vmatpush1.msra.mxu0 0.0
      %3544 = vmatprep.subr.mxu0 0.0
      %3545 = vmatpush1.msra.mxu0 0.0
      %3546 = vmatprep.subr.mxu0 0.0
      %3547 = vmatpush1.msra.mxu0 0.0
      %3548 = vmatprep.subr.mxu0 0.0
      %3549 = vmatpush1.msra.mxu0 0.0
      %3550 = vmatprep.subr.mxu0 0.0
      %3551 = vmatpush1.msra.mxu0 0.0
      %3552 = vmatprep.subr.mxu0 0.0
      %3553 = vmatpush1.msra.mxu0 0.0
      %3554 = vmatprep.mubr.f32.mxu0 0.0
      %3555 = vmatmul.mubr.f32.gmra.mrb[0].mxu0 %v3390
      %v3556 = vpop.f32.mrb[0].mxu0
      %v3557 = vadd.f32 0.0, %v3556
      %v3558 = vpop.f32.mrb[0].mxu0
      %3559 = vmatprep.mubr.f32.mxu0 0.0
      %3560 = vmatmul.mubr.f32.gmra.mrb[0].mxu0 %v3393
      %v3561 = vpop.f32.mrb[0].mxu0
      %v3562 = vadd.f32 0.0, %v3561
      %v3563 = vpop.f32.mrb[0].mxu0
      %3564 = vmatprep.mubr.f32.mxu0 0.0
      %3565 = vmatmul.mubr.f32.gmra.mrb[0].mxu0 %v3396
      %v3566 = vpop.f32.mrb[0].mxu0
      %v3567 = vadd.f32 0.0, %v3566
      %v3568 = vpop.f32.mrb[0].mxu0
      %3569 = vmatprep.mubr.f32.mxu0 0.0
      %3570 = vmatmul.mubr.f32.gmra.mrb[0].mxu0 %v3399
      %v3571 = vpop.f32.mrb[0].mxu0
      %v3572 = vadd.f32 0.0, %v3571
      %v3573 = vpop.f32.mrb[0].mxu0
      %3574 = vdwg.mxu0
      %v3575 = vadd.f32 %v3328, %v3468
      %v3576 = vadd.f32 %v3329, %v3470
      %v3577 = vadd.f32 %v3330, %v3557
      %v3578 = vadd.f32 %v3331, %v3474
      %v3579 = vadd.f32 %v3332, %v3476
      %v3580 = vadd.f32 %v3333, %v3562
      %v3581 = vadd.f32 %v3334, %v3480
      %v3582 = vadd.f32 %v3335, %v3482
      %v3583 = vadd.f32 %v3336, %v3567
      %v3584 = vadd.f32 %v3337, %v3486
      %v3585 = vadd.f32 %v3338, %v3488
      %v3586 = vadd.f32 %v3339, %v3572
      %s3587 = scalar_lea.vmem %s3, 160
      %v3588 = vld [vmem:[%s3587] sm:$0xff]
      %v3589 = vld [vmem:[%s3587 + $0x8] sm:$0xff]
      %v3590 = vld [vmem:[%s3587 + $0x10] sm:$0xff]
      %v3591 = vld [vmem:[%s3587 + $0x18] sm:$0xff]
      %3592 = vrot.lane.b32.xlu0 %v2400, 108
      %v3593 = vpop.permute.xlu0 %3592
      %3594 = vrot.lane.b32.xlu0 %v2401, 108
      %v3595 = vpop.permute.xlu0 %3594
      %3596 = vrot.lane.b32.xlu0 %v2402, 108
      %v3597 = vpop.permute.xlu0 %3596
      %3598 = vrot.lane.b32.xlu0 %v2403, 108
      %v3599 = vpop.permute.xlu0 %3598
      %3600 = vrot.lane.b32.xlu0 %v2404, 108
      %v3601 = vpop.permute.xlu0 %3600
      %3602 = vrot.lane.b32.xlu0 %v2405, 108
      %v3603 = vpop.permute.xlu0 %3602
      %3604 = vrot.lane.b32.xlu0 %v2406, 108
      %v3605 = vpop.permute.xlu0 %3604
      %3606 = vrot.lane.b32.xlu0 %v2407, 108
      %v3607 = vpop.permute.xlu0 %3606
      %3608 = vrot.lane.b32.xlu0 %v2408, 108
      %v3609 = vpop.permute.xlu0 %3608
      %3610 = vrot.lane.b32.xlu0 %v2409, 108
      %v3611 = vpop.permute.xlu0 %3610
      %3612 = vrot.lane.b32.xlu0 %v2410, 108
      %v3613 = vpop.permute.xlu0 %3612
      %3614 = vrot.lane.b32.xlu0 %v2411, 108
      %v3615 = vpop.permute.xlu0 %3614
      %v3616 = vsel %vm1319, %v3593, %v3595
      %v3617 = vsel %vm1319, %v3595, %v3597
      %v3618 = vsel %vm1319, %v3599, %v3601
      %v3619 = vsel %vm1319, %v3601, %v3603
      %v3620 = vsel %vm1319, %v3605, %v3607
      %v3621 = vsel %vm1319, %v3607, %v3609
      %v3622 = vsel %vm1319, %v3611, %v3613
      %v3623 = vsel %vm1319, %v3613, %v3615
      %v3637 = vsel %vm2473, %v3588, 0
      %v3640 = vsel %vm2473, %v3589, 0
      %v3643 = vsel %vm2473, %v3590, 0
      %v3646 = vsel %vm2473, %v3591, 0
      %3648 = vmatprep.subr.mxu0 %v3617
      %3649 = vmatpush1.msra.mxu0 %v3616
      %3650 = vmatprep.subr.mxu0 %v3619
      %3651 = vmatpush1.msra.mxu0 %v3618
      %3652 = vmatprep.subr.mxu0 %v3621
      %3653 = vmatpush1.msra.mxu0 %v3620
      %3654 = vmatprep.subr.mxu0 %v3623
      %3655 = vmatpush1.msra.mxu0 %v3622
      %3656 = vmatprep.subr.mxu0 0.0
      %3657 = vmatpush1.msra.mxu0 0.0
      %3658 = vmatprep.subr.mxu0 0.0
      %3659 = vmatpush1.msra.mxu0 0.0
      %3660 = vmatprep.subr.mxu0 0.0
      %3661 = vmatpush1.msra.mxu0 0.0
      %3662 = vmatprep.subr.mxu0 0.0
      %3663 = vmatpush1.msra.mxu0 0.0
      %3664 = vmatprep.subr.mxu0 0.0
      %3665 = vmatpush1.msra.mxu0 0.0
      %3666 = vmatprep.subr.mxu0 0.0
      %3667 = vmatpush1.msra.mxu0 0.0
      %3668 = vmatprep.subr.mxu0 0.0
      %3669 = vmatpush1.msra.mxu0 0.0
      %3670 = vmatprep.subr.mxu0 0.0
      %3671 = vmatpush1.msra.mxu0 0.0
      %3672 = vmatprep.subr.mxu0 0.0
      %3673 = vmatpush1.msra.mxu0 0.0
      %3674 = vmatprep.subr.mxu0 0.0
      %3675 = vmatpush1.msra.mxu0 0.0
      %3676 = vmatprep.subr.mxu0 0.0
      %3677 = vmatpush1.msra.mxu0 0.0
      %3678 = vmatprep.subr.mxu0 0.0
      %3679 = vmatpush1.msra.mxu0 0.0
      %3680 = vmatprep.subr.mxu0 0.0
      %3681 = vmatpush1.msra.mxu0 0.0
      %3682 = vmatprep.subr.mxu0 0.0
      %3683 = vmatpush1.msra.mxu0 0.0
      %3684 = vmatprep.subr.mxu0 0.0
      %3685 = vmatpush1.msra.mxu0 0.0
      %3686 = vmatprep.subr.mxu0 0.0
      %3687 = vmatpush1.msra.mxu0 0.0
      %3688 = vmatprep.subr.mxu0 0.0
      %3689 = vmatpush1.msra.mxu0 0.0
      %3690 = vmatprep.subr.mxu0 0.0
      %3691 = vmatpush1.msra.mxu0 0.0
      %3692 = vmatprep.subr.mxu0 0.0
      %3693 = vmatpush1.msra.mxu0 0.0
      %3694 = vmatprep.subr.mxu0 0.0
      %3695 = vmatpush1.msra.mxu0 0.0
      %3696 = vmatprep.subr.mxu0 0.0
      %3697 = vmatpush1.msra.mxu0 0.0
      %3698 = vmatprep.subr.mxu0 0.0
      %3699 = vmatpush1.msra.mxu0 0.0
      %3700 = vmatprep.subr.mxu0 0.0
      %3701 = vmatpush1.msra.mxu0 0.0
      %3702 = vmatprep.subr.mxu0 0.0
      %3703 = vmatpush1.msra.mxu0 0.0
      %3704 = vmatprep.subr.mxu0 0.0
      %3705 = vmatpush1.msra.mxu0 0.0
      %3706 = vmatprep.subr.mxu0 0.0
      %3707 = vmatpush1.msra.mxu0 0.0
      %3708 = vmatprep.subr.mxu0 0.0
      %3709 = vmatpush1.msra.mxu0 0.0
      %3710 = vmatprep.subr.mxu0 0.0
      %3711 = vmatpush1.msra.mxu0 0.0
      %3712 = vmatprep.mubr.f32.mxu0 0.0
      %3713 = vmatmul.mubr.f32.gmra.mrb[0].mxu0 %v3637
      %v3714 = vpop.f32.mrb[0].mxu0
      %v3715 = vadd.f32 0.0, %v3714
      %v3716 = vpop.f32.mrb[0].mxu0
      %v3717 = vadd.f32 0.0, %v3716
      %3718 = vmatprep.mubr.f32.mxu0 0.0
      %3719 = vmatmul.mubr.f32.gmra.mrb[0].mxu0 %v3640
      %v3720 = vpop.f32.mrb[0].mxu0
      %v3721 = vadd.f32 0.0, %v3720
      %v3722 = vpop.f32.mrb[0].mxu0
      %v3723 = vadd.f32 0.0, %v3722
      %3724 = vmatprep.mubr.f32.mxu0 0.0
      %3725 = vmatmul.mubr.f32.gmra.mrb[0].mxu0 %v3643
      %v3726 = vpop.f32.mrb[0].mxu0
      %v3727 = vadd.f32 0.0, %v3726
      %v3728 = vpop.f32.mrb[0].mxu0
      %v3729 = vadd.f32 0.0, %v3728
      %3730 = vmatprep.mubr.f32.mxu0 0.0
      %3731 = vmatmul.mubr.f32.gmra.mrb[0].mxu0 %v3646
      %v3732 = vpop.f32.mrb[0].mxu0
      %v3733 = vadd.f32 0.0, %v3732
      %v3734 = vpop.f32.mrb[0].mxu0
      %v3735 = vadd.f32 0.0, %v3734
      %3736 = vdwg.mxu0
      %3737 = vmatprep.subr.mxu0 0.0
      %3738 = vmatpush1.msra.mxu0 %v3597
      %3739 = vmatprep.subr.mxu0 0.0
      %3740 = vmatpush1.msra.mxu0 %v3603
      %3741 = vmatprep.subr.mxu0 0.0
      %3742 = vmatpush1.msra.mxu0 %v3609
      %3743 = vmatprep.subr.mxu0 0.0
      %3744 = vmatpush1.msra.mxu0 %v3615
      %3745 = vmatprep.subr.mxu0 0.0
      %3746 = vmatpush1.msra.mxu0 0.0
      %3747 = vmatprep.subr.mxu0 0.0
      %3748 = vmatpush1.msra.mxu0 0.0
      %3749 = vmatprep.subr.mxu0 0.0
      %3750 = vmatpush1.msra.mxu0 0.0
      %3751 = vmatprep.subr.mxu0 0.0
      %3752 = vmatpush1.msra.mxu0 0.0
      %3753 = vmatprep.subr.mxu0 0.0
      %3754 = vmatpush1.msra.mxu0 0.0
      %3755 = vmatprep.subr.mxu0 0.0
      %3756 = vmatpush1.msra.mxu0 0.0
      %3757 = vmatprep.subr.mxu0 0.0
      %3758 = vmatpush1.msra.mxu0 0.0
      %3759 = vmatprep.subr.mxu0 0.0
      %3760 = vmatpush1.msra.mxu0 0.0
      %3761 = vmatprep.subr.mxu0 0.0
      %3762 = vmatpush1.msra.mxu0 0.0
      %3763 = vmatprep.subr.mxu0 0.0
      %3764 = vmatpush1.msra.mxu0 0.0
      %3765 = vmatprep.subr.mxu0 0.0
      %3766 = vmatpush1.msra.mxu0 0.0
      %3767 = vmatprep.subr.mxu0 0.0
      %3768 = vmatpush1.msra.mxu0 0.0
      %3769 = vmatprep.subr.mxu0 0.0
      %3770 = vmatpush1.msra.mxu0 0.0
      %3771 = vmatprep.subr.mxu0 0.0
      %3772 = vmatpush1.msra.mxu0 0.0
      %3773 = vmatprep.subr.mxu0 0.0
      %3774 = vmatpush1.msra.mxu0 0.0
      %3775 = vmatprep.subr.mxu0 0.0
      %3776 = vmatpush1.msra.mxu0 0.0
      %3777 = vmatprep.subr.mxu0 0.0
      %3778 = vmatpush1.msra.mxu0 0.0
      %3779 = vmatprep.subr.mxu0 0.0
      %3780 = vmatpush1.msra.mxu0 0.0
      %3781 = vmatprep.subr.mxu0 0.0
      %3782 = vmatpush1.msra.mxu0 0.0
      %3783 = vmatprep.subr.mxu0 0.0
      %3784 = vmatpush1.msra.mxu0 0.0
      %3785 = vmatprep.subr.mxu0 0.0
      %3786 = vmatpush1.msra.mxu0 0.0
      %3787 = vmatprep.subr.mxu0 0.0
      %3788 = vmatpush1.msra.mxu0 0.0
      %3789 = vmatprep.subr.mxu0 0.0
      %3790 = vmatpush1.msra.mxu0 0.0
      %3791 = vmatprep.subr.mxu0 0.0
      %3792 = vmatpush1.msra.mxu0 0.0
      %3793 = vmatprep.subr.mxu0 0.0
      %3794 = vmatpush1.msra.mxu0 0.0
      %3795 = vmatprep.subr.mxu0 0.0
      %3796 = vmatpush1.msra.mxu0 0.0
      %3797 = vmatprep.subr.mxu0 0.0
      %3798 = vmatpush1.msra.mxu0 0.0
      %3799 = vmatprep.subr.mxu0 0.0
      %3800 = vmatpush1.msra.mxu0 0.0
      %3801 = vmatprep.mubr.f32.mxu0 0.0
      %3802 = vmatmul.mubr.f32.gmra.mrb[0].mxu0 %v3637
      %v3803 = vpop.f32.mrb[0].mxu0
      %v3804 = vadd.f32 0.0, %v3803
      %v3805 = vpop.f32.mrb[0].mxu0
      %3806 = vmatprep.mubr.f32.mxu0 0.0
      %3807 = vmatmul.mubr.f32.gmra.mrb[0].mxu0 %v3640
      %v3808 = vpop.f32.mrb[0].mxu0
      %v3809 = vadd.f32 0.0, %v3808
      %v3810 = vpop.f32.mrb[0].mxu0
      %3811 = vmatprep.mubr.f32.mxu0 0.0
      %3812 = vmatmul.mubr.f32.gmra.mrb[0].mxu0 %v3643
      %v3813 = vpop.f32.mrb[0].mxu0
      %v3814 = vadd.f32 0.0, %v3813
      %v3815 = vpop.f32.mrb[0].mxu0
      %3816 = vmatprep.mubr.f32.mxu0 0.0
      %3817 = vmatmul.mubr.f32.gmra.mrb[0].mxu0 %v3646
      %v3818 = vpop.f32.mrb[0].mxu0
      %v3819 = vadd.f32 0.0, %v3818
      %v3820 = vpop.f32.mrb[0].mxu0
      %3821 = vdwg.mxu0
      %v3822 = vadd.f32 %v3575, %v3715
      %v3823 = vadd.f32 %v3576, %v3717
      %v3824 = vadd.f32 %v3577, %v3804
      %v3825 = vadd.f32 %v3578, %v3721
      %v3826 = vadd.f32 %v3579, %v3723
      %v3827 = vadd.f32 %v3580, %v3809
      %v3828 = vadd.f32 %v3581, %v3727
      %v3829 = vadd.f32 %v3582, %v3729
      %v3830 = vadd.f32 %v3583, %v3814
      %v3831 = vadd.f32 %v3584, %v3733
      %v3832 = vadd.f32 %v3585, %v3735
      %v3833 = vadd.f32 %v3586, %v3819
      %s3834 = scalar_lea.vmem %s3, 192
      %v3835 = vld [vmem:[%s3834] sm:$0xff]
      %v3836 = vld [vmem:[%s3834 + $0x8] sm:$0xff]
      %v3837 = vld [vmem:[%s3834 + $0x10] sm:$0xff]
      %v3838 = vld [vmem:[%s3834 + $0x18] sm:$0xff]
      %3839 = vrot.lane.b32.xlu0 %v2400, 92
      %v3840 = vpop.permute.xlu0 %3839
      %3841 = vrot.lane.b32.xlu0 %v2401, 92
      %v3842 = vpop.permute.xlu0 %3841
      %3843 = vrot.lane.b32.xlu0 %v2402, 92
      %v3844 = vpop.permute.xlu0 %3843
      %3845 = vrot.lane.b32.xlu0 %v2403, 92
      %v3846 = vpop.permute.xlu0 %3845
      %3847 = vrot.lane.b32.xlu0 %v2404, 92
      %v3848 = vpop.permute.xlu0 %3847
      %3849 = vrot.lane.b32.xlu0 %v2405, 92
      %v3850 = vpop.permute.xlu0 %3849
      %3851 = vrot.lane.b32.xlu0 %v2406, 92
      %v3852 = vpop.permute.xlu0 %3851
      %3853 = vrot.lane.b32.xlu0 %v2407, 92
      %v3854 = vpop.permute.xlu0 %3853
      %3855 = vrot.lane.b32.xlu0 %v2408, 92
      %v3856 = vpop.permute.xlu0 %3855
      %3857 = vrot.lane.b32.xlu0 %v2409, 92
      %v3858 = vpop.permute.xlu0 %3857
      %3859 = vrot.lane.b32.xlu0 %v2410, 92
      %v3860 = vpop.permute.xlu0 %3859
      %3861 = vrot.lane.b32.xlu0 %v2411, 92
      %v3862 = vpop.permute.xlu0 %3861
      %v3863 = vsel %vm1542, %v3840, %v3842
      %v3864 = vsel %vm1542, %v3842, %v3844
      %v3865 = vsel %vm1542, %v3846, %v3848
      %v3866 = vsel %vm1542, %v3848, %v3850
      %v3867 = vsel %vm1542, %v3852, %v3854
      %v3868 = vsel %vm1542, %v3854, %v3856
      %v3869 = vsel %vm1542, %v3858, %v3860
      %v3870 = vsel %vm1542, %v3860, %v3862
      %v3884 = vsel %vm2473, %v3835, 0
      %v3887 = vsel %vm2473, %v3836, 0
      %v3890 = vsel %vm2473, %v3837, 0
      %v3893 = vsel %vm2473, %v3838, 0
      %3895 = vmatprep.subr.mxu0 %v3864
      %3896 = vmatpush1.msra.mxu0 %v3863
      %3897 = vmatprep.subr.mxu0 %v3866
      %3898 = vmatpush1.msra.mxu0 %v3865
      %3899 = vmatprep.subr.mxu0 %v3868
      %3900 = vmatpush1.msra.mxu0 %v3867
      %3901 = vmatprep.subr.mxu0 %v3870
      %3902 = vmatpush1.msra.mxu0 %v3869
      %3903 = vmatprep.subr.mxu0 0.0
      %3904 = vmatpush1.msra.mxu0 0.0
      %3905 = vmatprep.subr.mxu0 0.0
      %3906 = vmatpush1.msra.mxu0 0.0
      %3907 = vmatprep.subr.mxu0 0.0
      %3908 = vmatpush1.msra.mxu0 0.0
      %3909 = vmatprep.subr.mxu0 0.0
      %3910 = vmatpush1.msra.mxu0 0.0
      %3911 = vmatprep.subr.mxu0 0.0
      %3912 = vmatpush1.msra.mxu0 0.0
      %3913 = vmatprep.subr.mxu0 0.0
      %3914 = vmatpush1.msra.mxu0 0.0
      %3915 = vmatprep.subr.mxu0 0.0
      %3916 = vmatpush1.msra.mxu0 0.0
      %3917 = vmatprep.subr.mxu0 0.0
      %3918 = vmatpush1.msra.mxu0 0.0
      %3919 = vmatprep.subr.mxu0 0.0
      %3920 = vmatpush1.msra.mxu0 0.0
      %3921 = vmatprep.subr.mxu0 0.0
      %3922 = vmatpush1.msra.mxu0 0.0
      %3923 = vmatprep.subr.mxu0 0.0
      %3924 = vmatpush1.msra.mxu0 0.0
      %3925 = vmatprep.subr.mxu0 0.0
      %3926 = vmatpush1.msra.mxu0 0.0
      %3927 = vmatprep.subr.mxu0 0.0
      %3928 = vmatpush1.msra.mxu0 0.0
      %3929 = vmatprep.subr.mxu0 0.0
      %3930 = vmatpush1.msra.mxu0 0.0
      %3931 = vmatprep.subr.mxu0 0.0
      %3932 = vmatpush1.msra.mxu0 0.0
      %3933 = vmatprep.subr.mxu0 0.0
      %3934 = vmatpush1.msra.mxu0 0.0
      %3935 = vmatprep.subr.mxu0 0.0
      %3936 = vmatpush1.msra.mxu0 0.0
      %3937 = vmatprep.subr.mxu0 0.0
      %3938 = vmatpush1.msra.mxu0 0.0
      %3939 = vmatprep.subr.mxu0 0.0
      %3940 = vmatpush1.msra.mxu0 0.0
      %3941 = vmatprep.subr.mxu0 0.0
      %3942 = vmatpush1.msra.mxu0 0.0
      %3943 = vmatprep.subr.mxu0 0.0
      %3944 = vmatpush1.msra.mxu0 0.0
      %3945 = vmatprep.subr.mxu0 0.0
      %3946 = vmatpush1.msra.mxu0 0.0
      %3947 = vmatprep.subr.mxu0 0.0
      %3948 = vmatpush1.msra.mxu0 0.0
      %3949 = vmatprep.subr.mxu0 0.0
      %3950 = vmatpush1.msra.mxu0 0.0
      %3951 = vmatprep.subr.mxu0 0.0
      %3952 = vmatpush1.msra.mxu0 0.0
      %3953 = vmatprep.subr.mxu0 0.0
      %3954 = vmatpush1.msra.mxu0 0.0
      %3955 = vmatprep.subr.mxu0 0.0
      %3956 = vmatpush1.msra.mxu0 0.0
      %3957 = vmatprep.subr.mxu0 0.0
      %3958 = vmatpush1.msra.mxu0 0.0
      %3959 = vmatprep.mubr.f32.mxu0 0.0
      %3960 = vmatmul.mubr.f32.gmra.mrb[0].mxu0 %v3884
      %v3961 = vpop.f32.mrb[0].mxu0
      %v3962 = vadd.f32 0.0, %v3961
      %v3963 = vpop.f32.mrb[0].mxu0
      %v3964 = vadd.f32 0.0, %v3963
      %3965 = vmatprep.mubr.f32.mxu0 0.0
      %3966 = vmatmul.mubr.f32.gmra.mrb[0].mxu0 %v3887
      %v3967 = vpop.f32.mrb[0].mxu0
      %v3968 = vadd.f32 0.0, %v3967
      %v3969 = vpop.f32.mrb[0].mxu0
      %v3970 = vadd.f32 0.0, %v3969
      %3971 = vmatprep.mubr.f32.mxu0 0.0
      %3972 = vmatmul.mubr.f32.gmra.mrb[0].mxu0 %v3890
      %v3973 = vpop.f32.mrb[0].mxu0
      %v3974 = vadd.f32 0.0, %v3973
      %v3975 = vpop.f32.mrb[0].mxu0
      %v3976 = vadd.f32 0.0, %v3975
      %3977 = vmatprep.mubr.f32.mxu0 0.0
      %3978 = vmatmul.mubr.f32.gmra.mrb[0].mxu0 %v3893
      %v3979 = vpop.f32.mrb[0].mxu0
      %v3980 = vadd.f32 0.0, %v3979
      %v3981 = vpop.f32.mrb[0].mxu0
      %v3982 = vadd.f32 0.0, %v3981
      %3983 = vdwg.mxu0
      %3984 = vmatprep.subr.mxu0 0.0
      %3985 = vmatpush1.msra.mxu0 %v3844
      %3986 = vmatprep.subr.mxu0 0.0
      %3987 = vmatpush1.msra.mxu0 %v3850
      %3988 = vmatprep.subr.mxu0 0.0
      %3989 = vmatpush1.msra.mxu0 %v3856
      %3990 = vmatprep.subr.mxu0 0.0
      %3991 = vmatpush1.msra.mxu0 %v3862
      %3992 = vmatprep.subr.mxu0 0.0
      %3993 = vmatpush1.msra.mxu0 0.0
      %3994 = vmatprep.subr.mxu0 0.0
      %3995 = vmatpush1.msra.mxu0 0.0
      %3996 = vmatprep.subr.mxu0 0.0
      %3997 = vmatpush1.msra.mxu0 0.0
      %3998 = vmatprep.subr.mxu0 0.0
      %3999 = vmatpush1.msra.mxu0 0.0
      %4000 = vmatprep.subr.mxu0 0.0
      %4001 = vmatpush1.msra.mxu0 0.0
      %4002 = vmatprep.subr.mxu0 0.0
      %4003 = vmatpush1.msra.mxu0 0.0
      %4004 = vmatprep.subr.mxu0 0.0
      %4005 = vmatpush1.msra.mxu0 0.0
      %4006 = vmatprep.subr.mxu0 0.0
      %4007 = vmatpush1.msra.mxu0 0.0
      %4008 = vmatprep.subr.mxu0 0.0
      %4009 = vmatpush1.msra.mxu0 0.0
      %4010 = vmatprep.subr.mxu0 0.0
      %4011 = vmatpush1.msra.mxu0 0.0
      %4012 = vmatprep.subr.mxu0 0.0
      %4013 = vmatpush1.msra.mxu0 0.0
      %4014 = vmatprep.subr.mxu0 0.0
      %4015 = vmatpush1.msra.mxu0 0.0
      %4016 = vmatprep.subr.mxu0 0.0
      %4017 = vmatpush1.msra.mxu0 0.0
      %4018 = vmatprep.subr.mxu0 0.0
      %4019 = vmatpush1.msra.mxu0 0.0
      %4020 = vmatprep.subr.mxu0 0.0
      %4021 = vmatpush1.msra.mxu0 0.0
      %4022 = vmatprep.subr.mxu0 0.0
      %4023 = vmatpush1.msra.mxu0 0.0
      %4024 = vmatprep.subr.mxu0 0.0
      %4025 = vmatpush1.msra.mxu0 0.0
      %4026 = vmatprep.subr.mxu0 0.0
      %4027 = vmatpush1.msra.mxu0 0.0
      %4028 = vmatprep.subr.mxu0 0.0
      %4029 = vmatpush1.msra.mxu0 0.0
      %4030 = vmatprep.subr.mxu0 0.0
      %4031 = vmatpush1.msra.mxu0 0.0
      %4032 = vmatprep.subr.mxu0 0.0
      %4033 = vmatpush1.msra.mxu0 0.0
      %4034 = vmatprep.subr.mxu0 0.0
      %4035 = vmatpush1.msra.mxu0 0.0
      %4036 = vmatprep.subr.mxu0 0.0
      %4037 = vmatpush1.msra.mxu0 0.0
      %4038 = vmatprep.subr.mxu0 0.0
      %4039 = vmatpush1.msra.mxu0 0.0
      %4040 = vmatprep.subr.mxu0 0.0
      %4041 = vmatpush1.msra.mxu0 0.0
      %4042 = vmatprep.subr.mxu0 0.0
      %4043 = vmatpush1.msra.mxu0 0.0
      %4044 = vmatprep.subr.mxu0 0.0
      %4045 = vmatpush1.msra.mxu0 0.0
      %4046 = vmatprep.subr.mxu0 0.0
      %4047 = vmatpush1.msra.mxu0 0.0
      %4048 = vmatprep.mubr.f32.mxu0 0.0
      %4049 = vmatmul.mubr.f32.gmra.mrb[0].mxu0 %v3884
      %v4050 = vpop.f32.mrb[0].mxu0
      %v4051 = vadd.f32 0.0, %v4050
      %v4052 = vpop.f32.mrb[0].mxu0
      %4053 = vmatprep.mubr.f32.mxu0 0.0
      %4054 = vmatmul.mubr.f32.gmra.mrb[0].mxu0 %v3887
      %v4055 = vpop.f32.mrb[0].mxu0
      %v4056 = vadd.f32 0.0, %v4055
      %v4057 = vpop.f32.mrb[0].mxu0
      %4058 = vmatprep.mubr.f32.mxu0 0.0
      %4059 = vmatmul.mubr.f32.gmra.mrb[0].mxu0 %v3890
      %v4060 = vpop.f32.mrb[0].mxu0
      %v4061 = vadd.f32 0.0, %v4060
      %v4062 = vpop.f32.mrb[0].mxu0
      %4063 = vmatprep.mubr.f32.mxu0 0.0
      %4064 = vmatmul.mubr.f32.gmra.mrb[0].mxu0 %v3893
      %v4065 = vpop.f32.mrb[0].mxu0
      %v4066 = vadd.f32 0.0, %v4065
      %v4067 = vpop.f32.mrb[0].mxu0
      %4068 = vdwg.mxu0
      %v4069 = vadd.f32 %v3822, %v3962
      %v4070 = vadd.f32 %v3823, %v3964
      %v4071 = vadd.f32 %v3824, %v4051
      %v4072 = vadd.f32 %v3825, %v3968
      %v4073 = vadd.f32 %v3826, %v3970
      %v4074 = vadd.f32 %v3827, %v4056
      %v4075 = vadd.f32 %v3828, %v3974
      %v4076 = vadd.f32 %v3829, %v3976
      %v4077 = vadd.f32 %v3830, %v4061
      %v4078 = vadd.f32 %v3831, %v3980
      %v4079 = vadd.f32 %v3832, %v3982
      %v4080 = vadd.f32 %v3833, %v4066
      %s4081 = scalar_lea.vmem %s3, 224
      %v4082 = vld [vmem:[%s4081] sm:$0xff]
      %v4083 = vld [vmem:[%s4081 + $0x8] sm:$0xff]
      %v4084 = vld [vmem:[%s4081 + $0x10] sm:$0xff]
      %v4085 = vld [vmem:[%s4081 + $0x18] sm:$0xff]
      %4086 = vrot.lane.b32.xlu0 %v2400, 91
      %v4087 = vpop.permute.xlu0 %4086
      %4088 = vrot.lane.b32.xlu0 %v2401, 91
      %v4089 = vpop.permute.xlu0 %4088
      %4090 = vrot.lane.b32.xlu0 %v2402, 91
      %v4091 = vpop.permute.xlu0 %4090
      %4092 = vrot.lane.b32.xlu0 %v2403, 91
      %v4093 = vpop.permute.xlu0 %4092
      %4094 = vrot.lane.b32.xlu0 %v2404, 91
      %v4095 = vpop.permute.xlu0 %4094
      %4096 = vrot.lane.b32.xlu0 %v2405, 91
      %v4097 = vpop.permute.xlu0 %4096
      %4098 = vrot.lane.b32.xlu0 %v2406, 91
      %v4099 = vpop.permute.xlu0 %4098
      %4100 = vrot.lane.b32.xlu0 %v2407, 91
      %v4101 = vpop.permute.xlu0 %4100
      %4102 = vrot.lane.b32.xlu0 %v2408, 91
      %v4103 = vpop.permute.xlu0 %4102
      %4104 = vrot.lane.b32.xlu0 %v2409, 91
      %v4105 = vpop.permute.xlu0 %4104
      %4106 = vrot.lane.b32.xlu0 %v2410, 91
      %v4107 = vpop.permute.xlu0 %4106
      %4108 = vrot.lane.b32.xlu0 %v2411, 91
      %v4109 = vpop.permute.xlu0 %4108
      %v4110 = vsel %vm1765, %v4087, %v4089
      %v4111 = vsel %vm1765, %v4089, %v4091
      %v4112 = vsel %vm1765, %v4093, %v4095
      %v4113 = vsel %vm1765, %v4095, %v4097
      %v4114 = vsel %vm1765, %v4099, %v4101
      %v4115 = vsel %vm1765, %v4101, %v4103
      %v4116 = vsel %vm1765, %v4105, %v4107
      %v4117 = vsel %vm1765, %v4107, %v4109
      %v4131 = vsel %vm2473, %v4082, 0
      %v4134 = vsel %vm2473, %v4083, 0
      %v4137 = vsel %vm2473, %v4084, 0
      %v4140 = vsel %vm2473, %v4085, 0
      %4142 = vmatprep.subr.mxu0 %v4111
      %4143 = vmatpush1.msra.mxu0 %v4110
      %4144 = vmatprep.subr.mxu0 %v4113
      %4145 = vmatpush1.msra.mxu0 %v4112
      %4146 = vmatprep.subr.mxu0 %v4115
      %4147 = vmatpush1.msra.mxu0 %v4114
      %4148 = vmatprep.subr.mxu0 %v4117
      %4149 = vmatpush1.msra.mxu0 %v4116
      %4150 = vmatprep.subr.mxu0 0.0
      %4151 = vmatpush1.msra.mxu0 0.0
      %4152 = vmatprep.subr.mxu0 0.0
      %4153 = vmatpush1.msra.mxu0 0.0
      %4154 = vmatprep.subr.mxu0 0.0
      %4155 = vmatpush1.msra.mxu0 0.0
      %4156 = vmatprep.subr.mxu0 0.0
      %4157 = vmatpush1.msra.mxu0 0.0
      %4158 = vmatprep.subr.mxu0 0.0
      %4159 = vmatpush1.msra.mxu0 0.0
      %4160 = vmatprep.subr.mxu0 0.0
      %4161 = vmatpush1.msra.mxu0 0.0
      %4162 = vmatprep.subr.mxu0 0.0
      %4163 = vmatpush1.msra.mxu0 0.0
      %4164 = vmatprep.subr.mxu0 0.0
      %4165 = vmatpush1.msra.mxu0 0.0
      %4166 = vmatprep.subr.mxu0 0.0
      %4167 = vmatpush1.msra.mxu0 0.0
      %4168 = vmatprep.subr.mxu0 0.0
      %4169 = vmatpush1.msra.mxu0 0.0
      %4170 = vmatprep.subr.mxu0 0.0
      %4171 = vmatpush1.msra.mxu0 0.0
      %4172 = vmatprep.subr.mxu0 0.0
      %4173 = vmatpush1.msra.mxu0 0.0
      %4174 = vmatprep.subr.mxu0 0.0
      %4175 = vmatpush1.msra.mxu0 0.0
      %4176 = vmatprep.subr.mxu0 0.0
      %4177 = vmatpush1.msra.mxu0 0.0
      %4178 = vmatprep.subr.mxu0 0.0
      %4179 = vmatpush1.msra.mxu0 0.0
      %4180 = vmatprep.subr.mxu0 0.0
      %4181 = vmatpush1.msra.mxu0 0.0
      %4182 = vmatprep.subr.mxu0 0.0
      %4183 = vmatpush1.msra.mxu0 0.0
      %4184 = vmatprep.subr.mxu0 0.0
      %4185 = vmatpush1.msra.mxu0 0.0
      %4186 = vmatprep.subr.mxu0 0.0
      %4187 = vmatpush1.msra.mxu0 0.0
      %4188 = vmatprep.subr.mxu0 0.0
      %4189 = vmatpush1.msra.mxu0 0.0
      %4190 = vmatprep.subr.mxu0 0.0
      %4191 = vmatpush1.msra.mxu0 0.0
      %4192 = vmatprep.subr.mxu0 0.0
      %4193 = vmatpush1.msra.mxu0 0.0
      %4194 = vmatprep.subr.mxu0 0.0
      %4195 = vmatpush1.msra.mxu0 0.0
      %4196 = vmatprep.subr.mxu0 0.0
      %4197 = vmatpush1.msra.mxu0 0.0
      %4198 = vmatprep.subr.mxu0 0.0
      %4199 = vmatpush1.msra.mxu0 0.0
      %4200 = vmatprep.subr.mxu0 0.0
      %4201 = vmatpush1.msra.mxu0 0.0
      %4202 = vmatprep.subr.mxu0 0.0
      %4203 = vmatpush1.msra.mxu0 0.0
      %4204 = vmatprep.subr.mxu0 0.0
      %4205 = vmatpush1.msra.mxu0 0.0
      %4206 = vmatprep.mubr.f32.mxu0 0.0
      %4207 = vmatmul.mubr.f32.gmra.mrb[0].mxu0 %v4131
      %v4208 = vpop.f32.mrb[0].mxu0
      %v4209 = vadd.f32 0.0, %v4208
      %v4210 = vpop.f32.mrb[0].mxu0
      %v4211 = vadd.f32 0.0, %v4210
      %4212 = vmatprep.mubr.f32.mxu0 0.0
      %4213 = vmatmul.mubr.f32.gmra.mrb[0].mxu0 %v4134
      %v4214 = vpop.f32.mrb[0].mxu0
      %v4215 = vadd.f32 0.0, %v4214
      %v4216 = vpop.f32.mrb[0].mxu0
      %v4217 = vadd.f32 0.0, %v4216
      %4218 = vmatprep.mubr.f32.mxu0 0.0
      %4219 = vmatmul.mubr.f32.gmra.mrb[0].mxu0 %v4137
      %v4220 = vpop.f32.mrb[0].mxu0
      %v4221 = vadd.f32 0.0, %v4220
      %v4222 = vpop.f32.mrb[0].mxu0
      %v4223 = vadd.f32 0.0, %v4222
      %4224 = vmatprep.mubr.f32.mxu0 0.0
      %4225 = vmatmul.mubr.f32.gmra.mrb[0].mxu0 %v4140
      %v4226 = vpop.f32.mrb[0].mxu0
      %v4227 = vadd.f32 0.0, %v4226
      %v4228 = vpop.f32.mrb[0].mxu0
      %v4229 = vadd.f32 0.0, %v4228
      %4230 = vdwg.mxu0
      %4231 = vmatprep.subr.mxu0 0.0
      %4232 = vmatpush1.msra.mxu0 %v4091
      %4233 = vmatprep.subr.mxu0 0.0
      %4234 = vmatpush1.msra.mxu0 %v4097
      %4235 = vmatprep.subr.mxu0 0.0
      %4236 = vmatpush1.msra.mxu0 %v4103
      %4237 = vmatprep.subr.mxu0 0.0
      %4238 = vmatpush1.msra.mxu0 %v4109
      %4239 = vmatprep.subr.mxu0 0.0
      %4240 = vmatpush1.msra.mxu0 0.0
      %4241 = vmatprep.subr.mxu0 0.0
      %4242 = vmatpush1.msra.mxu0 0.0
      %4243 = vmatprep.subr.mxu0 0.0
      %4244 = vmatpush1.msra.mxu0 0.0
      %4245 = vmatprep.subr.mxu0 0.0
      %4246 = vmatpush1.msra.mxu0 0.0
      %4247 = vmatprep.subr.mxu0 0.0
      %4248 = vmatpush1.msra.mxu0 0.0
      %4249 = vmatprep.subr.mxu0 0.0
      %4250 = vmatpush1.msra.mxu0 0.0
      %4251 = vmatprep.subr.mxu0 0.0
      %4252 = vmatpush1.msra.mxu0 0.0
      %4253 = vmatprep.subr.mxu0 0.0
      %4254 = vmatpush1.msra.mxu0 0.0
      %4255 = vmatprep.subr.mxu0 0.0
      %4256 = vmatpush1.msra.mxu0 0.0
      %4257 = vmatprep.subr.mxu0 0.0
      %4258 = vmatpush1.msra.mxu0 0.0
      %4259 = vmatprep.subr.mxu0 0.0
      %4260 = vmatpush1.msra.mxu0 0.0
      %4261 = vmatprep.subr.mxu0 0.0
      %4262 = vmatpush1.msra.mxu0 0.0
      %4263 = vmatprep.subr.mxu0 0.0
      %4264 = vmatpush1.msra.mxu0 0.0
      %4265 = vmatprep.subr.mxu0 0.0
      %4266 = vmatpush1.msra.mxu0 0.0
      %4267 = vmatprep.subr.mxu0 0.0
      %4268 = vmatpush1.msra.mxu0 0.0
      %4269 = vmatprep.subr.mxu0 0.0
      %4270 = vmatpush1.msra.mxu0 0.0
      %4271 = vmatprep.subr.mxu0 0.0
      %4272 = vmatpush1.msra.mxu0 0.0
      %4273 = vmatprep.subr.mxu0 0.0
      %4274 = vmatpush1.msra.mxu0 0.0
      %4275 = vmatprep.subr.mxu0 0.0
      %4276 = vmatpush1.msra.mxu0 0.0
      %4277 = vmatprep.subr.mxu0 0.0
      %4278 = vmatpush1.msra.mxu0 0.0
      %4279 = vmatprep.subr.mxu0 0.0
      %4280 = vmatpush1.msra.mxu0 0.0
      %4281 = vmatprep.subr.mxu0 0.0
      %4282 = vmatpush1.msra.mxu0 0.0
      %4283 = vmatprep.subr.mxu0 0.0
      %4284 = vmatpush1.msra.mxu0 0.0
      %4285 = vmatprep.subr.mxu0 0.0
      %4286 = vmatpush1.msra.mxu0 0.0
      %4287 = vmatprep.subr.mxu0 0.0
      %4288 = vmatpush1.msra.mxu0 0.0
      %4289 = vmatprep.subr.mxu0 0.0
      %4290 = vmatpush1.msra.mxu0 0.0
      %4291 = vmatprep.subr.mxu0 0.0
      %4292 = vmatpush1.msra.mxu0 0.0
      %4293 = vmatprep.subr.mxu0 0.0
      %4294 = vmatpush1.msra.mxu0 0.0
      %4295 = vmatprep.mubr.f32.mxu0 0.0
      %4296 = vmatmul.mubr.f32.gmra.mrb[0].mxu0 %v4131
      %v4297 = vpop.f32.mrb[0].mxu0
      %v4298 = vadd.f32 0.0, %v4297
      %v4299 = vpop.f32.mrb[0].mxu0
      %4300 = vmatprep.mubr.f32.mxu0 0.0
      %4301 = vmatmul.mubr.f32.gmra.mrb[0].mxu0 %v4134
      %v4302 = vpop.f32.mrb[0].mxu0
      %v4303 = vadd.f32 0.0, %v4302
      %v4304 = vpop.f32.mrb[0].mxu0
      %4305 = vmatprep.mubr.f32.mxu0 0.0
      %4306 = vmatmul.mubr.f32.gmra.mrb[0].mxu0 %v4137
      %v4307 = vpop.f32.mrb[0].mxu0
      %v4308 = vadd.f32 0.0, %v4307
      %v4309 = vpop.f32.mrb[0].mxu0
      %4310 = vmatprep.mubr.f32.mxu0 0.0
      %4311 = vmatmul.mubr.f32.gmra.mrb[0].mxu0 %v4140
      %v4312 = vpop.f32.mrb[0].mxu0
      %v4313 = vadd.f32 0.0, %v4312
      %v4314 = vpop.f32.mrb[0].mxu0
      %4315 = vdwg.mxu0
      %v4316 = vadd.f32 %v4069, %v4209
      %v4317 = vadd.f32 %v4070, %v4211
      %v4318 = vadd.f32 %v4071, %v4298
      %v4319 = vadd.f32 %v4072, %v4215
      %v4320 = vadd.f32 %v4073, %v4217
      %v4321 = vadd.f32 %v4074, %v4303
      %v4322 = vadd.f32 %v4075, %v4221
      %v4323 = vadd.f32 %v4076, %v4223
      %v4324 = vadd.f32 %v4077, %v4308
      %v4325 = vadd.f32 %v4078, %v4227
      %v4326 = vadd.f32 %v4079, %v4229
      %v4327 = vadd.f32 %v4080, %v4313
      %s4328 = scalar_lea.vmem %s3, 256
      %v4329 = vld [vmem:[%s4328] sm:$0xff]
      %v4330 = vld [vmem:[%s4328 + $0x8] sm:$0xff]
      %v4331 = vld [vmem:[%s4328 + $0x10] sm:$0xff]
      %v4332 = vld [vmem:[%s4328 + $0x18] sm:$0xff]
      %4333 = vrot.lane.b32.xlu0 %v2400, 90
      %v4334 = vpop.permute.xlu0 %4333
      %4335 = vrot.lane.b32.xlu0 %v2401, 90
      %v4336 = vpop.permute.xlu0 %4335
      %4337 = vrot.lane.b32.xlu0 %v2402, 90
      %v4338 = vpop.permute.xlu0 %4337
      %4339 = vrot.lane.b32.xlu0 %v2403, 90
      %v4340 = vpop.permute.xlu0 %4339
      %4341 = vrot.lane.b32.xlu0 %v2404, 90
      %v4342 = vpop.permute.xlu0 %4341
      %4343 = vrot.lane.b32.xlu0 %v2405, 90
      %v4344 = vpop.permute.xlu0 %4343
      %4345 = vrot.lane.b32.xlu0 %v2406, 90
      %v4346 = vpop.permute.xlu0 %4345
      %4347 = vrot.lane.b32.xlu0 %v2407, 90
      %v4348 = vpop.permute.xlu0 %4347
      %4349 = vrot.lane.b32.xlu0 %v2408, 90
      %v4350 = vpop.permute.xlu0 %4349
      %4351 = vrot.lane.b32.xlu0 %v2409, 90
      %v4352 = vpop.permute.xlu0 %4351
      %4353 = vrot.lane.b32.xlu0 %v2410, 90
      %v4354 = vpop.permute.xlu0 %4353
      %4355 = vrot.lane.b32.xlu0 %v2411, 90
      %v4356 = vpop.permute.xlu0 %4355
      %v4357 = vsel %vm1988, %v4334, %v4336
      %v4358 = vsel %vm1988, %v4336, %v4338
      %v4359 = vsel %vm1988, %v4340, %v4342
      %v4360 = vsel %vm1988, %v4342, %v4344
      %v4361 = vsel %vm1988, %v4346, %v4348
      %v4362 = vsel %vm1988, %v4348, %v4350
      %v4363 = vsel %vm1988, %v4352, %v4354
      %v4364 = vsel %vm1988, %v4354, %v4356
      %v4378 = vsel %vm2473, %v4329, 0
      %v4381 = vsel %vm2473, %v4330, 0
      %v4384 = vsel %vm2473, %v4331, 0
      %v4387 = vsel %vm2473, %v4332, 0
      %4389 = vmatprep.subr.mxu0 %v4358
      %4390 = vmatpush1.msra.mxu0 %v4357
      %4391 = vmatprep.subr.mxu0 %v4360
      %4392 = vmatpush1.msra.mxu0 %v4359
      %4393 = vmatprep.subr.mxu0 %v4362
      %4394 = vmatpush1.msra.mxu0 %v4361
      %4395 = vmatprep.subr.mxu0 %v4364
      %4396 = vmatpush1.msra.mxu0 %v4363
      %4397 = vmatprep.subr.mxu0 0.0
      %4398 = vmatpush1.msra.mxu0 0.0
      %4399 = vmatprep.subr.mxu0 0.0
      %4400 = vmatpush1.msra.mxu0 0.0
      %4401 = vmatprep.subr.mxu0 0.0
      %4402 = vmatpush1.msra.mxu0 0.0
      %4403 = vmatprep.subr.mxu0 0.0
      %4404 = vmatpush1.msra.mxu0 0.0
      %4405 = vmatprep.subr.mxu0 0.0
      %4406 = vmatpush1.msra.mxu0 0.0
      %4407 = vmatprep.subr.mxu0 0.0
      %4408 = vmatpush1.msra.mxu0 0.0
      %4409 = vmatprep.subr.mxu0 0.0
      %4410 = vmatpush1.msra.mxu0 0.0
      %4411 = vmatprep.subr.mxu0 0.0
      %4412 = vmatpush1.msra.mxu0 0.0
      %4413 = vmatprep.subr.mxu0 0.0
      %4414 = vmatpush1.msra.mxu0 0.0
      %4415 = vmatprep.subr.mxu0 0.0
      %4416 = vmatpush1.msra.mxu0 0.0
      %4417 = vmatprep.subr.mxu0 0.0
      %4418 = vmatpush1.msra.mxu0 0.0
      %4419 = vmatprep.subr.mxu0 0.0
      %4420 = vmatpush1.msra.mxu0 0.0
      %4421 = vmatprep.subr.mxu0 0.0
      %4422 = vmatpush1.msra.mxu0 0.0
      %4423 = vmatprep.subr.mxu0 0.0
      %4424 = vmatpush1.msra.mxu0 0.0
      %4425 = vmatprep.subr.mxu0 0.0
      %4426 = vmatpush1.msra.mxu0 0.0
      %4427 = vmatprep.subr.mxu0 0.0
      %4428 = vmatpush1.msra.mxu0 0.0
      %4429 = vmatprep.subr.mxu0 0.0
      %4430 = vmatpush1.msra.mxu0 0.0
      %4431 = vmatprep.subr.mxu0 0.0
      %4432 = vmatpush1.msra.mxu0 0.0
      %4433 = vmatprep.subr.mxu0 0.0
      %4434 = vmatpush1.msra.mxu0 0.0
      %4435 = vmatprep.subr.mxu0 0.0
      %4436 = vmatpush1.msra.mxu0 0.0
      %4437 = vmatprep.subr.mxu0 0.0
      %4438 = vmatpush1.msra.mxu0 0.0
      %4439 = vmatprep.subr.mxu0 0.0
      %4440 = vmatpush1.msra.mxu0 0.0
      %4441 = vmatprep.subr.mxu0 0.0
      %4442 = vmatpush1.msra.mxu0 0.0
      %4443 = vmatprep.subr.mxu0 0.0
      %4444 = vmatpush1.msra.mxu0 0.0
      %4445 = vmatprep.subr.mxu0 0.0
      %4446 = vmatpush1.msra.mxu0 0.0
      %4447 = vmatprep.subr.mxu0 0.0
      %4448 = vmatpush1.msra.mxu0 0.0
      %4449 = vmatprep.subr.mxu0 0.0
      %4450 = vmatpush1.msra.mxu0 0.0
      %4451 = vmatprep.subr.mxu0 0.0
      %4452 = vmatpush1.msra.mxu0 0.0
      %4453 = vmatprep.mubr.f32.mxu0 0.0
      %4454 = vmatmul.mubr.f32.gmra.mrb[0].mxu0 %v4378
      %v4455 = vpop.f32.mrb[0].mxu0
      %v4456 = vadd.f32 0.0, %v4455
      %v4457 = vpop.f32.mrb[0].mxu0
      %v4458 = vadd.f32 0.0, %v4457
      %4459 = vmatprep.mubr.f32.mxu0 0.0
      %4460 = vmatmul.mubr.f32.gmra.mrb[0].mxu0 %v4381
      %v4461 = vpop.f32.mrb[0].mxu0
      %v4462 = vadd.f32 0.0, %v4461
      %v4463 = vpop.f32.mrb[0].mxu0
      %v4464 = vadd.f32 0.0, %v4463
      %4465 = vmatprep.mubr.f32.mxu0 0.0
      %4466 = vmatmul.mubr.f32.gmra.mrb[0].mxu0 %v4384
      %v4467 = vpop.f32.mrb[0].mxu0
      %v4468 = vadd.f32 0.0, %v4467
      %v4469 = vpop.f32.mrb[0].mxu0
      %v4470 = vadd.f32 0.0, %v4469
      %4471 = vmatprep.mubr.f32.mxu0 0.0
      %4472 = vmatmul.mubr.f32.gmra.mrb[0].mxu0 %v4387
      %v4473 = vpop.f32.mrb[0].mxu0
      %v4474 = vadd.f32 0.0, %v4473
      %v4475 = vpop.f32.mrb[0].mxu0
      %v4476 = vadd.f32 0.0, %v4475
      %4477 = vdwg.mxu0
      %4478 = vmatprep.subr.mxu0 0.0
      %4479 = vmatpush1.msra.mxu0 %v4338
      %4480 = vmatprep.subr.mxu0 0.0
      %4481 = vmatpush1.msra.mxu0 %v4344
      %4482 = vmatprep.subr.mxu0 0.0
      %4483 = vmatpush1.msra.mxu0 %v4350
      %4484 = vmatprep.subr.mxu0 0.0
      %4485 = vmatpush1.msra.mxu0 %v4356
      %4486 = vmatprep.subr.mxu0 0.0
      %4487 = vmatpush1.msra.mxu0 0.0
      %4488 = vmatprep.subr.mxu0 0.0
      %4489 = vmatpush1.msra.mxu0 0.0
      %4490 = vmatprep.subr.mxu0 0.0
      %4491 = vmatpush1.msra.mxu0 0.0
      %4492 = vmatprep.subr.mxu0 0.0
      %4493 = vmatpush1.msra.mxu0 0.0
      %4494 = vmatprep.subr.mxu0 0.0
      %4495 = vmatpush1.msra.mxu0 0.0
      %4496 = vmatprep.subr.mxu0 0.0
      %4497 = vmatpush1.msra.mxu0 0.0
      %4498 = vmatprep.subr.mxu0 0.0
      %4499 = vmatpush1.msra.mxu0 0.0
      %4500 = vmatprep.subr.mxu0 0.0
      %4501 = vmatpush1.msra.mxu0 0.0
      %4502 = vmatprep.subr.mxu0 0.0
      %4503 = vmatpush1.msra.mxu0 0.0
      %4504 = vmatprep.subr.mxu0 0.0
      %4505 = vmatpush1.msra.mxu0 0.0
      %4506 = vmatprep.subr.mxu0 0.0
      %4507 = vmatpush1.msra.mxu0 0.0
      %4508 = vmatprep.subr.mxu0 0.0
      %4509 = vmatpush1.msra.mxu0 0.0
      %4510 = vmatprep.subr.mxu0 0.0
      %4511 = vmatpush1.msra.mxu0 0.0
      %4512 = vmatprep.subr.mxu0 0.0
      %4513 = vmatpush1.msra.mxu0 0.0
      %4514 = vmatprep.subr.mxu0 0.0
      %4515 = vmatpush1.msra.mxu0 0.0
      %4516 = vmatprep.subr.mxu0 0.0
      %4517 = vmatpush1.msra.mxu0 0.0
      %4518 = vmatprep.subr.mxu0 0.0
      %4519 = vmatpush1.msra.mxu0 0.0
      %4520 = vmatprep.subr.mxu0 0.0
      %4521 = vmatpush1.msra.mxu0 0.0
      %4522 = vmatprep.subr.mxu0 0.0
      %4523 = vmatpush1.msra.mxu0 0.0
      %4524 = vmatprep.subr.mxu0 0.0
      %4525 = vmatpush1.msra.mxu0 0.0
      %4526 = vmatprep.subr.mxu0 0.0
      %4527 = vmatpush1.msra.mxu0 0.0
      %4528 = vmatprep.subr.mxu0 0.0
      %4529 = vmatpush1.msra.mxu0 0.0
      %4530 = vmatprep.subr.mxu0 0.0
      %4531 = vmatpush1.msra.mxu0 0.0
      %4532 = vmatprep.subr.mxu0 0.0
      %4533 = vmatpush1.msra.mxu0 0.0
      %4534 = vmatprep.subr.mxu0 0.0
      %4535 = vmatpush1.msra.mxu0 0.0
      %4536 = vmatprep.subr.mxu0 0.0
      %4537 = vmatpush1.msra.mxu0 0.0
      %4538 = vmatprep.subr.mxu0 0.0
      %4539 = vmatpush1.msra.mxu0 0.0
      %4540 = vmatprep.subr.mxu0 0.0
      %4541 = vmatpush1.msra.mxu0 0.0
      %4542 = vmatprep.mubr.f32.mxu0 0.0
      %4543 = vmatmul.mubr.f32.gmra.mrb[0].mxu0 %v4378
      %v4544 = vpop.f32.mrb[0].mxu0
      %v4545 = vadd.f32 0.0, %v4544
      %v4546 = vpop.f32.mrb[0].mxu0
      %4547 = vmatprep.mubr.f32.mxu0 0.0
      %4548 = vmatmul.mubr.f32.gmra.mrb[0].mxu0 %v4381
      %v4549 = vpop.f32.mrb[0].mxu0
      %v4550 = vadd.f32 0.0, %v4549
      %v4551 = vpop.f32.mrb[0].mxu0
      %4552 = vmatprep.mubr.f32.mxu0 0.0
      %4553 = vmatmul.mubr.f32.gmra.mrb[0].mxu0 %v4384
      %v4554 = vpop.f32.mrb[0].mxu0
      %v4555 = vadd.f32 0.0, %v4554
      %v4556 = vpop.f32.mrb[0].mxu0
      %4557 = vmatprep.mubr.f32.mxu0 0.0
      %4558 = vmatmul.mubr.f32.gmra.mrb[0].mxu0 %v4387
      %v4559 = vpop.f32.mrb[0].mxu0
      %v4560 = vadd.f32 0.0, %v4559
      %v4561 = vpop.f32.mrb[0].mxu0
      %4562 = vdwg.mxu0
      %v4563 = vadd.f32 %v4316, %v4456
      %v4564 = vadd.f32 %v4317, %v4458
      %v4565 = vadd.f32 %v4318, %v4545
      %v4566 = vadd.f32 %v4319, %v4462
      %v4567 = vadd.f32 %v4320, %v4464
      %v4568 = vadd.f32 %v4321, %v4550
      %v4569 = vadd.f32 %v4322, %v4468
      %v4570 = vadd.f32 %v4323, %v4470
      %v4571 = vadd.f32 %v4324, %v4555
      %v4572 = vadd.f32 %v4325, %v4474
      %v4573 = vadd.f32 %v4326, %v4476
      %v4574 = vadd.f32 %v4327, %v4560
      %v4575 = vld [vmem:[%s4] sm:$0xff]
      %v4576 = vld [vmem:[%s4 + $0x8] sm:$0xff]
      %v4577 = vld [vmem:[%s4 + $0x10] sm:$0xff]
      %v4578 = vld [vmem:[%s4 + $0x18] sm:$0xff]
      %4580 = vset.pattern.permute.xlu0 0
      %4581 = vperm.xlu0 %4580, %v4575
      %v4582 = vpop.permute.xlu0 %4581
      %4585 = vset.pattern.permute.xlu0 0
      %4586 = vperm.xlu0 %4585, %v4576
      %v4587 = vpop.permute.xlu0 %4586
      %4590 = vset.pattern.permute.xlu0 0
      %4591 = vperm.xlu0 %4590, %v4577
      %v4592 = vpop.permute.xlu0 %4591
      %4595 = vset.pattern.permute.xlu0 0
      %4596 = vperm.xlu0 %4595, %v4578
      %v4597 = vpop.permute.xlu0 %4596
      %v4599 = vadd.f32 %v4563, %v4582
      %v4600 = vadd.f32 %v4564, %v4582
      %v4601 = vadd.f32 %v4565, %v4582
      %v4602 = vadd.f32 %v4566, %v4587
      %v4603 = vadd.f32 %v4567, %v4587
      %v4604 = vadd.f32 %v4568, %v4587
      %v4605 = vadd.f32 %v4569, %v4592
      %v4606 = vadd.f32 %v4570, %v4592
      %v4607 = vadd.f32 %v4571, %v4592
      %v4608 = vadd.f32 %v4572, %v4597
      %v4609 = vadd.f32 %v4573, %v4597
      %v4610 = vadd.f32 %v4574, %v4597
      %v4611 = vmax.f32 %v4599, 0.0
      %v4612 = vmax.f32 %v4600, 0.0
      %v4613 = vmax.f32 %v4601, 0.0
      %v4614 = vmax.f32 %v4602, 0.0
      %v4615 = vmax.f32 %v4603, 0.0
      %v4616 = vmax.f32 %v4604, 0.0
      %v4617 = vmax.f32 %v4605, 0.0
      %v4618 = vmax.f32 %v4606, 0.0
      %v4619 = vmax.f32 %v4607, 0.0
      %v4620 = vmax.f32 %v4608, 0.0
      %v4621 = vmax.f32 %v4609, 0.0
      %v4622 = vmax.f32 %v4610, 0.0
      %vm4623 = vcmask 130048
      %4624 = vst.msk [vmem:[%s224] sm:$0xff] %vm4623, %v4611
      %4625 = vst.msk [vmem:[%s224 + $0x10] sm:$0xff] %vm4623, %v4614
      %4626 = vst.msk [vmem:[%s224 + $0x20] sm:$0xff] %vm4623, %v4617
      %4627 = vst.msk [vmem:[%s224 + $0x30] sm:$0xff] %vm4623, %v4620
      %4632 = vrot.lane.b32.xlu0 %v4611, 126
      %v4633 = vpop.permute.xlu0 %4632
      %4634 = vrot.lane.b32.xlu0 %v4614, 126
      %v4635 = vpop.permute.xlu0 %4634
      %4636 = vrot.lane.b32.xlu0 %v4617, 126
      %v4637 = vpop.permute.xlu0 %4636
      %4638 = vrot.lane.b32.xlu0 %v4620, 126
      %v4639 = vpop.permute.xlu0 %4638
      %vm4644 = vcmask 261248
      %4645 = vst.msk [vmem:[%s224] sm:$0xff] %vm4644, %v4633
      %4646 = vst.msk [vmem:[%s224 + $0x10] sm:$0xff] %vm4644, %v4635
      %4647 = vst.msk [vmem:[%s224 + $0x20] sm:$0xff] %vm4644, %v4637
      %4648 = vst.msk [vmem:[%s224 + $0x30] sm:$0xff] %vm4644, %v4639
      %4649 = vrot.lane.b32.xlu0 %v4611, 124
      %v4650 = vpop.permute.xlu0 %4649
      %4651 = vrot.lane.b32.xlu0 %v4614, 124
      %v4652 = vpop.permute.xlu0 %4651
      %4653 = vrot.lane.b32.xlu0 %v4617, 124
      %v4654 = vpop.permute.xlu0 %4653
      %4655 = vrot.lane.b32.xlu0 %v4620, 124
      %v4656 = vpop.permute.xlu0 %4655
      %vm4661 = vcmask 392448
      %4662 = vst.msk [vmem:[%s224] sm:$0xff] %vm4661, %v4650
      %4663 = vst.msk [vmem:[%s224 + $0x10] sm:$0xff] %vm4661, %v4652
      %4664 = vst.msk [vmem:[%s224 + $0x20] sm:$0xff] %vm4661, %v4654
      %4665 = vst.msk [vmem:[%s224 + $0x30] sm:$0xff] %vm4661, %v4656
      %4666 = vrot.lane.b32.xlu0 %v4611, 122
      %v4667 = vpop.permute.xlu0 %4666
      %4668 = vrot.lane.b32.xlu0 %v4614, 122
      %v4669 = vpop.permute.xlu0 %4668
      %4670 = vrot.lane.b32.xlu0 %v4617, 122
      %v4671 = vpop.permute.xlu0 %4670
      %4672 = vrot.lane.b32.xlu0 %v4620, 122
      %v4673 = vpop.permute.xlu0 %4672
      %vm4678 = vcmask 523648
      %4679 = vst.msk [vmem:[%s224] sm:$0xff] %vm4678, %v4667
      %4680 = vst.msk [vmem:[%s224 + $0x10] sm:$0xff] %vm4678, %v4669
      %4681 = vst.msk [vmem:[%s224 + $0x20] sm:$0xff] %vm4678, %v4671
      %4682 = vst.msk [vmem:[%s224 + $0x30] sm:$0xff] %vm4678, %v4673
      %4683 = vrot.lane.b32.xlu0 %v4611, 120
      %v4684 = vpop.permute.xlu0 %4683
      %4685 = vrot.lane.b32.xlu0 %v4614, 120
      %v4686 = vpop.permute.xlu0 %4685
      %4687 = vrot.lane.b32.xlu0 %v4617, 120
      %v4688 = vpop.permute.xlu0 %4687
      %4689 = vrot.lane.b32.xlu0 %v4620, 120
      %v4690 = vpop.permute.xlu0 %4689
      %vm4695 = vcmask 654848
      %4696 = vst.msk [vmem:[%s224] sm:$0xff] %vm4695, %v4684
      %4697 = vst.msk [vmem:[%s224 + $0x10] sm:$0xff] %vm4695, %v4686
      %4698 = vst.msk [vmem:[%s224 + $0x20] sm:$0xff] %vm4695, %v4688
      %4699 = vst.msk [vmem:[%s224 + $0x30] sm:$0xff] %vm4695, %v4690
      %4700 = vrot.lane.b32.xlu0 %v4611, 118
      %v4701 = vpop.permute.xlu0 %4700
      %4702 = vrot.lane.b32.xlu0 %v4614, 118
      %v4703 = vpop.permute.xlu0 %4702
      %4704 = vrot.lane.b32.xlu0 %v4617, 118
      %v4705 = vpop.permute.xlu0 %4704
      %4706 = vrot.lane.b32.xlu0 %v4620, 118
      %v4707 = vpop.permute.xlu0 %4706
      %vm4712 = vcmask 786048
      %4713 = vst.msk [vmem:[%s224] sm:$0xff] %vm4712, %v4701
      %4714 = vst.msk [vmem:[%s224 + $0x10] sm:$0xff] %vm4712, %v4703
      %4715 = vst.msk [vmem:[%s224 + $0x20] sm:$0xff] %vm4712, %v4705
      %4716 = vst.msk [vmem:[%s224 + $0x30] sm:$0xff] %vm4712, %v4707
      %4717 = vrot.lane.b32.xlu0 %v4611, 116
      %v4718 = vpop.permute.xlu0 %4717
      %4719 = vrot.lane.b32.xlu0 %v4614, 116
      %v4720 = vpop.permute.xlu0 %4719
      %4721 = vrot.lane.b32.xlu0 %v4617, 116
      %v4722 = vpop.permute.xlu0 %4721
      %4723 = vrot.lane.b32.xlu0 %v4620, 116
      %v4724 = vpop.permute.xlu0 %4723
      %vm4729 = vcmask 917248
      %4730 = vst.msk [vmem:[%s224] sm:$0xff] %vm4729, %v4718
      %4731 = vst.msk [vmem:[%s224 + $0x10] sm:$0xff] %vm4729, %v4720
      %4732 = vst.msk [vmem:[%s224 + $0x20] sm:$0xff] %vm4729, %v4722
      %4733 = vst.msk [vmem:[%s224 + $0x30] sm:$0xff] %vm4729, %v4724
      %4738 = vrot.lane.b32.xlu0 %v4611, 114
      %v4739 = vpop.permute.xlu0 %4738
      %4740 = vrot.lane.b32.xlu0 %v4612, 114
      %v4741 = vpop.permute.xlu0 %4740
      %4742 = vrot.lane.b32.xlu0 %v4614, 114
      %v4743 = vpop.permute.xlu0 %4742
      %4744 = vrot.lane.b32.xlu0 %v4615, 114
      %v4745 = vpop.permute.xlu0 %4744
      %4746 = vrot.lane.b32.xlu0 %v4617, 114
      %v4747 = vpop.permute.xlu0 %4746
      %4748 = vrot.lane.b32.xlu0 %v4618, 114
      %v4749 = vpop.permute.xlu0 %4748
      %4750 = vrot.lane.b32.xlu0 %v4620, 114
      %v4751 = vpop.permute.xlu0 %4750
      %4752 = vrot.lane.b32.xlu0 %v4621, 114
      %v4753 = vpop.permute.xlu0 %4752
      %vm4754 = vcmask 932864
      %v4755 = vsel %vm4754, %v4739, %v4741
      %v4756 = vsel %vm4754, %v4743, %v4745
      %v4757 = vsel %vm4754, %v4747, %v4749
      %v4758 = vsel %vm4754, %v4751, %v4753
      %vm4763 = vcmask 1048448
      %4764 = vst.msk [vmem:[%s224] sm:$0xff] %vm4763, %v4755
      %4765 = vst.msk [vmem:[%s224 + $0x10] sm:$0xff] %vm4763, %v4756
      %4766 = vst.msk [vmem:[%s224 + $0x20] sm:$0xff] %vm4763, %v4757
      %4767 = vst.msk [vmem:[%s224 + $0x30] sm:$0xff] %vm4763, %v4758
      %4768 = vrot.lane.b32.xlu0 %v4612, 112
      %v4769 = vpop.permute.xlu0 %4768
      %4770 = vrot.lane.b32.xlu0 %v4615, 112
      %v4771 = vpop.permute.xlu0 %4770
      %4772 = vrot.lane.b32.xlu0 %v4618, 112
      %v4773 = vpop.permute.xlu0 %4772
      %4774 = vrot.lane.b32.xlu0 %v4621, 112
      %v4775 = vpop.permute.xlu0 %4774
      %4780 = vst.msk [vmem:[%s224 + $0x8] sm:$0xff] %vm4623, %v4769
      %4781 = vst.msk [vmem:[%s224 + $0x18] sm:$0xff] %vm4623, %v4771
      %4782 = vst.msk [vmem:[%s224 + $0x28] sm:$0xff] %vm4623, %v4773
      %4783 = vst.msk [vmem:[%s224 + $0x38] sm:$0xff] %vm4623, %v4775
      %4784 = vrot.lane.b32.xlu0 %v4612, 110
      %v4785 = vpop.permute.xlu0 %4784
      %4786 = vrot.lane.b32.xlu0 %v4615, 110
      %v4787 = vpop.permute.xlu0 %4786
      %4788 = vrot.lane.b32.xlu0 %v4618, 110
      %v4789 = vpop.permute.xlu0 %4788
      %4790 = vrot.lane.b32.xlu0 %v4621, 110
      %v4791 = vpop.permute.xlu0 %4790
      %4796 = vst.msk [vmem:[%s224 + $0x8] sm:$0xff] %vm4644, %v4785
      %4797 = vst.msk [vmem:[%s224 + $0x18] sm:$0xff] %vm4644, %v4787
      %4798 = vst.msk [vmem:[%s224 + $0x28] sm:$0xff] %vm4644, %v4789
      %4799 = vst.msk [vmem:[%s224 + $0x38] sm:$0xff] %vm4644, %v4791
      %4800 = vrot.lane.b32.xlu0 %v4612, 108
      %v4801 = vpop.permute.xlu0 %4800
      %4802 = vrot.lane.b32.xlu0 %v4615, 108
      %v4803 = vpop.permute.xlu0 %4802
      %4804 = vrot.lane.b32.xlu0 %v4618, 108
      %v4805 = vpop.permute.xlu0 %4804
      %4806 = vrot.lane.b32.xlu0 %v4621, 108
      %v4807 = vpop.permute.xlu0 %4806
      %4812 = vst.msk [vmem:[%s224 + $0x8] sm:$0xff] %vm4661, %v4801
      %4813 = vst.msk [vmem:[%s224 + $0x18] sm:$0xff] %vm4661, %v4803
      %4814 = vst.msk [vmem:[%s224 + $0x28] sm:$0xff] %vm4661, %v4805
      %4815 = vst.msk [vmem:[%s224 + $0x38] sm:$0xff] %vm4661, %v4807
      %4816 = vrot.lane.b32.xlu0 %v4612, 106
      %v4817 = vpop.permute.xlu0 %4816
      %4818 = vrot.lane.b32.xlu0 %v4615, 106
      %v4819 = vpop.permute.xlu0 %4818
      %4820 = vrot.lane.b32.xlu0 %v4618, 106
      %v4821 = vpop.permute.xlu0 %4820
      %4822 = vrot.lane.b32.xlu0 %v4621, 106
      %v4823 = vpop.permute.xlu0 %4822
      %4828 = vst.msk [vmem:[%s224 + $0x8] sm:$0xff] %vm4678, %v4817
      %4829 = vst.msk [vmem:[%s224 + $0x18] sm:$0xff] %vm4678, %v4819
      %4830 = vst.msk [vmem:[%s224 + $0x28] sm:$0xff] %vm4678, %v4821
      %4831 = vst.msk [vmem:[%s224 + $0x38] sm:$0xff] %vm4678, %v4823
      %4832 = vrot.lane.b32.xlu0 %v4612, 104
      %v4833 = vpop.permute.xlu0 %4832
      %4834 = vrot.lane.b32.xlu0 %v4615, 104
      %v4835 = vpop.permute.xlu0 %4834
      %4836 = vrot.lane.b32.xlu0 %v4618, 104
      %v4837 = vpop.permute.xlu0 %4836
      %4838 = vrot.lane.b32.xlu0 %v4621, 104
      %v4839 = vpop.permute.xlu0 %4838
      %4844 = vst.msk [vmem:[%s224 + $0x8] sm:$0xff] %vm4695, %v4833
      %4845 = vst.msk [vmem:[%s224 + $0x18] sm:$0xff] %vm4695, %v4835
      %4846 = vst.msk [vmem:[%s224 + $0x28] sm:$0xff] %vm4695, %v4837
      %4847 = vst.msk [vmem:[%s224 + $0x38] sm:$0xff] %vm4695, %v4839
      %4848 = vrot.lane.b32.xlu0 %v4612, 102
      %v4849 = vpop.permute.xlu0 %4848
      %4850 = vrot.lane.b32.xlu0 %v4615, 102
      %v4851 = vpop.permute.xlu0 %4850
      %4852 = vrot.lane.b32.xlu0 %v4618, 102
      %v4853 = vpop.permute.xlu0 %4852
      %4854 = vrot.lane.b32.xlu0 %v4621, 102
      %v4855 = vpop.permute.xlu0 %4854
      %4860 = vst.msk [vmem:[%s224 + $0x8] sm:$0xff] %vm4712, %v4849
      %4861 = vst.msk [vmem:[%s224 + $0x18] sm:$0xff] %vm4712, %v4851
      %4862 = vst.msk [vmem:[%s224 + $0x28] sm:$0xff] %vm4712, %v4853
      %4863 = vst.msk [vmem:[%s224 + $0x38] sm:$0xff] %vm4712, %v4855
      %4868 = vrot.lane.b32.xlu0 %v4612, 100
      %v4869 = vpop.permute.xlu0 %4868
      %4870 = vrot.lane.b32.xlu0 %v4613, 100
      %v4871 = vpop.permute.xlu0 %4870
      %4872 = vrot.lane.b32.xlu0 %v4615, 100
      %v4873 = vpop.permute.xlu0 %4872
      %4874 = vrot.lane.b32.xlu0 %v4616, 100
      %v4875 = vpop.permute.xlu0 %4874
      %4876 = vrot.lane.b32.xlu0 %v4618, 100
      %v4877 = vpop.permute.xlu0 %4876
      %4878 = vrot.lane.b32.xlu0 %v4619, 100
      %v4879 = vpop.permute.xlu0 %4878
      %4880 = vrot.lane.b32.xlu0 %v4621, 100
      %v4881 = vpop.permute.xlu0 %4880
      %4882 = vrot.lane.b32.xlu0 %v4622, 100
      %v4883 = vpop.permute.xlu0 %4882
      %vm4884 = vcmask 818176
      %v4885 = vsel %vm4884, %v4869, %v4871
      %v4886 = vsel %vm4884, %v4873, %v4875
      %v4887 = vsel %vm4884, %v4877, %v4879
      %v4888 = vsel %vm4884, %v4881, %v4883
      %4893 = vst.msk [vmem:[%s224 + $0x8] sm:$0xff] %vm4729, %v4885
      %4894 = vst.msk [vmem:[%s224 + $0x18] sm:$0xff] %vm4729, %v4886
      %4895 = vst.msk [vmem:[%s224 + $0x28] sm:$0xff] %vm4729, %v4887
      %4896 = vst.msk [vmem:[%s224 + $0x38] sm:$0xff] %vm4729, %v4888
      %4897 = vrot.lane.b32.xlu0 %v4613, 98
      %v4898 = vpop.permute.xlu0 %4897
      %4899 = vrot.lane.b32.xlu0 %v4616, 98
      %v4900 = vpop.permute.xlu0 %4899
      %4901 = vrot.lane.b32.xlu0 %v4619, 98
      %v4902 = vpop.permute.xlu0 %4901
      %4903 = vrot.lane.b32.xlu0 %v4622, 98
      %v4904 = vpop.permute.xlu0 %4903
      %4909 = vst.msk [vmem:[%s224 + $0x8] sm:$0xff] %vm4763, %v4898
      %4910 = vst.msk [vmem:[%s224 + $0x18] sm:$0xff] %vm4763, %v4900
      %4911 = vst.msk [vmem:[%s224 + $0x28] sm:$0xff] %vm4763, %v4902
      %4912 = vst.msk [vmem:[%s224 + $0x38] sm:$0xff] %vm4763, %v4904
      %p4913 = scmp.lt.s32.totalorder %s16, 1
      %s4914 = scalar_select %p4913, %s16, 1
      %s4915 = smul.addr %s4914, 8
      %s4916 = smul.addr %s4915, 8
      %s4917 = scalar_lea.vmem %s5, %s4916
      // Predicated region
      $region41: #{input_conv_block_forward.1} parent=39 // pred_check
        %p4918 = pneg %p144
      $region42: #{input_conv_block_forward.1} parent=39 // pred_check_branch
        %4920 = sbr.rel (%p4918) target = $region44
      $region43: #{input_conv_block_forward.1} parent=39 // pred_region
        _
      $region44: #{input_conv_block_forward.1} parent=39 // pred_fallthru
        _
    $region40: #{input_conv_block_forward.1} parent=5 // pred_fallthru
      _
    %p4921 = scmp.le.s32.totalorder 2, %s11
    // Predicated region
    $region45: #{input_conv_block_forward.1} parent=5 // pred_check
      %p4922 = pneg %p4921
    $region46: #{input_conv_block_forward.1} parent=5 // pred_check_branch
      %4924 = sbr.rel (%p4922) target = $region48
    $region47: #{input_conv_block_forward.1} parent=5 // pred_region
      %s4925 = ssub.s32 %s11, 2
      // Predicated region
      $region49: #{input_conv_block_forward.1} parent=47 // pred_check
        %p4926 = pneg %p150
      $region50: #{input_conv_block_forward.1} parent=47 // pred_check_branch
        %4928 = sbr.rel (%p4926) target = $region52
      $region51: #{input_conv_block_forward.1} parent=47 // pred_region
        %p4929 = scmp.lt.s32.totalorder %s17, 1
        %s4930 = scalar_select %p4929, %s17, 1
        %s4931 = smul.addr %s4930, 8
        %s4932 = smul.addr %s4931, 8
        %s4933 = scalar_lea.vmem %s5, %s4932
      $region52: #{input_conv_block_forward.1} parent=47 // pred_fallthru
        _
    $region48: #{input_conv_block_forward.1} parent=5 // pred_fallthru
      _
  $region6: #{input_conv_block_forward.1} parent=0 // loop_footer
    %s15 = sadd.s32 1, %s11
  $region7: #{input_conv_block_forward.1} parent=0 // loop_footer_branch
    %10 = sbr.rel target = $region3
  $region8: #{input_conv_block_forward.1} parent=0 // loop_exit
    _

</llo_original>
